<compile_context>
chip_gen: v7x
topology: tpu7x:2x2x1
jax: 0.10.0
libtpu: 0.0.40
codegen_flags: <defaults>
</compile_context>

<pallas_src>
import functools

import jax
import jax.numpy as jnp
from jax.experimental import pallas as pl
from jax.experimental.pallas import tpu as pltpu


# ----------------------------------------------------------------------------- model config

C_IN = 3
C_STEM = 32
EXPAND = 4
C_EXP = C_STEM * EXPAND            # 128
C_SE = max(1, C_STEM // 4)         # 8
C_HEAD = 64
OUT_DIM = 3

LANE = 128


def _ceil_to(x, m):
    return ((x + m - 1) // m) * m


C_STEM_P = _ceil_to(C_STEM, LANE)  # 128
C_EXP_P = _ceil_to(C_EXP, LANE)    # 128
C_SE_P = _ceil_to(C_SE, LANE)      # 128
C_HEAD_P = _ceil_to(C_HEAD, LANE)  # 128
OUT_P = _ceil_to(OUT_DIM, LANE)    # 128
K_STEM = 3 * 3 * C_IN              # 27
K_STEM_P = _ceil_to(K_STEM, 8)     # 32 (sublane-aligned contraction dim)

_VMEM_LIMIT = 32 * 1024 * 1024     # explicit scoped-VMEM limit, safe on v5e/v6e/v7x


def _row_tile(m, target=512):
    """Largest row-tile (multiple of 8) dividing m, aiming for ~512 rows (HBM-roofline sweet spot)."""
    for t in (target, 256, 128, 64, 32, 16, 8):
        if t <= m and m % t == 0:
            return t
    return m


# ----------------------------------------------------------------------------- Pallas kernels

def _mm_bn_act_kernel(x_ref, w_ref, scale_ref, bias_ref, o_ref, *, act):
    """y = act((x @ w) * scale + bias) -- 1x1 conv / conv-as-matmul with folded BatchNorm.

    x/w are bf16 (MXU), accumulation + epilogue in f32 (v5e-safe VPU/EUP), output bf16.
    """
    y = jnp.dot(x_ref[...], w_ref[...], preferred_element_type=jnp.float32)
    y = y * scale_ref[...] + bias_ref[...]
    if act == "silu":
        y = y * jax.nn.sigmoid(y)
    o_ref[...] = y.astype(o_ref.dtype)


def _dwconv_se_kernel(xp_ref, w_ref, scale_ref, bias_ref,
                      w1_ref, b1_ref, w2_ref, b2_ref,
                      y_ref, gate_ref, *, H, W, inv_hw):
    """3x3 depthwise conv (stride 1, pre-padded input) + folded BN + SiLU, fused with the
    SE squeeze+excite gate computation (per-image channel gate emitted as a 2nd output)."""
    b = pl.program_id(0)
    Ce = xp_ref.shape[-1]
    xp = xp_ref[0].astype(jnp.float32)                      # (H+2, W+2, Ce)

    acc = jnp.zeros((H, W, Ce), jnp.float32)
    for ky in range(3):
        for kx in range(3):
            acc = acc + xp[ky:ky + H, kx:kx + W, :] * w_ref[ky, kx, :]
    y = acc * scale_ref[...] + bias_ref[...]
    y = y * jax.nn.sigmoid(y)                               # SiLU (f32 VPU/EUP)
    y_ref[0] = y.astype(y_ref.dtype)

    # fused SE: global mean -> FC -> SiLU -> FC -> sigmoid  (tiny, per-image)
    pooled = jnp.sum(y, axis=(0, 1), keepdims=True).reshape(1, Ce) * inv_hw
    h = jnp.dot(pooled, w1_ref[...], preferred_element_type=jnp.float32) + b1_ref[...]
    h = h * jax.nn.sigmoid(h)
    s = jnp.dot(h, w2_ref[...], preferred_element_type=jnp.float32) + b2_ref[...]
    gate_ref[pl.ds(b, 1), :] = jax.nn.sigmoid(s)


def _project_kernel(x_ref, gate_ref, w_ref, scale_ref, bias_ref, res_ref, o_ref):
    """Fused MBConv tail: y = ((x * se_gate) @ w_proj) * scale + bias + residual."""
    b = pl.program_id(0)
    gate = gate_ref[pl.ds(b, 1), :]                         # (1, Ce) f32, per-image SE gate
    xg = x_ref[0].astype(jnp.float32) * gate                # channel gating in f32
    y = jnp.dot(xg.astype(jnp.bfloat16), w_ref[...],
                preferred_element_type=jnp.float32)
    y = y * scale_ref[...] + bias_ref[...] + res_ref[0].astype(jnp.float32)
    o_ref[0] = y.astype(o_ref.dtype)


def _head_pool_fc_kernel(x_ref, wh_ref, sc_ref, bi_ref, wf_ref, bf_ref,
                         o_ref, acc_ref, *, inv_hw):
    """Fused head 1x1 conv + BN + SiLU + global average pool + classifier.

    Per row tile: y = silu((x @ Wh) * scale + bias); channel sums accumulated in VMEM scratch;
    finalize step does the tiny [1,Ch] x [Ch,OUT_P] matmul and writes one logit row.
    """
    b = pl.program_id(0)
    t = pl.program_id(1)

    @pl.when(t == 0)
    def _():
        acc_ref[...] = jnp.zeros_like(acc_ref)

    y = jnp.dot(x_ref[0], wh_ref[...], preferred_element_type=jnp.float32)
    y = y * sc_ref[...] + bi_ref[...]
    y = y * jax.nn.sigmoid(y)
    acc_ref[...] += jnp.sum(y, axis=0, keepdims=True)

    @pl.when(t == pl.num_programs(1) - 1)
    def _():
        pooled = acc_ref[...] * inv_hw                      # (1, Ch)
        logits = jnp.dot(pooled, wf_ref[...], preferred_element_type=jnp.float32) + bf_ref[...]
        o_ref[pl.ds(b, 1), :] = logits.astype(o_ref.dtype)


# ----------------------------------------------------------------------------- kernel wrappers

def matmul_bn_act(x, w, scale, bias, act="silu"):
    M, K = x.shape
    N = w.shape[1]
    tm = _row_tile(M)
    scale2 = scale.reshape(1, N).astype(jnp.float32)
    bias2 = bias.reshape(1, N).astype(jnp.float32)
    kernel = functools.partial(_mm_bn_act_kernel, act=act)
    return pl.pallas_call(
        kernel,
        out_shape=jax.ShapeDtypeStruct((M, N), jnp.bfloat16),
        grid=(M // tm,),
        in_specs=[pl.BlockSpec((tm, K), lambda i: (i, 0)),       # streaming activations
                  pl.BlockSpec((K, N), lambda i: (0, 0)),        # weights: VMEM-resident
                  pl.BlockSpec((1, N), lambda i: (0, 0)),
                  pl.BlockSpec((1, N), lambda i: (0, 0))],
        out_specs=pl.BlockSpec((tm, N), lambda i: (i, 0)),
        compiler_params=pltpu.CompilerParams(
            dimension_semantics=("parallel",),
            vmem_limit_bytes=_VMEM_LIMIT),
    )(x.astype(jnp.bfloat16), w.astype(jnp.bfloat16), scale2, bias2)


def dwconv_se(x, dw_w, dw_scale, dw_bias, se_w1, se_b1, se_w2, se_b2):
    Nb, H, W, Ce = x.shape
    Cse = se_w1.shape[1]
    # TODO(synk): express the 1-pixel halo in-kernel (shift/halo BlockSpec) instead of
    #             materializing a padded bf16 copy in HBM (extra pass over the largest tensor).
    xp = jnp.pad(x, ((0, 0), (1, 1), (1, 1), (0, 0)))
    kernel = functools.partial(_dwconv_se_kernel, H=H, W=W, inv_hw=1.0 / float(H * W))
    y, gate = pl.pallas_call(
        kernel,
        out_shape=(jax.ShapeDtypeStruct((Nb, H, W, Ce), jnp.bfloat16),
                   jax.ShapeDtypeStruct((Nb, Ce), jnp.float32)),
        grid=(Nb,),
        in_specs=[pl.BlockSpec((1, H + 2, W + 2, Ce), lambda b: (b, 0, 0, 0)),
                  pl.BlockSpec((3, 3, Ce), lambda b: (0, 0, 0)),
                  pl.BlockSpec((1, 1, Ce), lambda b: (0, 0, 0)),
                  pl.BlockSpec((1, 1, Ce), lambda b: (0, 0, 0)),
                  pl.BlockSpec((Ce, Cse), lambda b: (0, 0)),
                  pl.BlockSpec((1, Cse), lambda b: (0, 0)),
                  pl.BlockSpec((Cse, Ce), lambda b: (0, 0)),
                  pl.BlockSpec((1, Ce), lambda b: (0, 0))],
        out_specs=(pl.BlockSpec((1, H, W, Ce), lambda b: (b, 0, 0, 0)),
                   pl.BlockSpec((Nb, Ce), lambda b: (0, 0))),      # gate: resident, row per step
        compiler_params=pltpu.CompilerParams(
            dimension_semantics=("arbitrary",),
            vmem_limit_bytes=_VMEM_LIMIT),
    )(xp,
      dw_w.astype(jnp.float32),
      dw_scale.reshape(1, 1, Ce).astype(jnp.float32),
      dw_bias.reshape(1, 1, Ce).astype(jnp.float32),
      se_w1.astype(jnp.float32), se_b1.reshape(1, Cse).astype(jnp.float32),
      se_w2.astype(jnp.float32), se_b2.reshape(1, Ce).astype(jnp.float32))
    return y, gate


def mbconv_project(x, gate, w, scale, bias, residual):
    Nb, HW, Ce = x.shape
    Cp = w.shape[1]
    thw = _row_tile(HW)
    scale2 = scale.reshape(1, Cp).astype(jnp.float32)
    bias2 = bias.reshape(1, Cp).astype(jnp.float32)
    return pl.pallas_call(
        _project_kernel,
        out_shape=jax.ShapeDtypeStruct((Nb, HW, Cp), jnp.bfloat16),
        grid=(Nb, HW // thw),
        in_specs=[pl.BlockSpec((1, thw, Ce), lambda b, t: (b, t, 0)),
                  pl.BlockSpec((Nb, Ce), lambda b, t: (0, 0)),     # SE gate: resident
                  pl.BlockSpec((Ce, Cp), lambda b, t: (0, 0)),     # weights: resident
                  pl.BlockSpec((1, Cp), lambda b, t: (0, 0)),
                  pl.BlockSpec((1, Cp), lambda b, t: (0, 0)),
                  pl.BlockSpec((1, thw, Cp), lambda b, t: (b, t, 0))],
        out_specs=pl.BlockSpec((1, thw, Cp), lambda b, t: (b, t, 0)),
        compiler_params=pltpu.CompilerParams(
            dimension_semantics=("parallel", "parallel"),
            vmem_limit_bytes=_VMEM_LIMIT),
    )(x, gate, w.astype(jnp.bfloat16), scale2, bias2, residual)


def head_pool_classifier(x, head_w, head_scale, head_bias, fc_w, fc_b):
    Nb, HW, Cs = x.shape
    Ch = head_w.shape[1]
    Np = fc_w.shape[1]
    thw = _row_tile(HW)
    kernel = functools.partial(_head_pool_fc_kernel, inv_hw=1.0 / float(HW))
    return pl.pallas_call(
        kernel,
        out_shape=jax.ShapeDtypeStruct((Nb, Np), jnp.float32),
        grid=(Nb, HW // thw),
        in_specs=[pl.BlockSpec((1, thw, Cs), lambda b, t: (b, t, 0)),
                  pl.BlockSpec((Cs, Ch), lambda b, t: (0, 0)),     # head weights: resident
                  pl.BlockSpec((1, Ch), lambda b, t: (0, 0)),
                  pl.BlockSpec((1, Ch), lambda b, t: (0, 0)),
                  pl.BlockSpec((Ch, Np), lambda b, t: (0, 0)),     # fc weights: resident
                  pl.BlockSpec((1, Np), lambda b, t: (0, 0))],
        out_specs=pl.BlockSpec((Nb, Np), lambda b, t: (0, 0)),     # resident accumulator output
        scratch_shapes=[pltpu.VMEM((1, Ch), jnp.float32)],
        compiler_params=pltpu.CompilerParams(
            dimension_semantics=("arbitrary", "arbitrary"),
            vmem_limit_bytes=_VMEM_LIMIT),
    )(x, head_w.astype(jnp.bfloat16),
      head_scale.reshape(1, Ch).astype(jnp.float32),
      head_bias.reshape(1, Ch).astype(jnp.float32),
      fc_w.astype(jnp.float32), fc_b.reshape(1, Np).astype(jnp.float32))


# ----------------------------------------------------------------------------- glue (plain JAX)

def im2col(x, ksize, stride, pad):
    """NHWC -> [N*Ho*Wo, ksize*ksize*C] patch matrix (conv-as-matmul)."""
    N, H, W, C = x.shape
    xp = jnp.pad(x, ((0, 0), (pad, pad), (pad, pad), (0, 0)))
    Ho = (H + 2 * pad - ksize) // stride + 1
    Wo = (W + 2 * pad - ksize) // stride + 1
    cols = []
    for ky in range(ksize):
        for kx in range(ksize):
            cols.append(xp[:, ky:ky + stride * Ho:stride, kx:kx + stride * Wo:stride, :])
    patches = jnp.concatenate(cols, axis=-1)                # [N, Ho, Wo, k*k*C]
    return patches.reshape(N * Ho * Wo, ksize * ksize * C), (N, Ho, Wo)


def _bn_fold(key, c, eps=1e-3):
    k1, k2, k3, k4 = jax.random.split(key, 4)
    gamma = 1.0 + 0.1 * jax.random.normal(k1, (c,), jnp.float32)
    beta = 0.1 * jax.random.normal(k2, (c,), jnp.float32)
    mean = 0.1 * jax.random.normal(k3, (c,), jnp.float32)
    var = jnp.abs(1.0 + 0.1 * jax.random.normal(k4, (c,), jnp.float32))
    scale = gamma / jnp.sqrt(var + eps)
    bias = beta - mean * scale
    return scale, bias


def init_params(key):
    """Logical (unpadded, f32) parameters of the synthetic stem->MBConv->head->fc pipeline."""
    ks = jax.random.split(key, 16)
    p = {}
    p["stem_w"] = 0.1 * jax.random.normal(ks[0], (K_STEM, C_STEM), jnp.float32)
    p["stem_scale"], p["stem_bias"] = _bn_fold(ks[1], C_STEM)
    p["exp_w"] = 0.1 * jax.random.normal(ks[2], (C_STEM, C_EXP), jnp.float32)
    p["exp_scale"], p["exp_bias"] = _bn_fold(ks[3], C_EXP)
    p["dw_w"] = 0.1 * jax.random.normal(ks[4], (3, 3, C_EXP), jnp.float32)
    p["dw_scale"], p["dw_bias"] = _bn_fold(ks[5], C_EXP)
    p["se_w1"] = 0.1 * jax.random.normal(ks[6], (C_EXP, C_SE), jnp.float32)
    p["se_b1"] = 0.01 * jax.random.normal(ks[7], (C_SE,), jnp.float32)
    p["se_w2"] = 0.1 * jax.random.normal(ks[8], (C_SE, C_EXP), jnp.float32)
    p["se_b2"] = 0.01 * jax.random.normal(ks[9], (C_EXP,), jnp.float32)
    p["proj_w"] = 0.1 * jax.random.normal(ks[10], (C_EXP, C_STEM), jnp.float32)
    p["proj_scale"], p["proj_bias"] = _bn_fold(ks[11], C_STEM)
    p["head_w"] = 0.1 * jax.random.normal(ks[12], (C_STEM, C_HEAD), jnp.float32)
    p["head_scale"], p["head_bias"] = _bn_fold(ks[13], C_HEAD)
    p["fc_w"] = 0.1 * jax.random.normal(ks[14], (C_HEAD, OUT_DIM), jnp.float32)
    p["fc_b"] = 0.01 * jax.random.normal(ks[15], (OUT_DIM,), jnp.float32)
    return p


def _pad2(a, rows, cols):
    return jnp.pad(a, ((0, rows - a.shape[0]), (0, cols - a.shape[1])))


def _pad1(a, n):
    return jnp.pad(a, ((0, n - a.shape[0]),))


def prepare_params(p):
    """Pad every channel axis to a lane-dense multiple of 128 (zero padding keeps the padded
    channels identically zero end-to-end) and cast MXU weights to bf16; BN scale/bias stay f32."""
    q = {}
    q["stem_w"] = _pad2(p["stem_w"], K_STEM_P, C_STEM_P).astype(jnp.bfloat16)
    q["stem_scale"] = _pad1(p["stem_scale"], C_STEM_P)
    q["stem_bias"] = _pad1(p["stem_bias"], C_STEM_P)
    q["exp_w"] = _pad2(p["exp_w"], C_STEM_P, C_EXP_P).astype(jnp.bfloat16)
    q["exp_scale"] = _pad1(p["exp_scale"], C_EXP_P)
    q["exp_bias"] = _pad1(p["exp_bias"], C_EXP_P)
    q["dw_w"] = jnp.pad(p["dw_w"], ((0, 0), (0, 0), (0, C_EXP_P - C_EXP)))
    q["dw_scale"] = _pad1(p["dw_scale"], C_EXP_P)
    q["dw_bias"] = _pad1(p["dw_bias"], C_EXP_P)
    q["se_w1"] = _pad2(p["se_w1"], C_EXP_P, C_SE_P)
    q["se_b1"] = _pad1(p["se_b1"], C_SE_P)
    q["se_w2"] = _pad2(p["se_w2"], C_SE_P, C_EXP_P)
    q["se_b2"] = _pad1(p["se_b2"], C_EXP_P)
    q["proj_w"] = _pad2(p["proj_w"], C_EXP_P, C_STEM_P).astype(jnp.bfloat16)
    q["proj_scale"] = _pad1(p["proj_scale"], C_STEM_P)
    q["proj_bias"] = _pad1(p["proj_bias"], C_STEM_P)
    q["head_w"] = _pad2(p["head_w"], C_STEM_P, C_HEAD_P).astype(jnp.bfloat16)
    q["head_scale"] = _pad1(p["head_scale"], C_HEAD_P)
    q["head_bias"] = _pad1(p["head_bias"], C_HEAD_P)
    q["fc_w"] = _pad2(p["fc_w"], C_HEAD_P, OUT_P)
    q["fc_b"] = _pad1(p["fc_b"], OUT_P)
    return q


# ----------------------------------------------------------------------------- forward passes

def effnet_forward(pp, x_nchw):
    """EffnetB7_NS.forward equivalent (Pallas kernels): NCHW batch -> [N, out_dim] logits."""
    x = jnp.transpose(x_nchw, (0, 2, 3, 1)).astype(jnp.float32)       # NCHW -> NHWC

    # --- stem: conv3x3 stride-2 as matmul over im2col patches (K padded 27->32, N -> 128)
    # TODO(synk): at real B7 resolution the stem should be an in-kernel strided tap accumulate
    #             instead of materializing the im2col patch matrix in HBM.
    patches, (Nb, H, W) = im2col(x, ksize=3, stride=2, pad=1)
    patches = jnp.pad(patches, ((0, 0), (0, K_STEM_P - patches.shape[1])))
    y = matmul_bn_act(patches, pp["stem_w"], pp["stem_scale"], pp["stem_bias"], act="silu")
    M = Nb * H * W
    res = y                                                           # (M, C_STEM_P) bf16

    # --- MBConv: expand -> fused(dwconv + SE gate) -> fused(gate * x @ proj + BN + residual)
    y = matmul_bn_act(y, pp["exp_w"], pp["exp_scale"], pp["exp_bias"], act="silu")
    ydw, gate = dwconv_se(y.reshape(Nb, H, W, C_EXP_P),
                          pp["dw_w"], pp["dw_scale"], pp["dw_bias"],
                          pp["se_w1"], pp["se_b1"], pp["se_w2"], pp["se_b2"])
    y = mbconv_project(ydw.reshape(Nb, H * W, C_EXP_P), gate,
                       pp["proj_w"], pp["proj_scale"], pp["proj_bias"],
                       res.reshape(Nb, H * W, C_STEM_P))

    # --- fused head 1x1 conv + BN + SiLU + global average pool + classifier
    logits = head_pool_classifier(y, pp["head_w"], pp["head_scale"], pp["head_bias"],
                                  pp["fc_w"], pp["fc_b"])
    return logits[:, :OUT_DIM]


def reference_forward(p, x_nchw):
    """Pure-JAX f32 reference of the same forward pass (validates the Pallas pipeline)."""
    silu = lambda v: v * jax.nn.sigmoid(v)
    x = jnp.transpose(x_nchw, (0, 2, 3, 1)).astype(jnp.float32)
    patches, (Nb, H, W) = im2col(x, ksize=3, stride=2, pad=1)
    y = silu((patches @ p["stem_w"]) * p["stem_scale"] + p["stem_bias"])
    x = y.reshape(Nb, H, W, C_STEM)
    res = x
    y = silu((x.reshape(-1, C_STEM) @ p["exp_w"]) * p["exp_scale"] + p["exp_bias"])
    x = y.reshape(Nb, H, W, C_EXP)
    xp = jnp.pad(x, ((0, 0), (1, 1), (1, 1), (0, 0)))
    acc = jnp.zeros_like(x)
    for ky in range(3):
        for kx in range(3):
            acc = acc + xp[:, ky:ky + H, kx:kx + W, :] * p["dw_w"][ky, kx, :]
    x = silu(acc * p["dw_scale"] + p["dw_bias"])
    pooled = jnp.mean(x, axis=(1, 2))
    h = silu(pooled @ p["se_w1"] + p["se_b1"])
    s = jax.nn.sigmoid(h @ p["se_w2"] + p["se_b2"])
    x = x * s[:, None, None, :]
    y = ((x.reshape(-1, C_EXP) @ p["proj_w"]) * p["proj_scale"] + p["proj_bias"]
         + res.reshape(-1, C_STEM))
    x = y.reshape(Nb, H, W, C_STEM)
    y = silu((x.reshape(-1, C_STEM) @ p["head_w"]) * p["head_scale"] + p["head_bias"])
    x = y.reshape(Nb, H, W, C_HEAD)
    pooled = jnp.mean(x, axis=(1, 2))
    return pooled @ p["fc_w"] + p["fc_b"]


# ----------------------------------------------------------------------------- main

if __name__ == "__main__":
    key = jax.random.PRNGKey(0)
    k_x, k_p = jax.random.split(key)
    x = jax.random.normal(k_x, (2, 3, 16, 16), jnp.float32)   # NCHW, like PyTorch input
    params = init_params(k_p)
    padded = prepare_params(params)

    fwd = jax.jit(effnet_forward)
    out = jax.block_until_ready(fwd(padded, x))

    ref = reference_forward(params, x)

    assert out.shape == (2, OUT_DIM), out.shape
    assert jnp.all(jnp.isfinite(out))
    err = float(jnp.max(jnp.abs(out.astype(jnp.float32) - ref)))
    assert err < 5e-2, f"max |pallas - ref| = {err}"
    print("KERNEL_OK")
</pallas_src>

<mosaic_0001>
module attributes {stable_mosaic.version = 11 : i64} {
  func.func @_mm_bn_act_kernel(%arg0: i32, %arg1: memref<128x128xbf16, #tpu.memory_space<vmem>>, %arg2: memref<128x128xbf16, #tpu.memory_space<vmem>>, %arg3: memref<1x128xf32, #tpu.memory_space<vmem>>, %arg4: memref<1x128xf32, #tpu.memory_space<vmem>>, %arg5: memref<128x128xbf16, #tpu.memory_space<vmem>>) attributes {dimension_semantics = [#tpu.dimension_semantics<parallel>], iteration_bounds = array<i64: 1>, scalar_prefetch = 0 : i64, scratch_operands = 0 : i64, tpu.core_type = #tpu.core_type<tc>, window_params = [{transform_indices = @transform_0, window_bounds = array<i64: 128, 128>}, {pipeline_mode = #tpu.pipeline_mode<synchronous>, transform_indices = @transform_1, window_bounds = array<i64: 128, 128>}, {pipeline_mode = #tpu.pipeline_mode<synchronous>, transform_indices = @transform_2, window_bounds = array<i64: 1, 128>}, {pipeline_mode = #tpu.pipeline_mode<synchronous>, transform_indices = @transform_3, window_bounds = array<i64: 1, 128>}, {transform_indices = @transform_4, window_bounds = array<i64: 128, 128>}]} {
    %c0 = arith.constant 0 : index
    %c0_0 = arith.constant 0 : index
    %0 = vector.load %arg1[%c0, %c0_0] : memref<128x128xbf16, #tpu.memory_space<vmem>>, vector<128x128xbf16>
    %c0_1 = arith.constant 0 : index
    %c0_2 = arith.constant 0 : index
    %1 = vector.load %arg2[%c0_1, %c0_2] : memref<128x128xbf16, #tpu.memory_space<vmem>>, vector<128x128xbf16>
    %cst = arith.constant dense<0.000000e+00> : vector<128x128xf32>
    %2 = tpu.matmul %0, %1, %cst {dimension_numbers = #tpu.dot_dimension_numbers<[1], [0], [0], [1], [0, 0, 1, 1], [], []>} : vector<128x128xbf16>, vector<128x128xbf16>, vector<128x128xf32> -> vector<128x128xf32>
    %c0_3 = arith.constant 0 : index
    %c0_4 = arith.constant 0 : index
    %3 = vector.load %arg3[%c0_3, %c0_4] : memref<1x128xf32, #tpu.memory_space<vmem>>, vector<1x128xf32>
    %4 = vector.broadcast %3 : vector<1x128xf32> to vector<128x128xf32>
    %5 = arith.mulf %2, %4 : vector<128x128xf32>
    %c0_5 = arith.constant 0 : index
    %c0_6 = arith.constant 0 : index
    %6 = vector.load %arg4[%c0_5, %c0_6] : memref<1x128xf32, #tpu.memory_space<vmem>>, vector<1x128xf32>
    %7 = vector.broadcast %6 : vector<1x128xf32> to vector<128x128xf32>
    %8 = arith.addf %5, %7 : vector<128x128xf32>
    %9 = arith.negf %8 : vector<128x128xf32>
    %10 = math.exp %9 : vector<128x128xf32>
    %cst_7 = arith.constant 1.000000e+00 : f32
    %11 = vector.broadcast %cst_7 : f32 to vector<128x128xf32>
    %12 = arith.addf %11, %10 : vector<128x128xf32>
    %13 = arith.divf %11, %12 : vector<128x128xf32>
    %14 = arith.mulf %8, %13 : vector<128x128xf32>
    %15 = arith.truncf %14 : vector<128x128xf32> to vector<128x128xbf16>
    %c0_8 = arith.constant 0 : index
    %c0_9 = arith.constant 0 : index
    %16 = vector.load %arg5[%c0_8, %c0_9] : memref<128x128xbf16, #tpu.memory_space<vmem>>, vector<128x128xbf16>
    tpu.vector_store %arg5[%c0_8, %c0_9], %15 {strides = array<i32>} : memref<128x128xbf16, #tpu.memory_space<vmem>>, vector<128x128xbf16>,
    return
  }
  func.func @transform_0(%arg0: i32) -> (i32, i32) {
    %c0_i32 = arith.constant 0 : i32
    %c0_i32_0 = arith.constant 0 : i32
    return %arg0, %c0_i32 : i32, i32
  }
  func.func @transform_1(%arg0: i32) -> (i32, i32) {
    %c0_i32 = arith.constant 0 : i32
    %c0_i32_0 = arith.constant 0 : i32
    %c0_i32_1 = arith.constant 0 : i32
    return %c0_i32, %c0_i32_0 : i32, i32
  }
  func.func @transform_2(%arg0: i32) -> (i32, i32) {
    %c0_i32 = arith.constant 0 : i32
    %c0_i32_0 = arith.constant 0 : i32
    %c0_i32_1 = arith.constant 0 : i32
    return %c0_i32, %c0_i32_0 : i32, i32
  }
  func.func @transform_3(%arg0: i32) -> (i32, i32) {
    %c0_i32 = arith.constant 0 : i32
    %c0_i32_0 = arith.constant 0 : i32
    %c0_i32_1 = arith.constant 0 : i32
    return %c0_i32, %c0_i32_0 : i32, i32
  }
  func.func @transform_4(%arg0: i32) -> (i32, i32) {
    %c0_i32 = arith.constant 0 : i32
    %c0_i32_0 = arith.constant 0 : i32
    return %arg0, %c0_i32 : i32, i32
  }
}

module attributes {stable_mosaic.version = 11 : i64} {
  func.func @_mm_bn_act_kernel(%arg0: i32, %arg1: memref<128x32xbf16, #tpu.memory_space<vmem>>, %arg2: memref<32x128xbf16, #tpu.memory_space<vmem>>, %arg3: memref<1x128xf32, #tpu.memory_space<vmem>>, %arg4: memref<1x128xf32, #tpu.memory_space<vmem>>, %arg5: memref<128x128xbf16, #tpu.memory_space<vmem>>) attributes {dimension_semantics = [#tpu.dimension_semantics<parallel>], iteration_bounds = array<i64: 1>, scalar_prefetch = 0 : i64, scratch_operands = 0 : i64, tpu.core_type = #tpu.core_type<tc>, window_params = [{transform_indices = @transform_0, window_bounds = array<i64: 128, 32>}, {pipeline_mode = #tpu.pipeline_mode<synchronous>, transform_indices = @transform_1, window_bounds = array<i64: 32, 128>}, {pipeline_mode = #tpu.pipeline_mode<synchronous>, transform_indices = @transform_2, window_bounds = array<i64: 1, 128>}, {pipeline_mode = #tpu.pipeline_mode<synchronous>, transform_indices = @transform_3, window_bounds = array<i64: 1, 128>}, {transform_indices = @transform_4, window_bounds = array<i64: 128, 128>}]} {
    %c0 = arith.constant 0 : index
    %c0_0 = arith.constant 0 : index
    %0 = vector.load %arg1[%c0, %c0_0] : memref<128x32xbf16, #tpu.memory_space<vmem>>, vector<128x32xbf16>
    %c0_1 = arith.constant 0 : index
    %c0_2 = arith.constant 0 : index
    %1 = vector.load %arg2[%c0_1, %c0_2] : memref<32x128xbf16, #tpu.memory_space<vmem>>, vector<32x128xbf16>
    %cst = arith.constant dense<0.000000e+00> : vector<128x128xf32>
    %2 = tpu.matmul %0, %1, %cst {dimension_numbers = #tpu.dot_dimension_numbers<[1], [0], [0], [1], [0, 0, 1, 1], [], []>} : vector<128x32xbf16>, vector<32x128xbf16>, vector<128x128xf32> -> vector<128x128xf32>
    %c0_3 = arith.constant 0 : index
    %c0_4 = arith.constant 0 : index
    %3 = vector.load %arg3[%c0_3, %c0_4] : memref<1x128xf32, #tpu.memory_space<vmem>>, vector<1x128xf32>
    %4 = vector.broadcast %3 : vector<1x128xf32> to vector<128x128xf32>
    %5 = arith.mulf %2, %4 : vector<128x128xf32>
    %c0_5 = arith.constant 0 : index
    %c0_6 = arith.constant 0 : index
    %6 = vector.load %arg4[%c0_5, %c0_6] : memref<1x128xf32, #tpu.memory_space<vmem>>, vector<1x128xf32>
    %7 = vector.broadcast %6 : vector<1x128xf32> to vector<128x128xf32>
    %8 = arith.addf %5, %7 : vector<128x128xf32>
    %9 = arith.negf %8 : vector<128x128xf32>
    %10 = math.exp %9 : vector<128x128xf32>
    %cst_7 = arith.constant 1.000000e+00 : f32
    %11 = vector.broadcast %cst_7 : f32 to vector<128x128xf32>
    %12 = arith.addf %11, %10 : vector<128x128xf32>
    %13 = arith.divf %11, %12 : vector<128x128xf32>
    %14 = arith.mulf %8, %13 : vector<128x128xf32>
    %15 = arith.truncf %14 : vector<128x128xf32> to vector<128x128xbf16>
    %c0_8 = arith.constant 0 : index
    %c0_9 = arith.constant 0 : index
    %16 = vector.load %arg5[%c0_8, %c0_9] : memref<128x128xbf16, #tpu.memory_space<vmem>>, vector<128x128xbf16>
    tpu.vector_store %arg5[%c0_8, %c0_9], %15 {strides = array<i32>} : memref<128x128xbf16, #tpu.memory_space<vmem>>, vector<128x128xbf16>,
    return
  }
  func.func @transform_0(%arg0: i32) -> (i32, i32) {
    %c0_i32 = arith.constant 0 : i32
    %c0_i32_0 = arith.constant 0 : i32
    return %arg0, %c0_i32 : i32, i32
  }
  func.func @transform_1(%arg0: i32) -> (i32, i32) {
    %c0_i32 = arith.constant 0 : i32
    %c0_i32_0 = arith.constant 0 : i32
    %c0_i32_1 = arith.constant 0 : i32
    return %c0_i32, %c0_i32_0 : i32, i32
  }
  func.func @transform_2(%arg0: i32) -> (i32, i32) {
    %c0_i32 = arith.constant 0 : i32
    %c0_i32_0 = arith.constant 0 : i32
    %c0_i32_1 = arith.constant 0 : i32
    return %c0_i32, %c0_i32_0 : i32, i32
  }
  func.func @transform_3(%arg0: i32) -> (i32, i32) {
    %c0_i32 = arith.constant 0 : i32
    %c0_i32_0 = arith.constant 0 : i32
    %c0_i32_1 = arith.constant 0 : i32
    return %c0_i32, %c0_i32_0 : i32, i32
  }
  func.func @transform_4(%arg0: i32) -> (i32, i32) {
    %c0_i32 = arith.constant 0 : i32
    %c0_i32_0 = arith.constant 0 : i32
    return %arg0, %c0_i32 : i32, i32
  }
}

module attributes {stable_mosaic.version = 11 : i64} {
  func.func @_dwconv_se_kernel(%arg0: i32, %arg1: memref<1x10x10x128xbf16, #tpu.memory_space<vmem>>, %arg2: memref<3x3x128xf32, #tpu.memory_space<vmem>>, %arg3: memref<1x1x128xf32, #tpu.memory_space<vmem>>, %arg4: memref<1x1x128xf32, #tpu.memory_space<vmem>>, %arg5: memref<128x128xf32, #tpu.memory_space<vmem>>, %arg6: memref<1x128xf32, #tpu.memory_space<vmem>>, %arg7: memref<128x128xf32, #tpu.memory_space<vmem>>, %arg8: memref<1x128xf32, #tpu.memory_space<vmem>>, %arg9: memref<1x8x8x128xbf16, #tpu.memory_space<vmem>>, %arg10: memref<2x128xf32, #tpu.memory_space<vmem>>) attributes {dimension_semantics = [#tpu.dimension_semantics<arbitrary>], iteration_bounds = array<i64: 2>, scalar_prefetch = 0 : i64, scratch_operands = 0 : i64, tpu.core_type = #tpu.core_type<tc>, window_params = [{transform_indices = @transform_0, window_bounds = array<i64: 1, 10, 10, 128>}, {pipeline_mode = #tpu.pipeline_mode<synchronous>, transform_indices = @transform_1, window_bounds = array<i64: 3, 3, 128>}, {pipeline_mode = #tpu.pipeline_mode<synchronous>, transform_indices = @transform_2, window_bounds = array<i64: 1, 1, 128>}, {pipeline_mode = #tpu.pipeline_mode<synchronous>, transform_indices = @transform_3, window_bounds = array<i64: 1, 1, 128>}, {pipeline_mode = #tpu.pipeline_mode<synchronous>, transform_indices = @transform_4, window_bounds = array<i64: 128, 128>}, {pipeline_mode = #tpu.pipeline_mode<synchronous>, transform_indices = @transform_5, window_bounds = array<i64: 1, 128>}, {pipeline_mode = #tpu.pipeline_mode<synchronous>, transform_indices = @transform_6, window_bounds = array<i64: 128, 128>}, {pipeline_mode = #tpu.pipeline_mode<synchronous>, transform_indices = @transform_7, window_bounds = array<i64: 1, 128>}, {transform_indices = @transform_8, window_bounds = array<i64: 1, 8, 8, 128>}, {pipeline_mode = #tpu.pipeline_mode<synchronous>, transform_indices = @transform_9, window_bounds = array<i64: 2, 128>}]} {
    %c0 = arith.constant 0 : index
    %c0_0 = arith.constant 0 : index
    %c0_1 = arith.constant 0 : index
    %c0_2 = arith.constant 0 : index
    %0 = vector.load %arg1[%c0, %c0_0, %c0_1, %c0_2] : memref<1x10x10x128xbf16, #tpu.memory_space<vmem>>, vector<1x10x10x128xbf16>
    %1 = vector.shape_cast %0 : vector<1x10x10x128xbf16> to vector<10x10x128xbf16>
    %2 = arith.extf %1 : vector<10x10x128xbf16> to vector<10x10x128xf32>
    %cst = arith.constant 0.000000e+00 : f32
    %3 = vector.broadcast %cst : f32 to vector<8x8x128xf32>
    %4 = vector.extract_strided_slice %2 {offsets = [0, 0, 0], sizes = [8, 8, 128], strides = [1, 1, 1]} : vector<10x10x128xf32> to vector<8x8x128xf32>
    %c0_3 = arith.constant 0 : index
    %c0_4 = arith.constant 0 : index
    %c0_5 = arith.constant 0 : index
    %5 = vector.load %arg2[%c0_3, %c0_4, %c0_5] : memref<3x3x128xf32, #tpu.memory_space<vmem>>, vector<1x1x128xf32>
    %6 = vector.shape_cast %5 : vector<1x1x128xf32> to vector<128xf32>
    %7 = vector.shape_cast %6 : vector<128xf32> to vector<1x1x128xf32>
    %8 = vector.broadcast %7 : vector<1x1x128xf32> to vector<8x8x128xf32>
    %9 = arith.mulf %4, %8 : vector<8x8x128xf32>
    %10 = arith.addf %3, %9 : vector<8x8x128xf32>
    %11 = vector.extract_strided_slice %2 {offsets = [0, 1, 0], sizes = [8, 8, 128], strides = [1, 1, 1]} : vector<10x10x128xf32> to vector<8x8x128xf32>
    %c0_6 = arith.constant 0 : index
    %c1 = arith.constant 1 : index
    %c0_7 = arith.constant 0 : index
    %12 = vector.load %arg2[%c0_6, %c1, %c0_7] : memref<3x3x128xf32, #tpu.memory_space<vmem>>, vector<1x1x128xf32>
    %13 = vector.shape_cast %12 : vector<1x1x128xf32> to vector<128xf32>
    %14 = vector.shape_cast %13 : vector<128xf32> to vector<1x1x128xf32>
    %15 = vector.broadcast %14 : vector<1x1x128xf32> to vector<8x8x128xf32>
    %16 = arith.mulf %11, %15 : vector<8x8x128xf32>
    %17 = arith.addf %10, %16 : vector<8x8x128xf32>
    %18 = vector.extract_strided_slice %2 {offsets = [0, 2, 0], sizes = [8, 8, 128], strides = [1, 1, 1]} : vector<10x10x128xf32> to vector<8x8x128xf32>
    %c0_8 = arith.constant 0 : index
    %c2 = arith.constant 2 : index
    %c0_9 = arith.constant 0 : index
    %19 = vector.load %arg2[%c0_8, %c2, %c0_9] : memref<3x3x128xf32, #tpu.memory_space<vmem>>, vector<1x1x128xf32>
    %20 = vector.shape_cast %19 : vector<1x1x128xf32> to vector<128xf32>
    %21 = vector.shape_cast %20 : vector<128xf32> to vector<1x1x128xf32>
    %22 = vector.broadcast %21 : vector<1x1x128xf32> to vector<8x8x128xf32>
    %23 = arith.mulf %18, %22 : vector<8x8x128xf32>
    %24 = arith.addf %17, %23 : vector<8x8x128xf32>
    %25 = vector.extract_strided_slice %2 {offsets = [1, 0, 0], sizes = [8, 8, 128], strides = [1, 1, 1]} : vector<10x10x128xf32> to vector<8x8x128xf32>
    %c1_10 = arith.constant 1 : index
    %c0_11 = arith.constant 0 : index
    %c0_12 = arith.constant 0 : index
    %26 = vector.load %arg2[%c1_10, %c0_11, %c0_12] : memref<3x3x128xf32, #tpu.memory_space<vmem>>, vector<1x1x128xf32>
    %27 = vector.shape_cast %26 : vector<1x1x128xf32> to vector<128xf32>
    %28 = vector.shape_cast %27 : vector<128xf32> to vector<1x1x128xf32>
    %29 = vector.broadcast %28 : vector<1x1x128xf32> to vector<8x8x128xf32>
    %30 = arith.mulf %25, %29 : vector<8x8x128xf32>
    %31 = arith.addf %24, %30 : vector<8x8x128xf32>
    %32 = vector.extract_strided_slice %2 {offsets = [1, 1, 0], sizes = [8, 8, 128], strides = [1, 1, 1]} : vector<10x10x128xf32> to vector<8x8x128xf32>
    %c1_13 = arith.constant 1 : index
    %c1_14 = arith.constant 1 : index
    %c0_15 = arith.constant 0 : index
    %33 = vector.load %arg2[%c1_13, %c1_14, %c0_15] : memref<3x3x128xf32, #tpu.memory_space<vmem>>, vector<1x1x128xf32>
    %34 = vector.shape_cast %33 : vector<1x1x128xf32> to vector<128xf32>
    %35 = vector.shape_cast %34 : vector<128xf32> to vector<1x1x128xf32>
    %36 = vector.broadcast %35 : vector<1x1x128xf32> to vector<8x8x128xf32>
    %37 = arith.mulf %32, %36 : vector<8x8x128xf32>
    %38 = arith.addf %31, %37 : vector<8x8x128xf32>
    %39 = vector.extract_strided_slice %2 {offsets = [1, 2, 0], sizes = [8, 8, 128], strides = [1, 1, 1]} : vector<10x10x128xf32> to vector<8x8x128xf32>
    %c1_16 = arith.constant 1 : index
    %c2_17 = arith.constant 2 : index
    %c0_18 = arith.constant 0 : index
    %40 = vector.load %arg2[%c1_16, %c2_17, %c0_18] : memref<3x3x128xf32, #tpu.memory_space<vmem>>, vector<1x1x128xf32>
    %41 = vector.shape_cast %40 : vector<1x1x128xf32> to vector<128xf32>
    %42 = vector.shape_cast %41 : vector<128xf32> to vector<1x1x128xf32>
    %43 = vector.broadcast %42 : vector<1x1x128xf32> to vector<8x8x128xf32>
    %44 = arith.mulf %39, %43 : vector<8x8x128xf32>
    %45 = arith.addf %38, %44 : vector<8x8x128xf32>
    %46 = vector.extract_strided_slice %2 {offsets = [2, 0, 0], sizes = [8, 8, 128], strides = [1, 1, 1]} : vector<10x10x128xf32> to vector<8x8x128xf32>
    %c2_19 = arith.constant 2 : index
    %c0_20 = arith.constant 0 : index
    %c0_21 = arith.constant 0 : index
    %47 = vector.load %arg2[%c2_19, %c0_20, %c0_21] : memref<3x3x128xf32, #tpu.memory_space<vmem>>, vector<1x1x128xf32>
    %48 = vector.shape_cast %47 : vector<1x1x128xf32> to vector<128xf32>
    %49 = vector.shape_cast %48 : vector<128xf32> to vector<1x1x128xf32>
    %50 = vector.broadcast %49 : vector<1x1x128xf32> to vector<8x8x128xf32>
    %51 = arith.mulf %46, %50 : vector<8x8x128xf32>
    %52 = arith.addf %45, %51 : vector<8x8x128xf32>
    %53 = vector.extract_strided_slice %2 {offsets = [2, 1, 0], sizes = [8, 8, 128], strides = [1, 1, 1]} : vector<10x10x128xf32> to vector<8x8x128xf32>
    %c2_22 = arith.constant 2 : index
    %c1_23 = arith.constant 1 : index
    %c0_24 = arith.constant 0 : index
    %54 = vector.load %arg2[%c2_22, %c1_23, %c0_24] : memref<3x3x128xf32, #tpu.memory_space<vmem>>, vector<1x1x128xf32>
    %55 = vector.shape_cast %54 : vector<1x1x128xf32> to vector<128xf32>
    %56 = vector.shape_cast %55 : vector<128xf32> to vector<1x1x128xf32>
    %57 = vector.broadcast %56 : vector<1x1x128xf32> to vector<8x8x128xf32>
    %58 = arith.mulf %53, %57 : vector<8x8x128xf32>
    %59 = arith.addf %52, %58 : vector<8x8x128xf32>
    %60 = vector.extract_strided_slice %2 {offsets = [2, 2, 0], sizes = [8, 8, 128], strides = [1, 1, 1]} : vector<10x10x128xf32> to vector<8x8x128xf32>
    %c2_25 = arith.constant 2 : index
    %c2_26 = arith.constant 2 : index
    %c0_27 = arith.constant 0 : index
    %61 = vector.load %arg2[%c2_25, %c2_26, %c0_27] : memref<3x3x128xf32, #tpu.memory_space<vmem>>, vector<1x1x128xf32>
    %62 = vector.shape_cast %61 : vector<1x1x128xf32> to vector<128xf32>
    %63 = vector.shape_cast %62 : vector<128xf32> to vector<1x1x128xf32>
    %64 = vector.broadcast %63 : vector<1x1x128xf32> to vector<8x8x128xf32>
    %65 = arith.mulf %60, %64 : vector<8x8x128xf32>
    %66 = arith.addf %59, %65 : vector<8x8x128xf32>
    %c0_28 = arith.constant 0 : index
    %c0_29 = arith.constant 0 : index
    %c0_30 = arith.constant 0 : index
    %67 = vector.load %arg3[%c0_28, %c0_29, %c0_30] : memref<1x1x128xf32, #tpu.memory_space<vmem>>, vector<1x1x128xf32>
    %68 = vector.broadcast %67 : vector<1x1x128xf32> to vector<8x8x128xf32>
    %69 = arith.mulf %66, %68 : vector<8x8x128xf32>
    %c0_31 = arith.constant 0 : index
    %c0_32 = arith.constant 0 : index
    %c0_33 = arith.constant 0 : index
    %70 = vector.load %arg4[%c0_31, %c0_32, %c0_33] : memref<1x1x128xf32, #tpu.memory_space<vmem>>, vector<1x1x128xf32>
    %71 = vector.broadcast %70 : vector<1x1x128xf32> to vector<8x8x128xf32>
    %72 = arith.addf %69, %71 : vector<8x8x128xf32>
    %73 = arith.negf %72 : vector<8x8x128xf32>
    %74 = math.exp %73 : vector<8x8x128xf32>
    %cst_34 = arith.constant 1.000000e+00 : f32
    %75 = vector.broadcast %cst_34 : f32 to vector<8x8x128xf32>
    %76 = arith.addf %75, %74 : vector<8x8x128xf32>
    %77 = arith.divf %75, %76 : vector<8x8x128xf32>
    %78 = arith.mulf %72, %77 : vector<8x8x128xf32>
    %79 = arith.truncf %78 : vector<8x8x128xf32> to vector<8x8x128xbf16>
    %c0_35 = arith.constant 0 : index
    %c0_36 = arith.constant 0 : index
    %c0_37 = arith.constant 0 : index
    %c0_38 = arith.constant 0 : index
    %80 = vector.load %arg9[%c0_35, %c0_36, %c0_37, %c0_38] : memref<1x8x8x128xbf16, #tpu.memory_space<vmem>>, vector<1x8x8x128xbf16>
    %81 = vector.shape_cast %80 : vector<1x8x8x128xbf16> to vector<8x8x128xbf16>
    %82 = vector.shape_cast %79 : vector<8x8x128xbf16> to vector<1x8x8x128xbf16>
    tpu.vector_store %arg9[%c0_35, %c0_36, %c0_37, %c0_38], %82 {strides = array<i32>} : memref<1x8x8x128xbf16, #tpu.memory_space<vmem>>, vector<1x8x8x128xbf16>,
    %cst_39 = arith.constant dense<0.000000e+00> : vector<128xf32>
    %83 = vector.multi_reduction <add>, %78, %cst_39 [0, 1] : vector<8x8x128xf32> to vector<128xf32>
    %84 = vector.shape_cast %83 : vector<128xf32> to vector<1x1x128xf32>
    %85 = vector.shape_cast %84 : vector<1x1x128xf32> to vector<1x128xf32>
    %cst_40 = arith.constant 1.562500e-02 : f32
    %86 = vector.broadcast %cst_40 : f32 to vector<1x128xf32>
    %87 = arith.mulf %85, %86 : vector<1x128xf32>
    %c0_41 = arith.constant 0 : index
    %c0_42 = arith.constant 0 : index
    %88 = vector.load %arg5[%c0_41, %c0_42] : memref<128x128xf32, #tpu.memory_space<vmem>>, vector<128x128xf32>
    %cst_43 = arith.constant dense<0.000000e+00> : vector<1x128xf32>
    %89 = tpu.matmul %87, %88, %cst_43 {dimension_numbers = #tpu.dot_dimension_numbers<[1], [0], [0], [1], [0, 0, 1, 1], [], []>} : vector<1x128xf32>, vector<128x128xf32>, vector<1x128xf32> -> vector<1x128xf32>
    %c0_44 = arith.constant 0 : index
    %c0_45 = arith.constant 0 : index
    %90 = vector.load %arg6[%c0_44, %c0_45] : memref<1x128xf32, #tpu.memory_space<vmem>>, vector<1x128xf32>
    %91 = arith.addf %89, %90 : vector<1x128xf32>
    %92 = arith.negf %91 : vector<1x128xf32>
    %93 = math.exp %92 : vector<1x128xf32>
    %cst_46 = arith.constant 1.000000e+00 : f32
    %94 = vector.broadcast %cst_46 : f32 to vector<1x128xf32>
    %95 = arith.addf %94, %93 : vector<1x128xf32>
    %96 = arith.divf %94, %95 : vector<1x128xf32>
    %97 = arith.mulf %91, %96 : vector<1x128xf32>
    %c0_47 = arith.constant 0 : index
    %c0_48 = arith.constant 0 : index
    %98 = vector.load %arg7[%c0_47, %c0_48] : memref<128x128xf32, #tpu.memory_space<vmem>>, vector<128x128xf32>
    %cst_49 = arith.constant dense<0.000000e+00> : vector<1x128xf32>
    %99 = tpu.matmul %97, %98, %cst_49 {dimension_numbers = #tpu.dot_dimension_numbers<[1], [0], [0], [1], [0, 0, 1, 1], [], []>} : vector<1x128xf32>, vector<128x128xf32>, vector<1x128xf32> -> vector<1x128xf32>
    %c0_50 = arith.constant 0 : index
    %c0_51 = arith.constant 0 : index
    %100 = vector.load %arg8[%c0_50, %c0_51] : memref<1x128xf32, #tpu.memory_space<vmem>>, vector<1x128xf32>
    %101 = arith.addf %99, %100 : vector<1x128xf32>
    %102 = arith.negf %101 : vector<1x128xf32>
    %103 = math.exp %102 : vector<1x128xf32>
    %cst_52 = arith.constant 1.000000e+00 : f32
    %104 = vector.broadcast %cst_52 : f32 to vector<1x128xf32>
    %105 = arith.addf %104, %103 : vector<1x128xf32>
    %106 = arith.divf %104, %105 : vector<1x128xf32>
    %107 = arith.index_cast %arg0 : i32 to index
    %c0_53 = arith.constant 0 : index
    %108 = vector.load %arg10[%107, %c0_53] : memref<2x128xf32, #tpu.memory_space<vmem>>, vector<1x128xf32>
    tpu.vector_store %arg10[%107, %c0_53], %106 {strides = array<i32>} : memref<2x128xf32, #tpu.memory_space<vmem>>, vector<1x128xf32>,
    return
  }
  func.func @transform_0(%arg0: i32) -> (i32, i32, i32, i32) {
    %c0_i32 = arith.constant 0 : i32
    %c0_i32_0 = arith.constant 0 : i32
    %c0_i32_1 = arith.constant 0 : i32
    %c0_i32_2 = arith.constant 0 : i32
    return %arg0, %c0_i32, %c0_i32_0, %c0_i32_1 : i32, i32, i32, i32
  }
  func.func @transform_1(%arg0: i32) -> (i32, i32, i32) {
    %c0_i32 = arith.constant 0 : i32
    %c0_i32_0 = arith.constant 0 : i32
    %c0_i32_1 = arith.constant 0 : i32
    %c0_i32_2 = arith.constant 0 : i32
    return %c0_i32, %c0_i32_0, %c0_i32_1 : i32, i32, i32
  }
  func.func @transform_2(%arg0: i32) -> (i32, i32, i32) {
    %c0_i32 = arith.constant 0 : i32
    %c0_i32_0 = arith.constant 0 : i32
    %c0_i32_1 = arith.constant 0 : i32
    %c0_i32_2 = arith.constant 0 : i32
    return %c0_i32, %c0_i32_0, %c0_i32_1 : i32, i32, i32
  }
  func.func @transform_3(%arg0: i32) -> (i32, i32, i32) {
    %c0_i32 = arith.constant 0 : i32
    %c0_i32_0 = arith.constant 0 : i32
    %c0_i32_1 = arith.constant 0 : i32
    %c0_i32_2 = arith.constant 0 : i32
    return %c0_i32, %c0_i32_0, %c0_i32_1 : i32, i32, i32
  }
  func.func @transform_4(%arg0: i32) -> (i32, i32) {
    %c0_i32 = arith.constant 0 : i32
    %c0_i32_0 = arith.constant 0 : i32
    %c0_i32_1 = arith.constant 0 : i32
    return %c0_i32, %c0_i32_0 : i32, i32
  }
  func.func @transform_5(%arg0: i32) -> (i32, i32) {
    %c0_i32 = arith.constant 0 : i32
    %c0_i32_0 = arith.constant 0 : i32
    %c0_i32_1 = arith.constant 0 : i32
    return %c0_i32, %c0_i32_0 : i32, i32
  }
  func.func @transform_6(%arg0: i32) -> (i32, i32) {
    %c0_i32 = arith.constant 0 : i32
    %c0_i32_0 = arith.constant 0 : i32
    %c0_i32_1 = arith.constant 0 : i32
    return %c0_i32, %c0_i32_0 : i32, i32
  }
  func.func @transform_7(%arg0: i32) -> (i32, i32) {
    %c0_i32 = arith.constant 0 : i32
    %c0_i32_0 = arith.constant 0 : i32
    %c0_i32_1 = arith.constant 0 : i32
    return %c0_i32, %c0_i32_0 : i32, i32
  }
  func.func @transform_8(%arg0: i32) -> (i32, i32, i32, i32) {
    %c0_i32 = arith.constant 0 : i32
    %c0_i32_0 = arith.constant 0 : i32
    %c0_i32_1 = arith.constant 0 : i32
    %c0_i32_2 = arith.constant 0 : i32
    return %arg0, %c0_i32, %c0_i32_0, %c0_i32_1 : i32, i32, i32, i32
  }
  func.func @transform_9(%arg0: i32) -> (i32, i32) {
    %c0_i32 = arith.constant 0 : i32
    %c0_i32_0 = arith.constant 0 : i32
    %c0_i32_1 = arith.constant 0 : i32
    return %c0_i32, %c0_i32_0 : i32, i32
  }
}

module attributes {stable_mosaic.version = 11 : i64} {
  func.func @_project_kernel(%arg0: i32, %arg1: i32, %arg2: memref<1x64x128xbf16, #tpu.memory_space<vmem>>, %arg3: memref<2x128xf32, #tpu.memory_space<vmem>>, %arg4: memref<128x128xbf16, #tpu.memory_space<vmem>>, %arg5: memref<1x128xf32, #tpu.memory_space<vmem>>, %arg6: memref<1x128xf32, #tpu.memory_space<vmem>>, %arg7: memref<1x64x128xbf16, #tpu.memory_space<vmem>>, %arg8: memref<1x64x128xbf16, #tpu.memory_space<vmem>>) attributes {dimension_semantics = [#tpu.dimension_semantics<parallel>, #tpu.dimension_semantics<parallel>], iteration_bounds = array<i64: 2, 1>, scalar_prefetch = 0 : i64, scratch_operands = 0 : i64, tpu.core_type = #tpu.core_type<tc>, window_params = [{transform_indices = @transform_0, window_bounds = array<i64: 1, 64, 128>}, {pipeline_mode = #tpu.pipeline_mode<synchronous>, transform_indices = @transform_1, window_bounds = array<i64: 2, 128>}, {pipeline_mode = #tpu.pipeline_mode<synchronous>, transform_indices = @transform_2, window_bounds = array<i64: 128, 128>}, {pipeline_mode = #tpu.pipeline_mode<synchronous>, transform_indices = @transform_3, window_bounds = array<i64: 1, 128>}, {pipeline_mode = #tpu.pipeline_mode<synchronous>, transform_indices = @transform_4, window_bounds = array<i64: 1, 128>}, {transform_indices = @transform_5, window_bounds = array<i64: 1, 64, 128>}, {transform_indices = @transform_6, window_bounds = array<i64: 1, 64, 128>}]} {
    %0 = arith.index_cast %arg0 : i32 to index
    %c0 = arith.constant 0 : index
    %1 = vector.load %arg3[%0, %c0] : memref<2x128xf32, #tpu.memory_space<vmem>>, vector<1x128xf32>
    %c0_0 = arith.constant 0 : index
    %c0_1 = arith.constant 0 : index
    %c0_2 = arith.constant 0 : index
    %2 = vector.load %arg2[%c0_0, %c0_1, %c0_2] : memref<1x64x128xbf16, #tpu.memory_space<vmem>>, vector<1x64x128xbf16>
    %3 = vector.shape_cast %2 : vector<1x64x128xbf16> to vector<64x128xbf16>
    %4 = arith.extf %3 : vector<64x128xbf16> to vector<64x128xf32>
    %5 = vector.broadcast %1 : vector<1x128xf32> to vector<64x128xf32>
    %6 = arith.mulf %4, %5 : vector<64x128xf32>
    %7 = arith.truncf %6 : vector<64x128xf32> to vector<64x128xbf16>
    %c0_3 = arith.constant 0 : index
    %c0_4 = arith.constant 0 : index
    %8 = vector.load %arg4[%c0_3, %c0_4] : memref<128x128xbf16, #tpu.memory_space<vmem>>, vector<128x128xbf16>
    %cst = arith.constant dense<0.000000e+00> : vector<64x128xf32>
    %9 = tpu.matmul %7, %8, %cst {dimension_numbers = #tpu.dot_dimension_numbers<[1], [0], [0], [1], [0, 0, 1, 1], [], []>} : vector<64x128xbf16>, vector<128x128xbf16>, vector<64x128xf32> -> vector<64x128xf32>
    %c0_5 = arith.constant 0 : index
    %c0_6 = arith.constant 0 : index
    %10 = vector.load %arg5[%c0_5, %c0_6] : memref<1x128xf32, #tpu.memory_space<vmem>>, vector<1x128xf32>
    %11 = vector.broadcast %10 : vector<1x128xf32> to vector<64x128xf32>
    %12 = arith.mulf %9, %11 : vector<64x128xf32>
    %c0_7 = arith.constant 0 : index
    %c0_8 = arith.constant 0 : index
    %13 = vector.load %arg6[%c0_7, %c0_8] : memref<1x128xf32, #tpu.memory_space<vmem>>, vector<1x128xf32>
    %14 = vector.broadcast %13 : vector<1x128xf32> to vector<64x128xf32>
    %15 = arith.addf %12, %14 : vector<64x128xf32>
    %c0_9 = arith.constant 0 : index
    %c0_10 = arith.constant 0 : index
    %c0_11 = arith.constant 0 : index
    %16 = vector.load %arg7[%c0_9, %c0_10, %c0_11] : memref<1x64x128xbf16, #tpu.memory_space<vmem>>, vector<1x64x128xbf16>
    %17 = vector.shape_cast %16 : vector<1x64x128xbf16> to vector<64x128xbf16>
    %18 = arith.extf %17 : vector<64x128xbf16> to vector<64x128xf32>
    %19 = arith.addf %15, %18 : vector<64x128xf32>
    %20 = arith.truncf %19 : vector<64x128xf32> to vector<64x128xbf16>
    %c0_12 = arith.constant 0 : index
    %c0_13 = arith.constant 0 : index
    %c0_14 = arith.constant 0 : index
    %21 = vector.load %arg8[%c0_12, %c0_13, %c0_14] : memref<1x64x128xbf16, #tpu.memory_space<vmem>>, vector<1x64x128xbf16>
    %22 = vector.shape_cast %21 : vector<1x64x128xbf16> to vector<64x128xbf16>
    %23 = vector.shape_cast %20 : vector<64x128xbf16> to vector<1x64x128xbf16>
    tpu.vector_store %arg8[%c0_12, %c0_13, %c0_14], %23 {strides = array<i32>} : memref<1x64x128xbf16, #tpu.memory_space<vmem>>, vector<1x64x128xbf16>,
    return
  }
  func.func @transform_0(%arg0: i32, %arg1: i32) -> (i32, i32, i32) {
    %c0_i32 = arith.constant 0 : i32
    %c0_i32_0 = arith.constant 0 : i32
    return %arg0, %arg1, %c0_i32 : i32, i32, i32
  }
  func.func @transform_1(%arg0: i32, %arg1: i32) -> (i32, i32) {
    %c0_i32 = arith.constant 0 : i32
    %c0_i32_0 = arith.constant 0 : i32
    %c0_i32_1 = arith.constant 0 : i32
    return %c0_i32, %c0_i32_0 : i32, i32
  }
  func.func @transform_2(%arg0: i32, %arg1: i32) -> (i32, i32) {
    %c0_i32 = arith.constant 0 : i32
    %c0_i32_0 = arith.constant 0 : i32
    %c0_i32_1 = arith.constant 0 : i32
    return %c0_i32, %c0_i32_0 : i32, i32
  }
  func.func @transform_3(%arg0: i32, %arg1: i32) -> (i32, i32) {
    %c0_i32 = arith.constant 0 : i32
    %c0_i32_0 = arith.constant 0 : i32
    %c0_i32_1 = arith.constant 0 : i32
    return %c0_i32, %c0_i32_0 : i32, i32
  }
  func.func @transform_4(%arg0: i32, %arg1: i32) -> (i32, i32) {
    %c0_i32 = arith.constant 0 : i32
    %c0_i32_0 = arith.constant 0 : i32
    %c0_i32_1 = arith.constant 0 : i32
    return %c0_i32, %c0_i32_0 : i32, i32
  }
  func.func @transform_5(%arg0: i32, %arg1: i32) -> (i32, i32, i32) {
    %c0_i32 = arith.constant 0 : i32
    %c0_i32_0 = arith.constant 0 : i32
    return %arg0, %arg1, %c0_i32 : i32, i32, i32
  }
  func.func @transform_6(%arg0: i32, %arg1: i32) -> (i32, i32, i32) {
    %c0_i32 = arith.constant 0 : i32
    %c0_i32_0 = arith.constant 0 : i32
    return %arg0, %arg1, %c0_i32 : i32, i32, i32
  }
}

module attributes {stable_mosaic.version = 11 : i64} {
  func.func @_head_pool_fc_kernel(%arg0: i32, %arg1: i32, %arg2: memref<1x64x128xbf16, #tpu.memory_space<vmem>>, %arg3: memref<128x128xbf16, #tpu.memory_space<vmem>>, %arg4: memref<1x128xf32, #tpu.memory_space<vmem>>, %arg5: memref<1x128xf32, #tpu.memory_space<vmem>>, %arg6: memref<128x128xf32, #tpu.memory_space<vmem>>, %arg7: memref<1x128xf32, #tpu.memory_space<vmem>>, %arg8: memref<2x128xf32, #tpu.memory_space<vmem>>, %arg9: memref<1x128xf32, #tpu.memory_space<vmem>>) attributes {dimension_semantics = [#tpu.dimension_semantics<arbitrary>, #tpu.dimension_semantics<arbitrary>], iteration_bounds = array<i64: 2, 1>, scalar_prefetch = 0 : i64, scratch_operands = 1 : i64, tpu.core_type = #tpu.core_type<tc>, window_params = [{transform_indices = @transform_0, window_bounds = array<i64: 1, 64, 128>}, {pipeline_mode = #tpu.pipeline_mode<synchronous>, transform_indices = @transform_1, window_bounds = array<i64: 128, 128>}, {pipeline_mode = #tpu.pipeline_mode<synchronous>, transform_indices = @transform_2, window_bounds = array<i64: 1, 128>}, {pipeline_mode = #tpu.pipeline_mode<synchronous>, transform_indices = @transform_3, window_bounds = array<i64: 1, 128>}, {pipeline_mode = #tpu.pipeline_mode<synchronous>, transform_indices = @transform_4, window_bounds = array<i64: 128, 128>}, {pipeline_mode = #tpu.pipeline_mode<synchronous>, transform_indices = @transform_5, window_bounds = array<i64: 1, 128>}, {pipeline_mode = #tpu.pipeline_mode<synchronous>, transform_indices = @transform_6, window_bounds = array<i64: 2, 128>}]} {
    %c0_i32 = arith.constant 0 : i32
    %0 = arith.cmpi eq, %arg1, %c0_i32 : i32
    %1 = arith.extui %0 : i1 to i32
    %c0_i32_0 = arith.constant 0 : i32
    %2 = arith.cmpi ne, %1, %c0_i32_0 : i32
    scf.if %2 {
      %cst_17 = arith.constant 0.000000e+00 : f32
      %27 = vector.broadcast %cst_17 : f32 to vector<1x128xf32>
      %c0_18 = arith.constant 0 : index
      %c0_19 = arith.constant 0 : index
      %28 = vector.load %arg9[%c0_18, %c0_19] : memref<1x128xf32, #tpu.memory_space<vmem>>, vector<1x128xf32>
      tpu.vector_store %arg9[%c0_18, %c0_19], %27 {strides = array<i32>} : memref<1x128xf32, #tpu.memory_space<vmem>>, vector<1x128xf32>,
    } else {
    }
    %c0 = arith.constant 0 : index
    %c0_1 = arith.constant 0 : index
    %c0_2 = arith.constant 0 : index
    %3 = vector.load %arg2[%c0, %c0_1, %c0_2] : memref<1x64x128xbf16, #tpu.memory_space<vmem>>, vector<1x64x128xbf16>
    %4 = vector.shape_cast %3 : vector<1x64x128xbf16> to vector<64x128xbf16>
    %c0_3 = arith.constant 0 : index
    %c0_4 = arith.constant 0 : index
    %5 = vector.load %arg3[%c0_3, %c0_4] : memref<128x128xbf16, #tpu.memory_space<vmem>>, vector<128x128xbf16>
    %cst = arith.constant dense<0.000000e+00> : vector<64x128xf32>
    %6 = tpu.matmul %4, %5, %cst {dimension_numbers = #tpu.dot_dimension_numbers<[1], [0], [0], [1], [0, 0, 1, 1], [], []>} : vector<64x128xbf16>, vector<128x128xbf16>, vector<64x128xf32> -> vector<64x128xf32>
    %c0_5 = arith.constant 0 : index
    %c0_6 = arith.constant 0 : index
    %7 = vector.load %arg4[%c0_5, %c0_6] : memref<1x128xf32, #tpu.memory_space<vmem>>, vector<1x128xf32>
    %8 = vector.broadcast %7 : vector<1x128xf32> to vector<64x128xf32>
    %9 = arith.mulf %6, %8 : vector<64x128xf32>
    %c0_7 = arith.constant 0 : index
    %c0_8 = arith.constant 0 : index
    %10 = vector.load %arg5[%c0_7, %c0_8] : memref<1x128xf32, #tpu.memory_space<vmem>>, vector<1x128xf32>
    %11 = vector.broadcast %10 : vector<1x128xf32> to vector<64x128xf32>
    %12 = arith.addf %9, %11 : vector<64x128xf32>
    %13 = arith.negf %12 : vector<64x128xf32>
    %14 = math.exp %13 : vector<64x128xf32>
    %cst_9 = arith.constant 1.000000e+00 : f32
    %15 = vector.broadcast %cst_9 : f32 to vector<64x128xf32>
    %16 = arith.addf %15, %14 : vector<64x128xf32>
    %17 = arith.divf %15, %16 : vector<64x128xf32>
    %18 = arith.mulf %12, %17 : vector<64x128xf32>
    %c0_10 = arith.constant 0 : index
    %c0_11 = arith.constant 0 : index
    %19 = vector.load %arg9[%c0_10, %c0_11] : memref<1x128xf32, #tpu.memory_space<vmem>>, vector<1x128xf32>
    %cst_12 = arith.constant dense<0.000000e+00> : vector<128xf32>
    %20 = vector.multi_reduction <add>, %18, %cst_12 [0] : vector<64x128xf32> to vector<128xf32>
    %21 = vector.shape_cast %20 : vector<128xf32> to vector<1x128xf32>
    %22 = arith.addf %19, %21 : vector<1x128xf32>
    %c0_13 = arith.constant 0 : index
    %c0_14 = arith.constant 0 : index
    %23 = vector.load %arg9[%c0_13, %c0_14] : memref<1x128xf32, #tpu.memory_space<vmem>>, vector<1x128xf32>
    tpu.vector_store %arg9[%c0_13, %c0_14], %22 {strides = array<i32>} : memref<1x128xf32, #tpu.memory_space<vmem>>, vector<1x128xf32>,
    %c0_i32_15 = arith.constant 0 : i32
    %24 = arith.cmpi eq, %arg1, %c0_i32_15 : i32
    %25 = arith.extui %24 : i1 to i32
    %c0_i32_16 = arith.constant 0 : i32
    %26 = arith.cmpi ne, %25, %c0_i32_16 : i32
    scf.if %26 {
      %c0_17 = arith.constant 0 : index
      %c0_18 = arith.constant 0 : index
      %27 = vector.load %arg9[%c0_17, %c0_18] : memref<1x128xf32, #tpu.memory_space<vmem>>, vector<1x128xf32>
      %cst_19 = arith.constant 1.562500e-02 : f32
      %28 = vector.broadcast %cst_19 : f32 to vector<1x128xf32>
      %29 = arith.mulf %27, %28 : vector<1x128xf32>
      %c0_20 = arith.constant 0 : index
      %c0_21 = arith.constant 0 : index
      %30 = vector.load %arg6[%c0_20, %c0_21] : memref<128x128xf32, #tpu.memory_space<vmem>>, vector<128x128xf32>
      %cst_22 = arith.constant dense<0.000000e+00> : vector<1x128xf32>
      %31 = tpu.matmul %29, %30, %cst_22 {dimension_numbers = #tpu.dot_dimension_numbers<[1], [0], [0], [1], [0, 0, 1, 1], [], []>} : vector<1x128xf32>, vector<128x128xf32>, vector<1x128xf32> -> vector<1x128xf32>
      %c0_23 = arith.constant 0 : index
      %c0_24 = arith.constant 0 : index
      %32 = vector.load %arg7[%c0_23, %c0_24] : memref<1x128xf32, #tpu.memory_space<vmem>>, vector<1x128xf32>
      %33 = arith.addf %31, %32 : vector<1x128xf32>
      %34 = arith.index_cast %arg0 : i32 to index
      %c0_25 = arith.constant 0 : index
      %35 = vector.load %arg8[%34, %c0_25] : memref<2x128xf32, #tpu.memory_space<vmem>>, vector<1x128xf32>
      tpu.vector_store %arg8[%34, %c0_25], %33 {strides = array<i32>} : memref<2x128xf32, #tpu.memory_space<vmem>>, vector<1x128xf32>,
    } else {
    }
    return
  }
  func.func @transform_0(%arg0: i32, %arg1: i32) -> (i32, i32, i32) {
    %c0_i32 = arith.constant 0 : i32
    %c0_i32_0 = arith.constant 0 : i32
    return %arg0, %arg1, %c0_i32 : i32, i32, i32
  }
  func.func @transform_1(%arg0: i32, %arg1: i32) -> (i32, i32) {
    %c0_i32 = arith.constant 0 : i32
    %c0_i32_0 = arith.constant 0 : i32
    %c0_i32_1 = arith.constant 0 : i32
    return %c0_i32, %c0_i32_0 : i32, i32
  }
  func.func @transform_2(%arg0: i32, %arg1: i32) -> (i32, i32) {
    %c0_i32 = arith.constant 0 : i32
    %c0_i32_0 = arith.constant 0 : i32
    %c0_i32_1 = arith.constant 0 : i32
    return %c0_i32, %c0_i32_0 : i32, i32
  }
  func.func @transform_3(%arg0: i32, %arg1: i32) -> (i32, i32) {
    %c0_i32 = arith.constant 0 : i32
    %c0_i32_0 = arith.constant 0 : i32
    %c0_i32_1 = arith.constant 0 : i32
    return %c0_i32, %c0_i32_0 : i32, i32
  }
  func.func @transform_4(%arg0: i32, %arg1: i32) -> (i32, i32) {
    %c0_i32 = arith.constant 0 : i32
    %c0_i32_0 = arith.constant 0 : i32
    %c0_i32_1 = arith.constant 0 : i32
    return %c0_i32, %c0_i32_0 : i32, i32
  }
  func.func @transform_5(%arg0: i32, %arg1: i32) -> (i32, i32) {
    %c0_i32 = arith.constant 0 : i32
    %c0_i32_0 = arith.constant 0 : i32
    %c0_i32_1 = arith.constant 0 : i32
    return %c0_i32, %c0_i32_0 : i32, i32
  }
  func.func @transform_6(%arg0: i32, %arg1: i32) -> (i32, i32) {
    %c0_i32 = arith.constant 0 : i32
    %c0_i32_0 = arith.constant 0 : i32
    %c0_i32_1 = arith.constant 0 : i32
    return %c0_i32, %c0_i32_0 : i32, i32
  }
}

</mosaic_0001>

<llo_original>
// kernel: effnet_forward.5
$region0: #{effnet_forward.5}
  #allocation0 [shape = 'u32[]', space=smem, size = 0x4, offset = 0x4, fixed_abs, tag = 'smem constant byte address 0x4 - core index']
  #allocation1 [shape = 'u32[144,128]{1,0:T(1,128)}', space=vmem, size = 0x12000, scoped, tag = 'internal scratch']
  %s0 = inlined_call_operand.vmem [shape: bf16[128,32], index: 0, kind: input, shape index: {}]
  %s1 = inlined_call_operand.vmem [shape: bf16[32,128], index: 1, kind: input, shape index: {}]
  %s2 = inlined_call_operand.vmem [shape: f32[1,128], index: 2, kind: input, shape index: {}]
  %s3 = inlined_call_operand.vmem [shape: f32[1,128], index: 3, kind: input, shape index: {}]
  %s4 = inlined_call_operand.vmem [shape: bf16[128,128], index: 4, kind: output, shape index: {}]
  %s5 = sld [smem:[#allocation0]]
  $region26: #{effnet_forward.5} parent=0
    _
  %s7 = ssub.s32 1, %s5
  %s8 = scalar_select 0, %s7, %s5
  // Predicated region
  $region2: #{effnet_forward.5} parent=0 // pred_check
    _
  $region3: #{effnet_forward.5} parent=0 // pred_check_branch
    %10 = sbr.rel (0) target = $region5
  $region4: #{effnet_forward.5} parent=0 // pred_region
    _
  $region5: #{effnet_forward.5} parent=0 // pred_fallthru
    _
  // Predicated region
  $region6: #{effnet_forward.5} parent=0 // pred_check
    _
  $region7: #{effnet_forward.5} parent=0 // pred_check_branch
    %12 = sbr.rel (0) target = $region9
  $region8: #{effnet_forward.5} parent=0 // pred_region
    _
  $region9: #{effnet_forward.5} parent=0 // pred_fallthru
    _
  // Predicated region
  $region10: #{effnet_forward.5} parent=0 // pred_check
    _
  $region11: #{effnet_forward.5} parent=0 // pred_check_branch
    %14 = sbr.rel (0) target = $region13
  $region12: #{effnet_forward.5} parent=0 // pred_region
    _
  $region13: #{effnet_forward.5} parent=0 // pred_fallthru
    _
  // Predicated region
  $region14: #{effnet_forward.5} parent=0 // pred_check
    _
  $region15: #{effnet_forward.5} parent=0 // pred_check_branch
    %16 = sbr.rel (0) target = $region17
  $region16: #{effnet_forward.5} parent=0 // pred_region
    _
  $region17: #{effnet_forward.5} parent=0 // pred_fallthru
    _
  %v18 = vld [vmem:[%s0] sm:$0xf]
  %v19 = vld [vmem:[%s0 + $0x4] sm:$0xf]
  %v20 = vld [vmem:[%s0 + $0x8] sm:$0xf]
  %v21 = vld [vmem:[%s0 + $0xc] sm:$0xf]
  %v22 = vld [vmem:[%s0 + $0x10] sm:$0xf]
  %v23 = vld [vmem:[%s0 + $0x14] sm:$0xf]
  %v24 = vld [vmem:[%s0 + $0x18] sm:$0xf]
  %v25 = vld [vmem:[%s0 + $0x1c] sm:$0xf]
  %v26 = vld [vmem:[%s0 + $0x20] sm:$0xf]
  %v27 = vld [vmem:[%s0 + $0x24] sm:$0xf]
  %v28 = vld [vmem:[%s0 + $0x28] sm:$0xf]
  %v29 = vld [vmem:[%s0 + $0x2c] sm:$0xf]
  %v30 = vld [vmem:[%s0 + $0x30] sm:$0xf]
  %v31 = vld [vmem:[%s0 + $0x34] sm:$0xf]
  %v32 = vld [vmem:[%s0 + $0x38] sm:$0xf]
  %v33 = vld [vmem:[%s0 + $0x3c] sm:$0xf]
  %v34 = vld [vmem:[%s1] sm:$0xf]
  %v35 = vld [vmem:[%s1 + $0x4] sm:$0xf]
  %v36 = vld [vmem:[%s1 + $0x8] sm:$0xf]
  %v37 = vld [vmem:[%s1 + $0xc] sm:$0xf]
  %v54 = vunpack.c.l.b16 %v18
  %v55 = vunpack.c.l.b16 %v19
  %v56 = vunpack.c.l.b16 %v20
  %v57 = vunpack.c.l.b16 %v21
  %v58 = vunpack.c.l.b16 %v22
  %v59 = vunpack.c.l.b16 %v23
  %v60 = vunpack.c.l.b16 %v24
  %v61 = vunpack.c.l.b16 %v25
  %v62 = vunpack.c.l.b16 %v26
  %v63 = vunpack.c.l.b16 %v27
  %v64 = vunpack.c.l.b16 %v28
  %v65 = vunpack.c.l.b16 %v29
  %v66 = vunpack.c.l.b16 %v30
  %v67 = vunpack.c.l.b16 %v31
  %v68 = vunpack.c.l.b16 %v32
  %v69 = vunpack.c.l.b16 %v33
  %v70 = vpack.c.b16 %v55, %v54
  %v71 = vpack.c.b16 %v57, %v56
  %v72 = vpack.c.b16 %v59, %v58
  %v73 = vpack.c.b16 %v61, %v60
  %v74 = vpack.c.b16 %v63, %v62
  %v75 = vpack.c.b16 %v65, %v64
  %v76 = vpack.c.b16 %v67, %v66
  %v77 = vpack.c.b16 %v69, %v68
  %v82 = vunpack.c.l.b16 %v34
  %v83 = vunpack.c.l.b16 %v35
  %v84 = vunpack.c.l.b16 %v36
  %v85 = vunpack.c.l.b16 %v37
  %v86 = vpack.c.b16 %v83, %v82
  %v87 = vpack.c.b16 %v85, %v84
  %vm90 = vcmask 261120
  %v92 = vsel %vm90, %v70, 0
  %v95 = vsel %vm90, %v71, 0
  %v98 = vsel %vm90, %v72, 0
  %v101 = vsel %vm90, %v73, 0
  %v104 = vsel %vm90, %v74, 0
  %v107 = vsel %vm90, %v75, 0
  %v110 = vsel %vm90, %v76, 0
  %v113 = vsel %vm90, %v77, 0
  %115 = vmatprep.subr.bf16.mxu0 0
  %116 = vmatpush1.bf16.msra.mxu0 %v86
  %117 = vmatprep.subr.bf16.mxu0 0
  %118 = vmatpush1.bf16.msra.mxu0 %v87
  %119 = vmatprep.subr.bf16.mxu0 0
  %120 = vmatpush1.bf16.msra.mxu0 0
  %121 = vmatprep.subr.bf16.mxu0 0
  %122 = vmatpush1.bf16.msra.mxu0 0
  %123 = vmatprep.subr.bf16.mxu0 0
  %124 = vmatpush1.bf16.msra.mxu0 0
  %125 = vmatprep.subr.bf16.mxu0 0
  %126 = vmatpush1.bf16.msra.mxu0 0
  %127 = vmatprep.subr.bf16.mxu0 0
  %128 = vmatpush1.bf16.msra.mxu0 0
  %129 = vmatprep.subr.bf16.mxu0 0
  %130 = vmatpush1.bf16.msra.mxu0 0
  %131 = vmatprep.subr.bf16.mxu0 0
  %132 = vmatpush1.bf16.msra.mxu0 0
  %133 = vmatprep.subr.bf16.mxu0 0
  %134 = vmatpush1.bf16.msra.mxu0 0
  %135 = vmatprep.subr.bf16.mxu0 0
  %136 = vmatpush1.bf16.msra.mxu0 0
  %137 = vmatprep.subr.bf16.mxu0 0
  %138 = vmatpush1.bf16.msra.mxu0 0
  %139 = vmatprep.subr.bf16.mxu0 0
  %140 = vmatpush1.bf16.msra.mxu0 0
  %141 = vmatprep.subr.bf16.mxu0 0
  %142 = vmatpush1.bf16.msra.mxu0 0
  %143 = vmatprep.subr.bf16.mxu0 0
  %144 = vmatpush1.bf16.msra.mxu0 0
  %145 = vmatprep.subr.bf16.mxu0 0
  %146 = vmatpush1.bf16.msra.mxu0 0
  %147 = vmatprep.mubr.bf16.mxu0 0
  %148 = vmatmul.mubr.bf16.gmra.mrb[0].mxu0 %v92
  %v149 = vpop.f32.mrb[0].mxu0
  %v150 = vadd.f32 0.0, %v149
  %v151 = vpop.f32.mrb[0].mxu0
  %v152 = vpop.f32.mrb[0].mxu0
  %v153 = vadd.f32 0.0, %v152
  %v154 = vpop.f32.mrb[0].mxu0
  %155 = vmatprep.mubr.bf16.mxu0 0
  %156 = vmatmul.mubr.bf16.gmra.mrb[0].mxu0 %v95
  %v157 = vpop.f32.mrb[0].mxu0
  %v158 = vadd.f32 0.0, %v157
  %v159 = vpop.f32.mrb[0].mxu0
  %v160 = vpop.f32.mrb[0].mxu0
  %v161 = vadd.f32 0.0, %v160
  %v162 = vpop.f32.mrb[0].mxu0
  %163 = vmatprep.mubr.bf16.mxu0 0
  %164 = vmatmul.mubr.bf16.gmra.mrb[0].mxu0 %v98
  %v165 = vpop.f32.mrb[0].mxu0
  %v166 = vadd.f32 0.0, %v165
  %v167 = vpop.f32.mrb[0].mxu0
  %v168 = vpop.f32.mrb[0].mxu0
  %v169 = vadd.f32 0.0, %v168
  %v170 = vpop.f32.mrb[0].mxu0
  %171 = vmatprep.mubr.bf16.mxu0 0
  %172 = vmatmul.mubr.bf16.gmra.mrb[0].mxu0 %v101
  %v173 = vpop.f32.mrb[0].mxu0
  %v174 = vadd.f32 0.0, %v173
  %v175 = vpop.f32.mrb[0].mxu0
  %v176 = vpop.f32.mrb[0].mxu0
  %v177 = vadd.f32 0.0, %v176
  %v178 = vpop.f32.mrb[0].mxu0
  %179 = vmatprep.mubr.bf16.mxu0 0
  %180 = vmatmul.mubr.bf16.gmra.mrb[0].mxu0 %v104
  %v181 = vpop.f32.mrb[0].mxu0
  %v182 = vadd.f32 0.0, %v181
  %v183 = vpop.f32.mrb[0].mxu0
  %v184 = vpop.f32.mrb[0].mxu0
  %v185 = vadd.f32 0.0, %v184
  %v186 = vpop.f32.mrb[0].mxu0
  %187 = vmatprep.mubr.bf16.mxu0 0
  %188 = vmatmul.mubr.bf16.gmra.mrb[0].mxu0 %v107
  %v189 = vpop.f32.mrb[0].mxu0
  %v190 = vadd.f32 0.0, %v189
  %v191 = vpop.f32.mrb[0].mxu0
  %v192 = vpop.f32.mrb[0].mxu0
  %v193 = vadd.f32 0.0, %v192
  %v194 = vpop.f32.mrb[0].mxu0
  %195 = vmatprep.mubr.bf16.mxu0 0
  %196 = vmatmul.mubr.bf16.gmra.mrb[0].mxu0 %v110
  %v197 = vpop.f32.mrb[0].mxu0
  %v198 = vadd.f32 0.0, %v197
  %v199 = vpop.f32.mrb[0].mxu0
  %v200 = vpop.f32.mrb[0].mxu0
  %v201 = vadd.f32 0.0, %v200
  %v202 = vpop.f32.mrb[0].mxu0
  %203 = vmatprep.mubr.bf16.mxu0 0
  %204 = vmatmul.mubr.bf16.gmra.mrb[0].mxu0 %v113
  %v205 = vpop.f32.mrb[0].mxu0
  %v206 = vadd.f32 0.0, %v205
  %v207 = vpop.f32.mrb[0].mxu0
  %v208 = vpop.f32.mrb[0].mxu0
  %v209 = vadd.f32 0.0, %v208
  %v210 = vpop.f32.mrb[0].mxu0
  %211 = vdwg.mxu0
  %v212 = vld [vmem:[%s2] sm:$0x1]
  %v214 = vlaneseq
  %v215 = vshrl.u32 %v214, 7
  %v216 = vsub.s32 0, %v215
  %v217 = vrot.slane %v212, %v216
  %v219 = vmul.f32 %v150, %v217
  %v220 = vmul.f32 %v153, %v217
  %v221 = vmul.f32 %v158, %v217
  %v222 = vmul.f32 %v161, %v217
  %v223 = vmul.f32 %v166, %v217
  %v224 = vmul.f32 %v169, %v217
  %v225 = vmul.f32 %v174, %v217
  %v226 = vmul.f32 %v177, %v217
  %v227 = vmul.f32 %v182, %v217
  %v228 = vmul.f32 %v185, %v217
  %v229 = vmul.f32 %v190, %v217
  %v230 = vmul.f32 %v193, %v217
  %v231 = vmul.f32 %v198, %v217
  %v232 = vmul.f32 %v201, %v217
  %v233 = vmul.f32 %v206, %v217
  %v234 = vmul.f32 %v209, %v217
  %v235 = vld [vmem:[%s3] sm:$0x1]
  %v237 = vlaneseq
  %v238 = vshrl.u32 %v237, 7
  %v239 = vsub.s32 0, %v238
  %v240 = vrot.slane %v235, %v239
  %v242 = vadd.f32 %v219, %v240
  %v243 = vadd.f32 %v220, %v240
  %v244 = vadd.f32 %v221, %v240
  %v245 = vadd.f32 %v222, %v240
  %v246 = vadd.f32 %v223, %v240
  %v247 = vadd.f32 %v224, %v240
  %v248 = vadd.f32 %v225, %v240
  %v249 = vadd.f32 %v226, %v240
  %v250 = vadd.f32 %v227, %v240
  %v251 = vadd.f32 %v228, %v240
  %v252 = vadd.f32 %v229, %v240
  %v253 = vadd.f32 %v230, %v240
  %v254 = vadd.f32 %v231, %v240
  %v255 = vadd.f32 %v232, %v240
  %v256 = vadd.f32 %v233, %v240
  %v257 = vadd.f32 %v234, %v240
  %v258 = vxor.u32 %v242, 2147483648
  %v259 = vxor.u32 %v243, 2147483648
  %v260 = vxor.u32 %v244, 2147483648
  %v261 = vxor.u32 %v245, 2147483648
  %v262 = vxor.u32 %v246, 2147483648
  %v263 = vxor.u32 %v247, 2147483648
  %v264 = vxor.u32 %v248, 2147483648
  %v265 = vxor.u32 %v249, 2147483648
  %v266 = vxor.u32 %v250, 2147483648
  %v267 = vxor.u32 %v251, 2147483648
  %v268 = vxor.u32 %v252, 2147483648
  %v269 = vxor.u32 %v253, 2147483648
  %v270 = vxor.u32 %v254, 2147483648
  %v271 = vxor.u32 %v255, 2147483648
  %v272 = vxor.u32 %v256, 2147483648
  %v273 = vxor.u32 %v257, 2147483648
  %v274 = vmul.f32 %v258, 1.442695
  %v275 = vpow.pop %v274
  %v276 = vmul.f32 %v259, 1.442695
  %v277 = vpow.pop %v276
  %v278 = vmul.f32 %v260, 1.442695
  %v279 = vpow.pop %v278
  %v280 = vmul.f32 %v261, 1.442695
  %v281 = vpow.pop %v280
  %v282 = vmul.f32 %v262, 1.442695
  %v283 = vpow.pop %v282
  %v284 = vmul.f32 %v263, 1.442695
  %v285 = vpow.pop %v284
  %v286 = vmul.f32 %v264, 1.442695
  %v287 = vpow.pop %v286
  %v288 = vmul.f32 %v265, 1.442695
  %v289 = vpow.pop %v288
  %v290 = vmul.f32 %v266, 1.442695
  %v291 = vpow.pop %v290
  %v292 = vmul.f32 %v267, 1.442695
  %v293 = vpow.pop %v292
  %v294 = vmul.f32 %v268, 1.442695
  %v295 = vpow.pop %v294
  %v296 = vmul.f32 %v269, 1.442695
  %v297 = vpow.pop %v296
  %v298 = vmul.f32 %v270, 1.442695
  %v299 = vpow.pop %v298
  %v300 = vmul.f32 %v271, 1.442695
  %v301 = vpow.pop %v300
  %v302 = vmul.f32 %v272, 1.442695
  %v303 = vpow.pop %v302
  %v304 = vmul.f32 %v273, 1.442695
  %v305 = vpow.pop %v304
  %v306 = vadd.f32 %v275, 1.0
  %v307 = vadd.f32 %v277, 1.0
  %v308 = vadd.f32 %v279, 1.0
  %v309 = vadd.f32 %v281, 1.0
  %v310 = vadd.f32 %v283, 1.0
  %v311 = vadd.f32 %v285, 1.0
  %v312 = vadd.f32 %v287, 1.0
  %v313 = vadd.f32 %v289, 1.0
  %v314 = vadd.f32 %v291, 1.0
  %v315 = vadd.f32 %v293, 1.0
  %v316 = vadd.f32 %v295, 1.0
  %v317 = vadd.f32 %v297, 1.0
  %v318 = vadd.f32 %v299, 1.0
  %v319 = vadd.f32 %v301, 1.0
  %v320 = vadd.f32 %v303, 1.0
  %v321 = vadd.f32 %v305, 1.0
  %v322 = vrcp.pop %v306
  %v323 = vmul.f32 1.0, %v322
  %v324 = vrcp.pop %v307
  %v325 = vmul.f32 1.0, %v324
  %v326 = vrcp.pop %v308
  %v327 = vmul.f32 1.0, %v326
  %v328 = vrcp.pop %v309
  %v329 = vmul.f32 1.0, %v328
  %v330 = vrcp.pop %v310
  %v331 = vmul.f32 1.0, %v330
  %v332 = vrcp.pop %v311
  %v333 = vmul.f32 1.0, %v332
  %v334 = vrcp.pop %v312
  %v335 = vmul.f32 1.0, %v334
  %v336 = vrcp.pop %v313
  %v337 = vmul.f32 1.0, %v336
  %v338 = vrcp.pop %v314
  %v339 = vmul.f32 1.0, %v338
  %v340 = vrcp.pop %v315
  %v341 = vmul.f32 1.0, %v340
  %v342 = vrcp.pop %v316
  %v343 = vmul.f32 1.0, %v342
  %v344 = vrcp.pop %v317
  %v345 = vmul.f32 1.0, %v344
  %v346 = vrcp.pop %v318
  %v347 = vmul.f32 1.0, %v346
  %v348 = vrcp.pop %v319
  %v349 = vmul.f32 1.0, %v348
  %v350 = vrcp.pop %v320
  %v351 = vmul.f32 1.0, %v350
  %v352 = vrcp.pop %v321
  %v353 = vmul.f32 1.0, %v352
  %v354 = vmul.f32 %v242, %v323
  %v355 = vmul.f32 %v243, %v325
  %v356 = vmul.f32 %v244, %v327
  %v357 = vmul.f32 %v245, %v329
  %v358 = vmul.f32 %v246, %v331
  %v359 = vmul.f32 %v247, %v333
  %v360 = vmul.f32 %v248, %v335
  %v361 = vmul.f32 %v249, %v337
  %v362 = vmul.f32 %v250, %v339
  %v363 = vmul.f32 %v251, %v341
  %v364 = vmul.f32 %v252, %v343
  %v365 = vmul.f32 %v253, %v345
  %v366 = vmul.f32 %v254, %v347
  %v367 = vmul.f32 %v255, %v349
  %v368 = vmul.f32 %v256, %v351
  %v369 = vmul.f32 %v257, %v353
  %v370 = vpack.c.bf16 %v355, %v354
  %v371 = vpack.c.bf16 %v357, %v356
  %v372 = vpack.c.bf16 %v359, %v358
  %v373 = vpack.c.bf16 %v361, %v360
  %v374 = vpack.c.bf16 %v363, %v362
  %v375 = vpack.c.bf16 %v365, %v364
  %v376 = vpack.c.bf16 %v367, %v366
  %v377 = vpack.c.bf16 %v369, %v368
  %v386 = vunpack.c.l.b16 %v370
  %v387 = vunpack.c.h.b16 %v370
  %v388 = vunpack.c.l.b16 %v371
  %v389 = vunpack.c.h.b16 %v371
  %v390 = vunpack.c.l.b16 %v372
  %v391 = vunpack.c.h.b16 %v372
  %v392 = vunpack.c.l.b16 %v373
  %v393 = vunpack.c.h.b16 %v373
  %v394 = vunpack.c.l.b16 %v374
  %v395 = vunpack.c.h.b16 %v374
  %v396 = vunpack.c.l.b16 %v375
  %v397 = vunpack.c.h.b16 %v375
  %v398 = vunpack.c.l.b16 %v376
  %v399 = vunpack.c.h.b16 %v376
  %v400 = vunpack.c.l.b16 %v377
  %v401 = vunpack.c.h.b16 %v377
  %v402 = vpack.c.b16 %v386, %v386
  %v403 = vpack.c.b16 %v387, %v387
  %v404 = vpack.c.b16 %v388, %v388
  %v405 = vpack.c.b16 %v389, %v389
  %v406 = vpack.c.b16 %v390, %v390
  %v407 = vpack.c.b16 %v391, %v391
  %v408 = vpack.c.b16 %v392, %v392
  %v409 = vpack.c.b16 %v393, %v393
  %v410 = vpack.c.b16 %v394, %v394
  %v411 = vpack.c.b16 %v395, %v395
  %v412 = vpack.c.b16 %v396, %v396
  %v413 = vpack.c.b16 %v397, %v397
  %v414 = vpack.c.b16 %v398, %v398
  %v415 = vpack.c.b16 %v399, %v399
  %v416 = vpack.c.b16 %v400, %v400
  %v417 = vpack.c.b16 %v401, %v401
  %434 = vst [vmem:[%s4] sm:$0xf] %v402
  %435 = vst [vmem:[%s4 + $0x4] sm:$0xf] %v403
  %436 = vst [vmem:[%s4 + $0x8] sm:$0xf] %v404
  %437 = vst [vmem:[%s4 + $0xc] sm:$0xf] %v405
  %438 = vst [vmem:[%s4 + $0x10] sm:$0xf] %v406
  %439 = vst [vmem:[%s4 + $0x14] sm:$0xf] %v407
  %440 = vst [vmem:[%s4 + $0x18] sm:$0xf] %v408
  %441 = vst [vmem:[%s4 + $0x1c] sm:$0xf] %v409
  %442 = vst [vmem:[%s4 + $0x20] sm:$0xf] %v410
  %443 = vst [vmem:[%s4 + $0x24] sm:$0xf] %v411
  %444 = vst [vmem:[%s4 + $0x28] sm:$0xf] %v412
  %445 = vst [vmem:[%s4 + $0x2c] sm:$0xf] %v413
  %446 = vst [vmem:[%s4 + $0x30] sm:$0xf] %v414
  %447 = vst [vmem:[%s4 + $0x34] sm:$0xf] %v415
  %448 = vst [vmem:[%s4 + $0x38] sm:$0xf] %v416
  %449 = vst [vmem:[%s4 + $0x3c] sm:$0xf] %v417
  // Predicated region
  $region18: #{effnet_forward.5} parent=0 // pred_check
    _
  $region19: #{effnet_forward.5} parent=0 // pred_check_branch
    %451 = sbr.rel (0) target = $region21
  $region20: #{effnet_forward.5} parent=0 // pred_region
    _
  $region21: #{effnet_forward.5} parent=0 // pred_fallthru
    _
  // Predicated region
  $region22: #{effnet_forward.5} parent=0 // pred_check
    _
  $region23: #{effnet_forward.5} parent=0 // pred_check_branch
    %453 = sbr.rel (0) target = $region25
  $region24: #{effnet_forward.5} parent=0 // pred_region
    _
  $region25: #{effnet_forward.5} parent=0 // pred_fallthru
    _

// kernel: effnet_forward.6
$region0: #{effnet_forward.6}
  #allocation0 [shape = 'u32[]', space=smem, size = 0x4, offset = 0x4, fixed_abs, tag = 'smem constant byte address 0x4 - core index']
  #allocation1 [shape = 'u32[144,128]{1,0:T(1,128)}', space=vmem, size = 0x12000, scoped, tag = 'internal scratch']
  %s0 = inlined_call_operand.vmem [shape: bf16[128,128], index: 0, kind: input, shape index: {}]
  %s1 = inlined_call_operand.vmem [shape: bf16[128,128], index: 1, kind: input, shape index: {}]
  %s2 = inlined_call_operand.vmem [shape: f32[1,128], index: 2, kind: input, shape index: {}]
  %s3 = inlined_call_operand.vmem [shape: f32[1,128], index: 3, kind: input, shape index: {}]
  %s4 = inlined_call_operand.vmem [shape: bf16[128,128], index: 4, kind: output, shape index: {}]
  %s5 = sld [smem:[#allocation0]]
  $region26: #{effnet_forward.6} parent=0
    _
  %s7 = ssub.s32 1, %s5
  %s8 = scalar_select 0, %s7, %s5
  // Predicated region
  $region2: #{effnet_forward.6} parent=0 // pred_check
    _
  $region3: #{effnet_forward.6} parent=0 // pred_check_branch
    %10 = sbr.rel (0) target = $region5
  $region4: #{effnet_forward.6} parent=0 // pred_region
    _
  $region5: #{effnet_forward.6} parent=0 // pred_fallthru
    _
  // Predicated region
  $region6: #{effnet_forward.6} parent=0 // pred_check
    _
  $region7: #{effnet_forward.6} parent=0 // pred_check_branch
    %12 = sbr.rel (0) target = $region9
  $region8: #{effnet_forward.6} parent=0 // pred_region
    _
  $region9: #{effnet_forward.6} parent=0 // pred_fallthru
    _
  // Predicated region
  $region10: #{effnet_forward.6} parent=0 // pred_check
    _
  $region11: #{effnet_forward.6} parent=0 // pred_check_branch
    %14 = sbr.rel (0) target = $region13
  $region12: #{effnet_forward.6} parent=0 // pred_region
    _
  $region13: #{effnet_forward.6} parent=0 // pred_fallthru
    _
  // Predicated region
  $region14: #{effnet_forward.6} parent=0 // pred_check
    _
  $region15: #{effnet_forward.6} parent=0 // pred_check_branch
    %16 = sbr.rel (0) target = $region17
  $region16: #{effnet_forward.6} parent=0 // pred_region
    _
  $region17: #{effnet_forward.6} parent=0 // pred_fallthru
    _
  %v18 = vld [vmem:[%s0] sm:$0xf]
  %v19 = vld [vmem:[%s0 + $0x4] sm:$0xf]
  %v20 = vld [vmem:[%s0 + $0x8] sm:$0xf]
  %v21 = vld [vmem:[%s0 + $0xc] sm:$0xf]
  %v22 = vld [vmem:[%s0 + $0x10] sm:$0xf]
  %v23 = vld [vmem:[%s0 + $0x14] sm:$0xf]
  %v24 = vld [vmem:[%s0 + $0x18] sm:$0xf]
  %v25 = vld [vmem:[%s0 + $0x1c] sm:$0xf]
  %v26 = vld [vmem:[%s0 + $0x20] sm:$0xf]
  %v27 = vld [vmem:[%s0 + $0x24] sm:$0xf]
  %v28 = vld [vmem:[%s0 + $0x28] sm:$0xf]
  %v29 = vld [vmem:[%s0 + $0x2c] sm:$0xf]
  %v30 = vld [vmem:[%s0 + $0x30] sm:$0xf]
  %v31 = vld [vmem:[%s0 + $0x34] sm:$0xf]
  %v32 = vld [vmem:[%s0 + $0x38] sm:$0xf]
  %v33 = vld [vmem:[%s0 + $0x3c] sm:$0xf]
  %v34 = vld [vmem:[%s1] sm:$0xf]
  %v35 = vld [vmem:[%s1 + $0x4] sm:$0xf]
  %v36 = vld [vmem:[%s1 + $0x8] sm:$0xf]
  %v37 = vld [vmem:[%s1 + $0xc] sm:$0xf]
  %v38 = vld [vmem:[%s1 + $0x10] sm:$0xf]
  %v39 = vld [vmem:[%s1 + $0x14] sm:$0xf]
  %v40 = vld [vmem:[%s1 + $0x18] sm:$0xf]
  %v41 = vld [vmem:[%s1 + $0x1c] sm:$0xf]
  %v42 = vld [vmem:[%s1 + $0x20] sm:$0xf]
  %v43 = vld [vmem:[%s1 + $0x24] sm:$0xf]
  %v44 = vld [vmem:[%s1 + $0x28] sm:$0xf]
  %v45 = vld [vmem:[%s1 + $0x2c] sm:$0xf]
  %v46 = vld [vmem:[%s1 + $0x30] sm:$0xf]
  %v47 = vld [vmem:[%s1 + $0x34] sm:$0xf]
  %v48 = vld [vmem:[%s1 + $0x38] sm:$0xf]
  %v49 = vld [vmem:[%s1 + $0x3c] sm:$0xf]
  %v66 = vunpack.c.l.b16 %v18
  %v67 = vunpack.c.l.b16 %v19
  %v68 = vunpack.c.l.b16 %v20
  %v69 = vunpack.c.l.b16 %v21
  %v70 = vunpack.c.l.b16 %v22
  %v71 = vunpack.c.l.b16 %v23
  %v72 = vunpack.c.l.b16 %v24
  %v73 = vunpack.c.l.b16 %v25
  %v74 = vunpack.c.l.b16 %v26
  %v75 = vunpack.c.l.b16 %v27
  %v76 = vunpack.c.l.b16 %v28
  %v77 = vunpack.c.l.b16 %v29
  %v78 = vunpack.c.l.b16 %v30
  %v79 = vunpack.c.l.b16 %v31
  %v80 = vunpack.c.l.b16 %v32
  %v81 = vunpack.c.l.b16 %v33
  %v82 = vpack.c.b16 %v67, %v66
  %v83 = vpack.c.b16 %v69, %v68
  %v84 = vpack.c.b16 %v71, %v70
  %v85 = vpack.c.b16 %v73, %v72
  %v86 = vpack.c.b16 %v75, %v74
  %v87 = vpack.c.b16 %v77, %v76
  %v88 = vpack.c.b16 %v79, %v78
  %v89 = vpack.c.b16 %v81, %v80
  %v114 = vunpack.c.l.b16 %v34
  %v115 = vunpack.c.l.b16 %v35
  %v116 = vunpack.c.l.b16 %v36
  %v117 = vunpack.c.l.b16 %v37
  %v118 = vunpack.c.l.b16 %v38
  %v119 = vunpack.c.l.b16 %v39
  %v120 = vunpack.c.l.b16 %v40
  %v121 = vunpack.c.l.b16 %v41
  %v122 = vunpack.c.l.b16 %v42
  %v123 = vunpack.c.l.b16 %v43
  %v124 = vunpack.c.l.b16 %v44
  %v125 = vunpack.c.l.b16 %v45
  %v126 = vunpack.c.l.b16 %v46
  %v127 = vunpack.c.l.b16 %v47
  %v128 = vunpack.c.l.b16 %v48
  %v129 = vunpack.c.l.b16 %v49
  %v130 = vpack.c.b16 %v115, %v114
  %v131 = vpack.c.b16 %v117, %v116
  %v132 = vpack.c.b16 %v119, %v118
  %v133 = vpack.c.b16 %v121, %v120
  %v134 = vpack.c.b16 %v123, %v122
  %v135 = vpack.c.b16 %v125, %v124
  %v136 = vpack.c.b16 %v127, %v126
  %v137 = vpack.c.b16 %v129, %v128
  %146 = vmatprep.subr.bf16.mxu0 0
  %147 = vmatpush1.bf16.msra.mxu0 %v130
  %148 = vmatprep.subr.bf16.mxu0 0
  %149 = vmatpush1.bf16.msra.mxu0 %v131
  %150 = vmatprep.subr.bf16.mxu0 0
  %151 = vmatpush1.bf16.msra.mxu0 %v132
  %152 = vmatprep.subr.bf16.mxu0 0
  %153 = vmatpush1.bf16.msra.mxu0 %v133
  %154 = vmatprep.subr.bf16.mxu0 0
  %155 = vmatpush1.bf16.msra.mxu0 %v134
  %156 = vmatprep.subr.bf16.mxu0 0
  %157 = vmatpush1.bf16.msra.mxu0 %v135
  %158 = vmatprep.subr.bf16.mxu0 0
  %159 = vmatpush1.bf16.msra.mxu0 %v136
  %160 = vmatprep.subr.bf16.mxu0 0
  %161 = vmatpush1.bf16.msra.mxu0 %v137
  %162 = vmatprep.subr.bf16.mxu0 0
  %163 = vmatpush1.bf16.msra.mxu0 0
  %164 = vmatprep.subr.bf16.mxu0 0
  %165 = vmatpush1.bf16.msra.mxu0 0
  %166 = vmatprep.subr.bf16.mxu0 0
  %167 = vmatpush1.bf16.msra.mxu0 0
  %168 = vmatprep.subr.bf16.mxu0 0
  %169 = vmatpush1.bf16.msra.mxu0 0
  %170 = vmatprep.subr.bf16.mxu0 0
  %171 = vmatpush1.bf16.msra.mxu0 0
  %172 = vmatprep.subr.bf16.mxu0 0
  %173 = vmatpush1.bf16.msra.mxu0 0
  %174 = vmatprep.subr.bf16.mxu0 0
  %175 = vmatpush1.bf16.msra.mxu0 0
  %176 = vmatprep.subr.bf16.mxu0 0
  %177 = vmatpush1.bf16.msra.mxu0 0
  %178 = vmatprep.mubr.bf16.mxu0 0
  %179 = vmatmul.mubr.bf16.gmra.mrb[0].mxu0 %v82
  %v180 = vpop.f32.mrb[0].mxu0
  %v181 = vadd.f32 0.0, %v180
  %v182 = vpop.f32.mrb[0].mxu0
  %v183 = vpop.f32.mrb[0].mxu0
  %v184 = vadd.f32 0.0, %v183
  %v185 = vpop.f32.mrb[0].mxu0
  %186 = vmatprep.mubr.bf16.mxu0 0
  %187 = vmatmul.mubr.bf16.gmra.mrb[0].mxu0 %v83
  %v188 = vpop.f32.mrb[0].mxu0
  %v189 = vadd.f32 0.0, %v188
  %v190 = vpop.f32.mrb[0].mxu0
  %v191 = vpop.f32.mrb[0].mxu0
  %v192 = vadd.f32 0.0, %v191
  %v193 = vpop.f32.mrb[0].mxu0
  %194 = vmatprep.mubr.bf16.mxu0 0
  %195 = vmatmul.mubr.bf16.gmra.mrb[0].mxu0 %v84
  %v196 = vpop.f32.mrb[0].mxu0
  %v197 = vadd.f32 0.0, %v196
  %v198 = vpop.f32.mrb[0].mxu0
  %v199 = vpop.f32.mrb[0].mxu0
  %v200 = vadd.f32 0.0, %v199
  %v201 = vpop.f32.mrb[0].mxu0
  %202 = vmatprep.mubr.bf16.mxu0 0
  %203 = vmatmul.mubr.bf16.gmra.mrb[0].mxu0 %v85
  %v204 = vpop.f32.mrb[0].mxu0
  %v205 = vadd.f32 0.0, %v204
  %v206 = vpop.f32.mrb[0].mxu0
  %v207 = vpop.f32.mrb[0].mxu0
  %v208 = vadd.f32 0.0, %v207
  %v209 = vpop.f32.mrb[0].mxu0
  %210 = vmatprep.mubr.bf16.mxu0 0
  %211 = vmatmul.mubr.bf16.gmra.mrb[0].mxu0 %v86
  %v212 = vpop.f32.mrb[0].mxu0
  %v213 = vadd.f32 0.0, %v212
  %v214 = vpop.f32.mrb[0].mxu0
  %v215 = vpop.f32.mrb[0].mxu0
  %v216 = vadd.f32 0.0, %v215
  %v217 = vpop.f32.mrb[0].mxu0
  %218 = vmatprep.mubr.bf16.mxu0 0
  %219 = vmatmul.mubr.bf16.gmra.mrb[0].mxu0 %v87
  %v220 = vpop.f32.mrb[0].mxu0
  %v221 = vadd.f32 0.0, %v220
  %v222 = vpop.f32.mrb[0].mxu0
  %v223 = vpop.f32.mrb[0].mxu0
  %v224 = vadd.f32 0.0, %v223
  %v225 = vpop.f32.mrb[0].mxu0
  %226 = vmatprep.mubr.bf16.mxu0 0
  %227 = vmatmul.mubr.bf16.gmra.mrb[0].mxu0 %v88
  %v228 = vpop.f32.mrb[0].mxu0
  %v229 = vadd.f32 0.0, %v228
  %v230 = vpop.f32.mrb[0].mxu0
  %v231 = vpop.f32.mrb[0].mxu0
  %v232 = vadd.f32 0.0, %v231
  %v233 = vpop.f32.mrb[0].mxu0
  %234 = vmatprep.mubr.bf16.mxu0 0
  %235 = vmatmul.mubr.bf16.gmra.mrb[0].mxu0 %v89
  %v236 = vpop.f32.mrb[0].mxu0
  %v237 = vadd.f32 0.0, %v236
  %v238 = vpop.f32.mrb[0].mxu0
  %v239 = vpop.f32.mrb[0].mxu0
  %v240 = vadd.f32 0.0, %v239
  %v241 = vpop.f32.mrb[0].mxu0
  %242 = vdwg.mxu0
  %v243 = vld [vmem:[%s2] sm:$0x1]
  %v245 = vlaneseq
  %v246 = vshrl.u32 %v245, 7
  %v247 = vsub.s32 0, %v246
  %v248 = vrot.slane %v243, %v247
  %v250 = vmul.f32 %v181, %v248
  %v251 = vmul.f32 %v184, %v248
  %v252 = vmul.f32 %v189, %v248
  %v253 = vmul.f32 %v192, %v248
  %v254 = vmul.f32 %v197, %v248
  %v255 = vmul.f32 %v200, %v248
  %v256 = vmul.f32 %v205, %v248
  %v257 = vmul.f32 %v208, %v248
  %v258 = vmul.f32 %v213, %v248
  %v259 = vmul.f32 %v216, %v248
  %v260 = vmul.f32 %v221, %v248
  %v261 = vmul.f32 %v224, %v248
  %v262 = vmul.f32 %v229, %v248
  %v263 = vmul.f32 %v232, %v248
  %v264 = vmul.f32 %v237, %v248
  %v265 = vmul.f32 %v240, %v248
  %v266 = vld [vmem:[%s3] sm:$0x1]
  %v268 = vlaneseq
  %v269 = vshrl.u32 %v268, 7
  %v270 = vsub.s32 0, %v269
  %v271 = vrot.slane %v266, %v270
  %v273 = vadd.f32 %v250, %v271
  %v274 = vadd.f32 %v251, %v271
  %v275 = vadd.f32 %v252, %v271
  %v276 = vadd.f32 %v253, %v271
  %v277 = vadd.f32 %v254, %v271
  %v278 = vadd.f32 %v255, %v271
  %v279 = vadd.f32 %v256, %v271
  %v280 = vadd.f32 %v257, %v271
  %v281 = vadd.f32 %v258, %v271
  %v282 = vadd.f32 %v259, %v271
  %v283 = vadd.f32 %v260, %v271
  %v284 = vadd.f32 %v261, %v271
  %v285 = vadd.f32 %v262, %v271
  %v286 = vadd.f32 %v263, %v271
  %v287 = vadd.f32 %v264, %v271
  %v288 = vadd.f32 %v265, %v271
  %v289 = vxor.u32 %v273, 2147483648
  %v290 = vxor.u32 %v274, 2147483648
  %v291 = vxor.u32 %v275, 2147483648
  %v292 = vxor.u32 %v276, 2147483648
  %v293 = vxor.u32 %v277, 2147483648
  %v294 = vxor.u32 %v278, 2147483648
  %v295 = vxor.u32 %v279, 2147483648
  %v296 = vxor.u32 %v280, 2147483648
  %v297 = vxor.u32 %v281, 2147483648
  %v298 = vxor.u32 %v282, 2147483648
  %v299 = vxor.u32 %v283, 2147483648
  %v300 = vxor.u32 %v284, 2147483648
  %v301 = vxor.u32 %v285, 2147483648
  %v302 = vxor.u32 %v286, 2147483648
  %v303 = vxor.u32 %v287, 2147483648
  %v304 = vxor.u32 %v288, 2147483648
  %v305 = vmul.f32 %v289, 1.442695
  %v306 = vpow.pop %v305
  %v307 = vmul.f32 %v290, 1.442695
  %v308 = vpow.pop %v307
  %v309 = vmul.f32 %v291, 1.442695
  %v310 = vpow.pop %v309
  %v311 = vmul.f32 %v292, 1.442695
  %v312 = vpow.pop %v311
  %v313 = vmul.f32 %v293, 1.442695
  %v314 = vpow.pop %v313
  %v315 = vmul.f32 %v294, 1.442695
  %v316 = vpow.pop %v315
  %v317 = vmul.f32 %v295, 1.442695
  %v318 = vpow.pop %v317
  %v319 = vmul.f32 %v296, 1.442695
  %v320 = vpow.pop %v319
  %v321 = vmul.f32 %v297, 1.442695
  %v322 = vpow.pop %v321
  %v323 = vmul.f32 %v298, 1.442695
  %v324 = vpow.pop %v323
  %v325 = vmul.f32 %v299, 1.442695
  %v326 = vpow.pop %v325
  %v327 = vmul.f32 %v300, 1.442695
  %v328 = vpow.pop %v327
  %v329 = vmul.f32 %v301, 1.442695
  %v330 = vpow.pop %v329
  %v331 = vmul.f32 %v302, 1.442695
  %v332 = vpow.pop %v331
  %v333 = vmul.f32 %v303, 1.442695
  %v334 = vpow.pop %v333
  %v335 = vmul.f32 %v304, 1.442695
  %v336 = vpow.pop %v335
  %v337 = vadd.f32 %v306, 1.0
  %v338 = vadd.f32 %v308, 1.0
  %v339 = vadd.f32 %v310, 1.0
  %v340 = vadd.f32 %v312, 1.0
  %v341 = vadd.f32 %v314, 1.0
  %v342 = vadd.f32 %v316, 1.0
  %v343 = vadd.f32 %v318, 1.0
  %v344 = vadd.f32 %v320, 1.0
  %v345 = vadd.f32 %v322, 1.0
  %v346 = vadd.f32 %v324, 1.0
  %v347 = vadd.f32 %v326, 1.0
  %v348 = vadd.f32 %v328, 1.0
  %v349 = vadd.f32 %v330, 1.0
  %v350 = vadd.f32 %v332, 1.0
  %v351 = vadd.f32 %v334, 1.0
  %v352 = vadd.f32 %v336, 1.0
  %v353 = vrcp.pop %v337
  %v354 = vmul.f32 1.0, %v353
  %v355 = vrcp.pop %v338
  %v356 = vmul.f32 1.0, %v355
  %v357 = vrcp.pop %v339
  %v358 = vmul.f32 1.0, %v357
  %v359 = vrcp.pop %v340
  %v360 = vmul.f32 1.0, %v359
  %v361 = vrcp.pop %v341
  %v362 = vmul.f32 1.0, %v361
  %v363 = vrcp.pop %v342
  %v364 = vmul.f32 1.0, %v363
  %v365 = vrcp.pop %v343
  %v366 = vmul.f32 1.0, %v365
  %v367 = vrcp.pop %v344
  %v368 = vmul.f32 1.0, %v367
  %v369 = vrcp.pop %v345
  %v370 = vmul.f32 1.0, %v369
  %v371 = vrcp.pop %v346
  %v372 = vmul.f32 1.0, %v371
  %v373 = vrcp.pop %v347
  %v374 = vmul.f32 1.0, %v373
  %v375 = vrcp.pop %v348
  %v376 = vmul.f32 1.0, %v375
  %v377 = vrcp.pop %v349
  %v378 = vmul.f32 1.0, %v377
  %v379 = vrcp.pop %v350
  %v380 = vmul.f32 1.0, %v379
  %v381 = vrcp.pop %v351
  %v382 = vmul.f32 1.0, %v381
  %v383 = vrcp.pop %v352
  %v384 = vmul.f32 1.0, %v383
  %v385 = vmul.f32 %v273, %v354
  %v386 = vmul.f32 %v274, %v356
  %v387 = vmul.f32 %v275, %v358
  %v388 = vmul.f32 %v276, %v360
  %v389 = vmul.f32 %v277, %v362
  %v390 = vmul.f32 %v278, %v364
  %v391 = vmul.f32 %v279, %v366
  %v392 = vmul.f32 %v280, %v368
  %v393 = vmul.f32 %v281, %v370
  %v394 = vmul.f32 %v282, %v372
  %v395 = vmul.f32 %v283, %v374
  %v396 = vmul.f32 %v284, %v376
  %v397 = vmul.f32 %v285, %v378
  %v398 = vmul.f32 %v286, %v380
  %v399 = vmul.f32 %v287, %v382
  %v400 = vmul.f32 %v288, %v384
  %v401 = vpack.c.bf16 %v386, %v385
  %v402 = vpack.c.bf16 %v388, %v387
  %v403 = vpack.c.bf16 %v390, %v389
  %v404 = vpack.c.bf16 %v392, %v391
  %v405 = vpack.c.bf16 %v394, %v393
  %v406 = vpack.c.bf16 %v396, %v395
  %v407 = vpack.c.bf16 %v398, %v397
  %v408 = vpack.c.bf16 %v400, %v399
  %v417 = vunpack.c.l.b16 %v401
  %v418 = vunpack.c.h.b16 %v401
  %v419 = vunpack.c.l.b16 %v402
  %v420 = vunpack.c.h.b16 %v402
  %v421 = vunpack.c.l.b16 %v403
  %v422 = vunpack.c.h.b16 %v403
  %v423 = vunpack.c.l.b16 %v404
  %v424 = vunpack.c.h.b16 %v404
  %v425 = vunpack.c.l.b16 %v405
  %v426 = vunpack.c.h.b16 %v405
  %v427 = vunpack.c.l.b16 %v406
  %v428 = vunpack.c.h.b16 %v406
  %v429 = vunpack.c.l.b16 %v407
  %v430 = vunpack.c.h.b16 %v407
  %v431 = vunpack.c.l.b16 %v408
  %v432 = vunpack.c.h.b16 %v408
  %v433 = vpack.c.b16 %v417, %v417
  %v434 = vpack.c.b16 %v418, %v418
  %v435 = vpack.c.b16 %v419, %v419
  %v436 = vpack.c.b16 %v420, %v420
  %v437 = vpack.c.b16 %v421, %v421
  %v438 = vpack.c.b16 %v422, %v422
  %v439 = vpack.c.b16 %v423, %v423
  %v440 = vpack.c.b16 %v424, %v424
  %v441 = vpack.c.b16 %v425, %v425
  %v442 = vpack.c.b16 %v426, %v426
  %v443 = vpack.c.b16 %v427, %v427
  %v444 = vpack.c.b16 %v428, %v428
  %v445 = vpack.c.b16 %v429, %v429
  %v446 = vpack.c.b16 %v430, %v430
  %v447 = vpack.c.b16 %v431, %v431
  %v448 = vpack.c.b16 %v432, %v432
  %465 = vst [vmem:[%s4] sm:$0xf] %v433
  %466 = vst [vmem:[%s4 + $0x4] sm:$0xf] %v434
  %467 = vst [vmem:[%s4 + $0x8] sm:$0xf] %v435
  %468 = vst [vmem:[%s4 + $0xc] sm:$0xf] %v436
  %469 = vst [vmem:[%s4 + $0x10] sm:$0xf] %v437
  %470 = vst [vmem:[%s4 + $0x14] sm:$0xf] %v438
  %471 = vst [vmem:[%s4 + $0x18] sm:$0xf] %v439
  %472 = vst [vmem:[%s4 + $0x1c] sm:$0xf] %v440
  %473 = vst [vmem:[%s4 + $0x20] sm:$0xf] %v441
  %474 = vst [vmem:[%s4 + $0x24] sm:$0xf] %v442
  %475 = vst [vmem:[%s4 + $0x28] sm:$0xf] %v443
  %476 = vst [vmem:[%s4 + $0x2c] sm:$0xf] %v444
  %477 = vst [vmem:[%s4 + $0x30] sm:$0xf] %v445
  %478 = vst [vmem:[%s4 + $0x34] sm:$0xf] %v446
  %479 = vst [vmem:[%s4 + $0x38] sm:$0xf] %v447
  %480 = vst [vmem:[%s4 + $0x3c] sm:$0xf] %v448
  // Predicated region
  $region18: #{effnet_forward.6} parent=0 // pred_check
    _
  $region19: #{effnet_forward.6} parent=0 // pred_check_branch
    %482 = sbr.rel (0) target = $region21
  $region20: #{effnet_forward.6} parent=0 // pred_region
    _
  $region21: #{effnet_forward.6} parent=0 // pred_fallthru
    _
  // Predicated region
  $region22: #{effnet_forward.6} parent=0 // pred_check
    _
  $region23: #{effnet_forward.6} parent=0 // pred_check_branch
    %484 = sbr.rel (0) target = $region25
  $region24: #{effnet_forward.6} parent=0 // pred_region
    _
  $region25: #{effnet_forward.6} parent=0 // pred_fallthru
    _

// kernel: effnet_forward.7
$region0: #{effnet_forward.7}
  #allocation0 [shape = 'u32[]', space=smem, size = 0x4, offset = 0x4, fixed_abs, tag = 'smem constant byte address 0x4 - core index']
  #allocation1 [shape = 'u32[144,128]{1,0:T(1,128)}', space=vmem, size = 0x12000, scoped, tag = 'internal scratch']
  %s0 = inlined_call_operand.vmem [shape: bf16[2,10,10,128], index: 0, kind: input, shape index: {}]
  %s1 = inlined_call_operand.vmem [shape: f32[3,3,128], index: 1, kind: input, shape index: {}]
  %s2 = inlined_call_operand.vmem [shape: f32[1,1,128], index: 2, kind: input, shape index: {}]
  %s3 = inlined_call_operand.vmem [shape: f32[1,1,128], index: 3, kind: input, shape index: {}]
  %s4 = inlined_call_operand.vmem [shape: f32[128,128], index: 4, kind: input, shape index: {}]
  %s5 = inlined_call_operand.vmem [shape: f32[1,128], index: 5, kind: input, shape index: {}]
  %s6 = inlined_call_operand.vmem [shape: f32[128,128], index: 6, kind: input, shape index: {}]
  %s7 = inlined_call_operand.vmem [shape: f32[1,128], index: 7, kind: input, shape index: {}]
  %s8 = inlined_call_operand.vmem [shape: bf16[2,8,8,128], index: 8, kind: output, shape index: {0}]
  %s9 = inlined_call_operand.vmem [shape: f32[2,128], index: 9, kind: output, shape index: {1}]
  %10 = xla_tuple %s8, %s9
  %s11 = sld [smem:[#allocation0]]
  $region73: #{effnet_forward.7} parent=0
    _
  %s13 = ssub.s32 1, %s11
  %s14 = scalar_select 0, %s13, %s11
  loop: start=0, step=1, limit=4
  $region2: #{effnet_forward.7} parent=0 // loop_pre_header
    _
  $region3: #{effnet_forward.7} parent=0 // loop_header
    %s16 = sphi 0, %s20
    %p17 = scmp.ge.s32.totalorder %s16, 4
    %s26 = sphi 0, %s28
    %s29 = sphi 0, %s26
    %s30 = sphi 0, %s29
    %s46 = sphi 0, %s30
    %s50 = sphi 0, %s50
    %s52 = sphi 0, %s50
    %s53 = sphi 0, %s52
    %s67 = sphi 0, %s53
    %s71 = sphi 0, %s71
    %s73 = sphi 0, %s71
    %s74 = sphi 0, %s73
    %s88 = sphi 0, %s74
    %s92 = sphi 0, %s92
    %s94 = sphi 0, %s92
    %s95 = sphi 0, %s94
    %s109 = sphi 0, %s95
    %s113 = sphi 0, %s113
    %s115 = sphi 0, %s113
    %s116 = sphi 0, %s115
    %s130 = sphi 0, %s116
    %s134 = sphi 0, %s134
    %s136 = sphi 0, %s134
    %s137 = sphi 0, %s136
    %s151 = sphi 0, %s137
    %s155 = sphi 0, %s155
    %s157 = sphi 0, %s155
    %s158 = sphi 0, %s157
    %s172 = sphi 0, %s158
    %s176 = sphi 0, %s176
    %s178 = sphi 0, %s176
    %s179 = sphi 0, %s178
    %s193 = sphi 0, %s179
    %s199 = sphi 0, %s201
    %s202 = sphi 0, %s199
    %s203 = sphi 0, %s202
    %s219 = sphi 0, %s203
    %s223 = sphi 0, %s223
    %s225 = sphi 0, %s223
    %s226 = sphi 0, %s225
    %s240 = sphi 0, %s226
  $region4: #{effnet_forward.7} parent=0 // loop_header_branch
    %19 = sbr.rel (%p17) target = $region8
  $region5: #{effnet_forward.7} parent=0 // loop_body
    %s21 = ssub.s32 %s16, 1
    %s22 = ssub.s32 %s16, 2
    %s23 = sadd.s32 %s16, 1
    %s24 = ssub.s32 %s16, %s23
    %p25 = scmp.eq.s32.totalorder %s24, 0
    %s27 = sadd.s32 %s26, 1
    %s28 = scalar_select %p25, %s26, %s27
    %p31 = pneg %p25
    %p32 = scmp.eq.s32.totalorder %s16, 1
    %p33 = por %p31, %p32
    %p34 = scmp.ne.s32.totalorder %s26, %s29
    %p35 = scmp.eq.s32.totalorder %s16, 0
    %p36 = por %p34, %p35
    %p37 = scmp.ne.s32.totalorder %s26, %s29
    %p38 = scmp.eq.s32.totalorder %s21, 1
    %p39 = por %p37, %p38
    %p40 = scmp.ne.s32.totalorder %s29, %s30
    %p41 = scmp.eq.s32.totalorder %s21, 0
    %p42 = por %p40, %p41
    %p43 = scmp.ne.s32.totalorder %s29, %s30
    %p44 = scmp.eq.s32.totalorder %s22, 1
    %p45 = por %p43, %p44
    %p47 = scmp.ne.s32.totalorder %s30, %s46
    %p48 = scmp.eq.s32.totalorder %s22, 0
    %p49 = por %p47, %p48
    %s51 = sadd.s32 %s50, 1
    %p54 = scmp.eq.s32.totalorder %s16, 1
    %p55 = scmp.ne.s32.totalorder %s50, %s52
    %p56 = scmp.eq.s32.totalorder %s16, 0
    %p57 = por %p55, %p56
    %p58 = scmp.ne.s32.totalorder %s50, %s52
    %p59 = scmp.eq.s32.totalorder %s21, 1
    %p60 = por %p58, %p59
    %p61 = scmp.ne.s32.totalorder %s52, %s53
    %p62 = scmp.eq.s32.totalorder %s21, 0
    %p63 = por %p61, %p62
    %p64 = scmp.ne.s32.totalorder %s52, %s53
    %p65 = scmp.eq.s32.totalorder %s22, 1
    %p66 = por %p64, %p65
    %p68 = scmp.ne.s32.totalorder %s53, %s67
    %p69 = scmp.eq.s32.totalorder %s22, 0
    %p70 = por %p68, %p69
    %s72 = sadd.s32 %s71, 1
    %p75 = scmp.eq.s32.totalorder %s16, 1
    %p76 = scmp.ne.s32.totalorder %s71, %s73
    %p77 = scmp.eq.s32.totalorder %s16, 0
    %p78 = por %p76, %p77
    %p79 = scmp.ne.s32.totalorder %s71, %s73
    %p80 = scmp.eq.s32.totalorder %s21, 1
    %p81 = por %p79, %p80
    %p82 = scmp.ne.s32.totalorder %s73, %s74
    %p83 = scmp.eq.s32.totalorder %s21, 0
    %p84 = por %p82, %p83
    %p85 = scmp.ne.s32.totalorder %s73, %s74
    %p86 = scmp.eq.s32.totalorder %s22, 1
    %p87 = por %p85, %p86
    %p89 = scmp.ne.s32.totalorder %s74, %s88
    %p90 = scmp.eq.s32.totalorder %s22, 0
    %p91 = por %p89, %p90
    %s93 = sadd.s32 %s92, 1
    %p96 = scmp.eq.s32.totalorder %s16, 1
    %p97 = scmp.ne.s32.totalorder %s92, %s94
    %p98 = scmp.eq.s32.totalorder %s16, 0
    %p99 = por %p97, %p98
    %p100 = scmp.ne.s32.totalorder %s92, %s94
    %p101 = scmp.eq.s32.totalorder %s21, 1
    %p102 = por %p100, %p101
    %p103 = scmp.ne.s32.totalorder %s94, %s95
    %p104 = scmp.eq.s32.totalorder %s21, 0
    %p105 = por %p103, %p104
    %p106 = scmp.ne.s32.totalorder %s94, %s95
    %p107 = scmp.eq.s32.totalorder %s22, 1
    %p108 = por %p106, %p107
    %p110 = scmp.ne.s32.totalorder %s95, %s109
    %p111 = scmp.eq.s32.totalorder %s22, 0
    %p112 = por %p110, %p111
    %s114 = sadd.s32 %s113, 1
    %p117 = scmp.eq.s32.totalorder %s16, 1
    %p118 = scmp.ne.s32.totalorder %s113, %s115
    %p119 = scmp.eq.s32.totalorder %s16, 0
    %p120 = por %p118, %p119
    %p121 = scmp.ne.s32.totalorder %s113, %s115
    %p122 = scmp.eq.s32.totalorder %s21, 1
    %p123 = por %p121, %p122
    %p124 = scmp.ne.s32.totalorder %s115, %s116
    %p125 = scmp.eq.s32.totalorder %s21, 0
    %p126 = por %p124, %p125
    %p127 = scmp.ne.s32.totalorder %s115, %s116
    %p128 = scmp.eq.s32.totalorder %s22, 1
    %p129 = por %p127, %p128
    %p131 = scmp.ne.s32.totalorder %s116, %s130
    %p132 = scmp.eq.s32.totalorder %s22, 0
    %p133 = por %p131, %p132
    %s135 = sadd.s32 %s134, 1
    %p138 = scmp.eq.s32.totalorder %s16, 1
    %p139 = scmp.ne.s32.totalorder %s134, %s136
    %p140 = scmp.eq.s32.totalorder %s16, 0
    %p141 = por %p139, %p140
    %p142 = scmp.ne.s32.totalorder %s134, %s136
    %p143 = scmp.eq.s32.totalorder %s21, 1
    %p144 = por %p142, %p143
    %p145 = scmp.ne.s32.totalorder %s136, %s137
    %p146 = scmp.eq.s32.totalorder %s21, 0
    %p147 = por %p145, %p146
    %p148 = scmp.ne.s32.totalorder %s136, %s137
    %p149 = scmp.eq.s32.totalorder %s22, 1
    %p150 = por %p148, %p149
    %p152 = scmp.ne.s32.totalorder %s137, %s151
    %p153 = scmp.eq.s32.totalorder %s22, 0
    %p154 = por %p152, %p153
    %s156 = sadd.s32 %s155, 1
    %p159 = scmp.eq.s32.totalorder %s16, 1
    %p160 = scmp.ne.s32.totalorder %s155, %s157
    %p161 = scmp.eq.s32.totalorder %s16, 0
    %p162 = por %p160, %p161
    %p163 = scmp.ne.s32.totalorder %s155, %s157
    %p164 = scmp.eq.s32.totalorder %s21, 1
    %p165 = por %p163, %p164
    %p166 = scmp.ne.s32.totalorder %s157, %s158
    %p167 = scmp.eq.s32.totalorder %s21, 0
    %p168 = por %p166, %p167
    %p169 = scmp.ne.s32.totalorder %s157, %s158
    %p170 = scmp.eq.s32.totalorder %s22, 1
    %p171 = por %p169, %p170
    %p173 = scmp.ne.s32.totalorder %s158, %s172
    %p174 = scmp.eq.s32.totalorder %s22, 0
    %p175 = por %p173, %p174
    %s177 = sadd.s32 %s176, 1
    %p180 = scmp.eq.s32.totalorder %s16, 1
    %p181 = scmp.ne.s32.totalorder %s176, %s178
    %p182 = scmp.eq.s32.totalorder %s16, 0
    %p183 = por %p181, %p182
    %p184 = scmp.ne.s32.totalorder %s176, %s178
    %p185 = scmp.eq.s32.totalorder %s21, 1
    %p186 = por %p184, %p185
    %p187 = scmp.ne.s32.totalorder %s178, %s179
    %p188 = scmp.eq.s32.totalorder %s21, 0
    %p189 = por %p187, %p188
    %p190 = scmp.ne.s32.totalorder %s178, %s179
    %p191 = scmp.eq.s32.totalorder %s22, 1
    %p192 = por %p190, %p191
    %p194 = scmp.ne.s32.totalorder %s179, %s193
    %p195 = scmp.eq.s32.totalorder %s22, 0
    %p196 = por %p194, %p195
    %s197 = ssub.s32 %s16, %s23
    %p198 = scmp.eq.s32.totalorder %s197, 0
    %s200 = sadd.s32 %s199, 1
    %s201 = scalar_select %p198, %s199, %s200
    %p204 = pneg %p198
    %p205 = scmp.eq.s32.totalorder %s16, 1
    %p206 = por %p204, %p205
    %p207 = scmp.ne.s32.totalorder %s199, %s202
    %p208 = scmp.eq.s32.totalorder %s16, 0
    %p209 = por %p207, %p208
    %p210 = scmp.ne.s32.totalorder %s199, %s202
    %p211 = scmp.eq.s32.totalorder %s21, 1
    %p212 = por %p210, %p211
    %p213 = scmp.ne.s32.totalorder %s202, %s203
    %p214 = scmp.eq.s32.totalorder %s21, 0
    %p215 = por %p213, %p214
    %p216 = scmp.ne.s32.totalorder %s202, %s203
    %p217 = scmp.eq.s32.totalorder %s22, 1
    %p218 = por %p216, %p217
    %p220 = scmp.ne.s32.totalorder %s203, %s219
    %p221 = scmp.eq.s32.totalorder %s22, 0
    %p222 = por %p220, %p221
    %s224 = sadd.s32 %s223, 1
    %p227 = scmp.eq.s32.totalorder %s16, 1
    %p228 = scmp.ne.s32.totalorder %s223, %s225
    %p229 = scmp.eq.s32.totalorder %s16, 0
    %p230 = por %p228, %p229
    %p231 = scmp.ne.s32.totalorder %s223, %s225
    %p232 = scmp.eq.s32.totalorder %s21, 1
    %p233 = por %p231, %p232
    %p234 = scmp.ne.s32.totalorder %s225, %s226
    %p235 = scmp.eq.s32.totalorder %s21, 0
    %p236 = por %p234, %p235
    %p237 = scmp.ne.s32.totalorder %s225, %s226
    %p238 = scmp.eq.s32.totalorder %s22, 1
    %p239 = por %p237, %p238
    %p241 = scmp.ne.s32.totalorder %s226, %s240
    %p242 = scmp.eq.s32.totalorder %s22, 0
    %p243 = por %p241, %p242
    %p244 = scmp.le.s32.totalorder 1, %s16
    %p245 = scmp.lt.s32.totalorder %s16, 3
    %p246 = pnand %p244, %p245
    %p247 = pneg %p246
    // Predicated region
    $region9: #{effnet_forward.7} parent=5 // pred_check
      _
    $region10: #{effnet_forward.7} parent=5 // pred_check_branch
      %249 = sbr.rel (%p246) target = $region12
    $region11: #{effnet_forward.7} parent=5 // pred_region
      %s250 = ssub.s32 %s16, 1
      // Predicated region
      $region13: #{effnet_forward.7} parent=11 // pred_check
        %p251 = pneg %p63
      $region14: #{effnet_forward.7} parent=11 // pred_check_branch
        %253 = sbr.rel (%p251) target = $region16
      $region15: #{effnet_forward.7} parent=11 // pred_region
        _
      $region16: #{effnet_forward.7} parent=11 // pred_fallthru
        _
      // Predicated region
      $region17: #{effnet_forward.7} parent=11 // pred_check
        %p254 = pneg %p84
      $region18: #{effnet_forward.7} parent=11 // pred_check_branch
        %256 = sbr.rel (%p254) target = $region20
      $region19: #{effnet_forward.7} parent=11 // pred_region
        _
      $region20: #{effnet_forward.7} parent=11 // pred_fallthru
        _
      // Predicated region
      $region21: #{effnet_forward.7} parent=11 // pred_check
        %p257 = pneg %p105
      $region22: #{effnet_forward.7} parent=11 // pred_check_branch
        %259 = sbr.rel (%p257) target = $region24
      $region23: #{effnet_forward.7} parent=11 // pred_region
        _
      $region24: #{effnet_forward.7} parent=11 // pred_fallthru
        _
      // Predicated region
      $region25: #{effnet_forward.7} parent=11 // pred_check
        %p260 = pneg %p126
      $region26: #{effnet_forward.7} parent=11 // pred_check_branch
        %262 = sbr.rel (%p260) target = $region28
      $region27: #{effnet_forward.7} parent=11 // pred_region
        _
      $region28: #{effnet_forward.7} parent=11 // pred_fallthru
        _
      // Predicated region
      $region29: #{effnet_forward.7} parent=11 // pred_check
        %p263 = pneg %p147
      $region30: #{effnet_forward.7} parent=11 // pred_check_branch
        %265 = sbr.rel (%p263) target = $region32
      $region31: #{effnet_forward.7} parent=11 // pred_region
        _
      $region32: #{effnet_forward.7} parent=11 // pred_fallthru
        _
      // Predicated region
      $region33: #{effnet_forward.7} parent=11 // pred_check
        %p266 = pneg %p168
      $region34: #{effnet_forward.7} parent=11 // pred_check_branch
        %268 = sbr.rel (%p266) target = $region36
      $region35: #{effnet_forward.7} parent=11 // pred_region
        _
      $region36: #{effnet_forward.7} parent=11 // pred_fallthru
        _
      // Predicated region
      $region37: #{effnet_forward.7} parent=11 // pred_check
        %p269 = pneg %p189
      $region38: #{effnet_forward.7} parent=11 // pred_check_branch
        %271 = sbr.rel (%p269) target = $region40
      $region39: #{effnet_forward.7} parent=11 // pred_region
        _
      $region40: #{effnet_forward.7} parent=11 // pred_fallthru
        _
    $region12: #{effnet_forward.7} parent=5 // pred_fallthru
      _
    %p272 = scmp.lt.s32.totalorder %s16, 2
    // Predicated region
    $region41: #{effnet_forward.7} parent=5 // pred_check
      %p273 = pneg %p272
    $region42: #{effnet_forward.7} parent=5 // pred_check_branch
      %275 = sbr.rel (%p273) target = $region44
    $region43: #{effnet_forward.7} parent=5 // pred_region
      // Predicated region
      $region45: #{effnet_forward.7} parent=43 // pred_check
        %p276 = pneg %p36
      $region46: #{effnet_forward.7} parent=43 // pred_check_branch
        %278 = sbr.rel (%p276) target = $region48
      $region47: #{effnet_forward.7} parent=43 // pred_region
        %p279 = scmp.lt.s32.totalorder %s16, 1
        %s280 = scalar_select %p279, %s16, 1
        %s281 = smul.addr %s280, 20
        %s282 = smul.addr %s281, 4
        %s283 = scalar_lea.vmem %s0, %s282
      $region48: #{effnet_forward.7} parent=43 // pred_fallthru
        _
    $region44: #{effnet_forward.7} parent=5 // pred_fallthru
      _
    %p284 = scmp.le.s32.totalorder 1, %s16
    %p285 = scmp.lt.s32.totalorder %s16, 3
    %p286 = pnand %p284, %p285
    %p287 = pneg %p286
    // Predicated region
    $region49: #{effnet_forward.7} parent=5 // pred_check
      _
    $region50: #{effnet_forward.7} parent=5 // pred_check_branch
      %289 = sbr.rel (%p286) target = $region52
    $region51: #{effnet_forward.7} parent=5 // pred_region
      %s290 = ssub.s32 %s16, 1
      %p291 = scmp.lt.s32.totalorder %s21, 1
      %s292 = scalar_select %p291, %s21, 1
      %s293 = smul.addr %s292, 20
      %s294 = smul.addr %s293, 4
      %s295 = scalar_lea.vmem %s0, %s294
      %p296 = pneg %p42
      %p297 = pneg %p39
      %p298 = pneg %p63
      %p299 = pneg %p60
      %p300 = pneg %p84
      %p301 = pneg %p81
      %p302 = pneg %p105
      %p303 = pneg %p102
      %p304 = pneg %p126
      %p305 = pneg %p123
      %p306 = pneg %p147
      %p307 = pneg %p144
      %p308 = pneg %p168
      %p309 = pneg %p165
      %p310 = pneg %p189
      %p311 = pneg %p186
      %p312 = pneg %p215
      %p313 = pneg %p212
      %p314 = scmp.lt.s32.totalorder %s21, 1
      %s315 = scalar_select %p314, %s21, 1
      %s316 = smul.addr %s315, 8
      %s317 = smul.addr %s316, 4
      %s318 = scalar_lea.vmem %s8, %s317
      %p319 = pneg %p236
      %p320 = pneg %p233
      %p321 = scmp.lt.s32.totalorder %s21, 1
      %s322 = scalar_select %p321, %s21, 1
      %s323 = smul.addr %s322, 20
      %s324 = smul.addr %s323, 4
      %s325 = scalar_lea.vmem %s0, %s324
      %p326 = scmp.lt.s32.totalorder %s21, 1
      %s327 = scalar_select %p326, %s21, 1
      %s328 = smul.addr %s327, 8
      %s329 = smul.addr %s328, 4
      %s330 = scalar_lea.vmem %s8, %s329
      %v331 = vld [vmem:[%s325] sm:$0xf]
      %v332 = vld [vmem:[%s325 + $0x4] sm:$0x1]
      %v333 = vld [vmem:[%s325 + $0x8] sm:$0xf]
      %v334 = vld [vmem:[%s325 + $0xc] sm:$0x1]
      %v335 = vld [vmem:[%s325 + $0x10] sm:$0xf]
      %v336 = vld [vmem:[%s325 + $0x14] sm:$0x1]
      %v337 = vld [vmem:[%s325 + $0x18] sm:$0xf]
      %v338 = vld [vmem:[%s325 + $0x1c] sm:$0x1]
      %v339 = vld [vmem:[%s325 + $0x20] sm:$0xf]
      %v340 = vld [vmem:[%s325 + $0x24] sm:$0x1]
      %v341 = vld [vmem:[%s325 + $0x28] sm:$0xf]
      %v342 = vld [vmem:[%s325 + $0x2c] sm:$0x1]
      %v343 = vld [vmem:[%s325 + $0x30] sm:$0xf]
      %v344 = vld [vmem:[%s325 + $0x34] sm:$0x1]
      %v345 = vld [vmem:[%s325 + $0x38] sm:$0xf]
      %v346 = vld [vmem:[%s325 + $0x3c] sm:$0x1]
      %v347 = vld [vmem:[%s325 + $0x40] sm:$0xf]
      %v348 = vld [vmem:[%s325 + $0x44] sm:$0x1]
      %v349 = vld [vmem:[%s325 + $0x48] sm:$0xf]
      %v350 = vld [vmem:[%s325 + $0x4c] sm:$0x1]
      %v351 = vunpack.c.l.bf16 %v331
      %v352 = vunpack.c.l.bf16 %v332
      %v353 = vunpack.c.l.bf16 %v333
      %v354 = vunpack.c.l.bf16 %v334
      %v355 = vunpack.c.l.bf16 %v335
      %v356 = vunpack.c.l.bf16 %v336
      %v357 = vunpack.c.l.bf16 %v337
      %v358 = vunpack.c.l.bf16 %v338
      %v359 = vunpack.c.l.bf16 %v339
      %v360 = vunpack.c.l.bf16 %v340
      %v361 = vunpack.c.l.bf16 %v341
      %v362 = vunpack.c.l.bf16 %v342
      %v363 = vunpack.c.l.bf16 %v343
      %v364 = vunpack.c.l.bf16 %v344
      %v365 = vunpack.c.l.bf16 %v345
      %v366 = vunpack.c.l.bf16 %v346
      %v367 = vunpack.c.l.bf16 %v347
      %v368 = vunpack.c.l.bf16 %v348
      %v369 = vunpack.c.l.bf16 %v349
      %v370 = vunpack.c.l.bf16 %v350
      %v371 = vld [vmem:[%s1] sm:$0x1]
      %v372 = vlaneseq
      %v373 = vshrl.u32 %v372, 7
      %v374 = vsub.s32 0, %v373
      %v375 = vrot.slane %v371, %v374
      %v376 = vmul.f32 %v351, %v375
      %v377 = vmul.f32 %v353, %v375
      %v378 = vmul.f32 %v355, %v375
      %v379 = vmul.f32 %v357, %v375
      %v380 = vmul.f32 %v359, %v375
      %v381 = vmul.f32 %v361, %v375
      %v382 = vmul.f32 %v363, %v375
      %v383 = vmul.f32 %v365, %v375
      %v384 = vadd.f32 %v376, 0.0
      %v385 = vadd.f32 %v377, 0.0
      %v386 = vadd.f32 %v378, 0.0
      %v387 = vadd.f32 %v379, 0.0
      %v388 = vadd.f32 %v380, 0.0
      %v389 = vadd.f32 %v381, 0.0
      %v390 = vadd.f32 %v382, 0.0
      %v391 = vadd.f32 %v383, 0.0
      %v392 = vld [vmem:[%s1 + $0x1] sm:$0x1]
      %v393 = vlaneseq
      %v394 = vshrl.u32 %v393, 7
      %v395 = vsub.s32 0, %v394
      %v396 = vrot.slane %v392, %v395
      %v397 = vmul.f32 %v351, %v396
      %v398 = vmul.f32 %v352, %v396
      %v399 = vmul.f32 %v353, %v396
      %v400 = vmul.f32 %v354, %v396
      %v401 = vmul.f32 %v355, %v396
      %v402 = vmul.f32 %v356, %v396
      %v403 = vmul.f32 %v357, %v396
      %v404 = vmul.f32 %v358, %v396
      %v405 = vmul.f32 %v359, %v396
      %v406 = vmul.f32 %v360, %v396
      %v407 = vmul.f32 %v361, %v396
      %v408 = vmul.f32 %v362, %v396
      %v409 = vmul.f32 %v363, %v396
      %v410 = vmul.f32 %v364, %v396
      %v411 = vmul.f32 %v365, %v396
      %v412 = vmul.f32 %v366, %v396
      %vm429 = vcmask 1046528
      %v430 = vrot.slane %v397, 1
      %v431 = vrot.slane %v398, 1
      %v432 = vsel %vm429, %v430, %v431
      %v433 = vrot.slane %v399, 1
      %v434 = vrot.slane %v400, 1
      %v435 = vsel %vm429, %v433, %v434
      %v436 = vrot.slane %v401, 1
      %v437 = vrot.slane %v402, 1
      %v438 = vsel %vm429, %v436, %v437
      %v439 = vrot.slane %v403, 1
      %v440 = vrot.slane %v404, 1
      %v441 = vsel %vm429, %v439, %v440
      %v442 = vrot.slane %v405, 1
      %v443 = vrot.slane %v406, 1
      %v444 = vsel %vm429, %v442, %v443
      %v445 = vrot.slane %v407, 1
      %v446 = vrot.slane %v408, 1
      %v447 = vsel %vm429, %v445, %v446
      %v448 = vrot.slane %v409, 1
      %v449 = vrot.slane %v410, 1
      %v450 = vsel %vm429, %v448, %v449
      %v451 = vrot.slane %v411, 1
      %v452 = vrot.slane %v412, 1
      %v453 = vsel %vm429, %v451, %v452
      %v462 = vadd.f32 %v384, %v432
      %v463 = vadd.f32 %v385, %v435
      %v464 = vadd.f32 %v386, %v438
      %v465 = vadd.f32 %v387, %v441
      %v466 = vadd.f32 %v388, %v444
      %v467 = vadd.f32 %v389, %v447
      %v468 = vadd.f32 %v390, %v450
      %v469 = vadd.f32 %v391, %v453
      %v470 = vld [vmem:[%s1 + $0x2] sm:$0x1]
      %v471 = vlaneseq
      %v472 = vshrl.u32 %v471, 7
      %v473 = vsub.s32 0, %v472
      %v474 = vrot.slane %v470, %v473
      %v475 = vmul.f32 %v351, %v474
      %v476 = vmul.f32 %v352, %v474
      %v477 = vmul.f32 %v353, %v474
      %v478 = vmul.f32 %v354, %v474
      %v479 = vmul.f32 %v355, %v474
      %v480 = vmul.f32 %v356, %v474
      %v481 = vmul.f32 %v357, %v474
      %v482 = vmul.f32 %v358, %v474
      %v483 = vmul.f32 %v359, %v474
      %v484 = vmul.f32 %v360, %v474
      %v485 = vmul.f32 %v361, %v474
      %v486 = vmul.f32 %v362, %v474
      %v487 = vmul.f32 %v363, %v474
      %v488 = vmul.f32 %v364, %v474
      %v489 = vmul.f32 %v365, %v474
      %v490 = vmul.f32 %v366, %v474
      %vm507 = vcmask 1045504
      %v508 = vrot.slane %v475, 2
      %v509 = vrot.slane %v476, 2
      %v510 = vsel %vm507, %v508, %v509
      %v511 = vrot.slane %v477, 2
      %v512 = vrot.slane %v478, 2
      %v513 = vsel %vm507, %v511, %v512
      %v514 = vrot.slane %v479, 2
      %v515 = vrot.slane %v480, 2
      %v516 = vsel %vm507, %v514, %v515
      %v517 = vrot.slane %v481, 2
      %v518 = vrot.slane %v482, 2
      %v519 = vsel %vm507, %v517, %v518
      %v520 = vrot.slane %v483, 2
      %v521 = vrot.slane %v484, 2
      %v522 = vsel %vm507, %v520, %v521
      %v523 = vrot.slane %v485, 2
      %v524 = vrot.slane %v486, 2
      %v525 = vsel %vm507, %v523, %v524
      %v526 = vrot.slane %v487, 2
      %v527 = vrot.slane %v488, 2
      %v528 = vsel %vm507, %v526, %v527
      %v529 = vrot.slane %v489, 2
      %v530 = vrot.slane %v490, 2
      %v531 = vsel %vm507, %v529, %v530
      %v540 = vadd.f32 %v462, %v510
      %v541 = vadd.f32 %v463, %v513
      %v542 = vadd.f32 %v464, %v516
      %v543 = vadd.f32 %v465, %v519
      %v544 = vadd.f32 %v466, %v522
      %v545 = vadd.f32 %v467, %v525
      %v546 = vadd.f32 %v468, %v528
      %v547 = vadd.f32 %v469, %v531
      %s548 = scalar_lea.vmem %s1, 4
      %v549 = vld [vmem:[%s548] sm:$0x1]
      %v550 = vlaneseq
      %v551 = vshrl.u32 %v550, 7
      %v552 = vsub.s32 0, %v551
      %v553 = vrot.slane %v549, %v552
      %v554 = vmul.f32 %v353, %v553
      %v555 = vmul.f32 %v355, %v553
      %v556 = vmul.f32 %v357, %v553
      %v557 = vmul.f32 %v359, %v553
      %v558 = vmul.f32 %v361, %v553
      %v559 = vmul.f32 %v363, %v553
      %v560 = vmul.f32 %v365, %v553
      %v561 = vmul.f32 %v367, %v553
      %v562 = vadd.f32 %v540, %v554
      %v563 = vadd.f32 %v541, %v555
      %v564 = vadd.f32 %v542, %v556
      %v565 = vadd.f32 %v543, %v557
      %v566 = vadd.f32 %v544, %v558
      %v567 = vadd.f32 %v545, %v559
      %v568 = vadd.f32 %v546, %v560
      %v569 = vadd.f32 %v547, %v561
      %v570 = vld [vmem:[%s548 + $0x1] sm:$0x1]
      %v571 = vlaneseq
      %v572 = vshrl.u32 %v571, 7
      %v573 = vsub.s32 0, %v572
      %v574 = vrot.slane %v570, %v573
      %v575 = vmul.f32 %v353, %v574
      %v576 = vmul.f32 %v354, %v574
      %v577 = vmul.f32 %v355, %v574
      %v578 = vmul.f32 %v356, %v574
      %v579 = vmul.f32 %v357, %v574
      %v580 = vmul.f32 %v358, %v574
      %v581 = vmul.f32 %v359, %v574
      %v582 = vmul.f32 %v360, %v574
      %v583 = vmul.f32 %v361, %v574
      %v584 = vmul.f32 %v362, %v574
      %v585 = vmul.f32 %v363, %v574
      %v586 = vmul.f32 %v364, %v574
      %v587 = vmul.f32 %v365, %v574
      %v588 = vmul.f32 %v366, %v574
      %v589 = vmul.f32 %v367, %v574
      %v590 = vmul.f32 %v368, %v574
      %v607 = vrot.slane %v575, 1
      %v608 = vrot.slane %v576, 1
      %v609 = vsel %vm429, %v607, %v608
      %v610 = vrot.slane %v577, 1
      %v611 = vrot.slane %v578, 1
      %v612 = vsel %vm429, %v610, %v611
      %v613 = vrot.slane %v579, 1
      %v614 = vrot.slane %v580, 1
      %v615 = vsel %vm429, %v613, %v614
      %v616 = vrot.slane %v581, 1
      %v617 = vrot.slane %v582, 1
      %v618 = vsel %vm429, %v616, %v617
      %v619 = vrot.slane %v583, 1
      %v620 = vrot.slane %v584, 1
      %v621 = vsel %vm429, %v619, %v620
      %v622 = vrot.slane %v585, 1
      %v623 = vrot.slane %v586, 1
      %v624 = vsel %vm429, %v622, %v623
      %v625 = vrot.slane %v587, 1
      %v626 = vrot.slane %v588, 1
      %v627 = vsel %vm429, %v625, %v626
      %v628 = vrot.slane %v589, 1
      %v629 = vrot.slane %v590, 1
      %v630 = vsel %vm429, %v628, %v629
      %v639 = vadd.f32 %v562, %v609
      %v640 = vadd.f32 %v563, %v612
      %v641 = vadd.f32 %v564, %v615
      %v642 = vadd.f32 %v565, %v618
      %v643 = vadd.f32 %v566, %v621
      %v644 = vadd.f32 %v567, %v624
      %v645 = vadd.f32 %v568, %v627
      %v646 = vadd.f32 %v569, %v630
      %v647 = vld [vmem:[%s548 + $0x2] sm:$0x1]
      %v648 = vlaneseq
      %v649 = vshrl.u32 %v648, 7
      %v650 = vsub.s32 0, %v649
      %v651 = vrot.slane %v647, %v650
      %v652 = vmul.f32 %v353, %v651
      %v653 = vmul.f32 %v354, %v651
      %v654 = vmul.f32 %v355, %v651
      %v655 = vmul.f32 %v356, %v651
      %v656 = vmul.f32 %v357, %v651
      %v657 = vmul.f32 %v358, %v651
      %v658 = vmul.f32 %v359, %v651
      %v659 = vmul.f32 %v360, %v651
      %v660 = vmul.f32 %v361, %v651
      %v661 = vmul.f32 %v362, %v651
      %v662 = vmul.f32 %v363, %v651
      %v663 = vmul.f32 %v364, %v651
      %v664 = vmul.f32 %v365, %v651
      %v665 = vmul.f32 %v366, %v651
      %v666 = vmul.f32 %v367, %v651
      %v667 = vmul.f32 %v368, %v651
      %v684 = vrot.slane %v652, 2
      %v685 = vrot.slane %v653, 2
      %v686 = vsel %vm507, %v684, %v685
      %v687 = vrot.slane %v654, 2
      %v688 = vrot.slane %v655, 2
      %v689 = vsel %vm507, %v687, %v688
      %v690 = vrot.slane %v656, 2
      %v691 = vrot.slane %v657, 2
      %v692 = vsel %vm507, %v690, %v691
      %v693 = vrot.slane %v658, 2
      %v694 = vrot.slane %v659, 2
      %v695 = vsel %vm507, %v693, %v694
      %v696 = vrot.slane %v660, 2
      %v697 = vrot.slane %v661, 2
      %v698 = vsel %vm507, %v696, %v697
      %v699 = vrot.slane %v662, 2
      %v700 = vrot.slane %v663, 2
      %v701 = vsel %vm507, %v699, %v700
      %v702 = vrot.slane %v664, 2
      %v703 = vrot.slane %v665, 2
      %v704 = vsel %vm507, %v702, %v703
      %v705 = vrot.slane %v666, 2
      %v706 = vrot.slane %v667, 2
      %v707 = vsel %vm507, %v705, %v706
      %v716 = vadd.f32 %v639, %v686
      %v717 = vadd.f32 %v640, %v689
      %v718 = vadd.f32 %v641, %v692
      %v719 = vadd.f32 %v642, %v695
      %v720 = vadd.f32 %v643, %v698
      %v721 = vadd.f32 %v644, %v701
      %v722 = vadd.f32 %v645, %v704
      %v723 = vadd.f32 %v646, %v707
      %s724 = scalar_lea.vmem %s1, 8
      %v725 = vld [vmem:[%s724] sm:$0x1]
      %v726 = vlaneseq
      %v727 = vshrl.u32 %v726, 7
      %v728 = vsub.s32 0, %v727
      %v729 = vrot.slane %v725, %v728
      %v730 = vmul.f32 %v355, %v729
      %v731 = vmul.f32 %v357, %v729
      %v732 = vmul.f32 %v359, %v729
      %v733 = vmul.f32 %v361, %v729
      %v734 = vmul.f32 %v363, %v729
      %v735 = vmul.f32 %v365, %v729
      %v736 = vmul.f32 %v367, %v729
      %v737 = vmul.f32 %v369, %v729
      %v738 = vadd.f32 %v716, %v730
      %v739 = vadd.f32 %v717, %v731
      %v740 = vadd.f32 %v718, %v732
      %v741 = vadd.f32 %v719, %v733
      %v742 = vadd.f32 %v720, %v734
      %v743 = vadd.f32 %v721, %v735
      %v744 = vadd.f32 %v722, %v736
      %v745 = vadd.f32 %v723, %v737
      %v746 = vld [vmem:[%s724 + $0x1] sm:$0x1]
      %v747 = vlaneseq
      %v748 = vshrl.u32 %v747, 7
      %v749 = vsub.s32 0, %v748
      %v750 = vrot.slane %v746, %v749
      %v751 = vmul.f32 %v355, %v750
      %v752 = vmul.f32 %v356, %v750
      %v753 = vmul.f32 %v357, %v750
      %v754 = vmul.f32 %v358, %v750
      %v755 = vmul.f32 %v359, %v750
      %v756 = vmul.f32 %v360, %v750
      %v757 = vmul.f32 %v361, %v750
      %v758 = vmul.f32 %v362, %v750
      %v759 = vmul.f32 %v363, %v750
      %v760 = vmul.f32 %v364, %v750
      %v761 = vmul.f32 %v365, %v750
      %v762 = vmul.f32 %v366, %v750
      %v763 = vmul.f32 %v367, %v750
      %v764 = vmul.f32 %v368, %v750
      %v765 = vmul.f32 %v369, %v750
      %v766 = vmul.f32 %v370, %v750
      %v783 = vrot.slane %v751, 1
      %v784 = vrot.slane %v752, 1
      %v785 = vsel %vm429, %v783, %v784
      %v786 = vrot.slane %v753, 1
      %v787 = vrot.slane %v754, 1
      %v788 = vsel %vm429, %v786, %v787
      %v789 = vrot.slane %v755, 1
      %v790 = vrot.slane %v756, 1
      %v791 = vsel %vm429, %v789, %v790
      %v792 = vrot.slane %v757, 1
      %v793 = vrot.slane %v758, 1
      %v794 = vsel %vm429, %v792, %v793
      %v795 = vrot.slane %v759, 1
      %v796 = vrot.slane %v760, 1
      %v797 = vsel %vm429, %v795, %v796
      %v798 = vrot.slane %v761, 1
      %v799 = vrot.slane %v762, 1
      %v800 = vsel %vm429, %v798, %v799
      %v801 = vrot.slane %v763, 1
      %v802 = vrot.slane %v764, 1
      %v803 = vsel %vm429, %v801, %v802
      %v804 = vrot.slane %v765, 1
      %v805 = vrot.slane %v766, 1
      %v806 = vsel %vm429, %v804, %v805
      %v815 = vadd.f32 %v738, %v785
      %v816 = vadd.f32 %v739, %v788
      %v817 = vadd.f32 %v740, %v791
      %v818 = vadd.f32 %v741, %v794
      %v819 = vadd.f32 %v742, %v797
      %v820 = vadd.f32 %v743, %v800
      %v821 = vadd.f32 %v744, %v803
      %v822 = vadd.f32 %v745, %v806
      %v823 = vld [vmem:[%s724 + $0x2] sm:$0x1]
      %v824 = vlaneseq
      %v825 = vshrl.u32 %v824, 7
      %v826 = vsub.s32 0, %v825
      %v827 = vrot.slane %v823, %v826
      %v828 = vmul.f32 %v355, %v827
      %v829 = vmul.f32 %v356, %v827
      %v830 = vmul.f32 %v357, %v827
      %v831 = vmul.f32 %v358, %v827
      %v832 = vmul.f32 %v359, %v827
      %v833 = vmul.f32 %v360, %v827
      %v834 = vmul.f32 %v361, %v827
      %v835 = vmul.f32 %v362, %v827
      %v836 = vmul.f32 %v363, %v827
      %v837 = vmul.f32 %v364, %v827
      %v838 = vmul.f32 %v365, %v827
      %v839 = vmul.f32 %v366, %v827
      %v840 = vmul.f32 %v367, %v827
      %v841 = vmul.f32 %v368, %v827
      %v842 = vmul.f32 %v369, %v827
      %v843 = vmul.f32 %v370, %v827
      %v860 = vrot.slane %v828, 2
      %v861 = vrot.slane %v829, 2
      %v862 = vsel %vm507, %v860, %v861
      %v863 = vrot.slane %v830, 2
      %v864 = vrot.slane %v831, 2
      %v865 = vsel %vm507, %v863, %v864
      %v866 = vrot.slane %v832, 2
      %v867 = vrot.slane %v833, 2
      %v868 = vsel %vm507, %v866, %v867
      %v869 = vrot.slane %v834, 2
      %v870 = vrot.slane %v835, 2
      %v871 = vsel %vm507, %v869, %v870
      %v872 = vrot.slane %v836, 2
      %v873 = vrot.slane %v837, 2
      %v874 = vsel %vm507, %v872, %v873
      %v875 = vrot.slane %v838, 2
      %v876 = vrot.slane %v839, 2
      %v877 = vsel %vm507, %v875, %v876
      %v878 = vrot.slane %v840, 2
      %v879 = vrot.slane %v841, 2
      %v880 = vsel %vm507, %v878, %v879
      %v881 = vrot.slane %v842, 2
      %v882 = vrot.slane %v843, 2
      %v883 = vsel %vm507, %v881, %v882
      %v892 = vadd.f32 %v815, %v862
      %v893 = vadd.f32 %v816, %v865
      %v894 = vadd.f32 %v817, %v868
      %v895 = vadd.f32 %v818, %v871
      %v896 = vadd.f32 %v819, %v874
      %v897 = vadd.f32 %v820, %v877
      %v898 = vadd.f32 %v821, %v880
      %v899 = vadd.f32 %v822, %v883
      %v900 = vld [vmem:[%s2] sm:$0x1]
      %v902 = vlaneseq
      %v903 = vshrl.u32 %v902, 7
      %v904 = vsub.s32 0, %v903
      %v905 = vrot.slane %v900, %v904
      %v907 = vmul.f32 %v892, %v905
      %v908 = vmul.f32 %v893, %v905
      %v909 = vmul.f32 %v894, %v905
      %v910 = vmul.f32 %v895, %v905
      %v911 = vmul.f32 %v896, %v905
      %v912 = vmul.f32 %v897, %v905
      %v913 = vmul.f32 %v898, %v905
      %v914 = vmul.f32 %v899, %v905
      %v915 = vld [vmem:[%s3] sm:$0x1]
      %v917 = vlaneseq
      %v918 = vshrl.u32 %v917, 7
      %v919 = vsub.s32 0, %v918
      %v920 = vrot.slane %v915, %v919
      %v922 = vadd.f32 %v907, %v920
      %v923 = vadd.f32 %v908, %v920
      %v924 = vadd.f32 %v909, %v920
      %v925 = vadd.f32 %v910, %v920
      %v926 = vadd.f32 %v911, %v920
      %v927 = vadd.f32 %v912, %v920
      %v928 = vadd.f32 %v913, %v920
      %v929 = vadd.f32 %v914, %v920
      %v930 = vxor.u32 %v922, 2147483648
      %v931 = vxor.u32 %v923, 2147483648
      %v932 = vxor.u32 %v924, 2147483648
      %v933 = vxor.u32 %v925, 2147483648
      %v934 = vxor.u32 %v926, 2147483648
      %v935 = vxor.u32 %v927, 2147483648
      %v936 = vxor.u32 %v928, 2147483648
      %v937 = vxor.u32 %v929, 2147483648
      %v938 = vmul.f32 %v930, 1.442695
      %v939 = vpow.pop %v938
      %v940 = vmul.f32 %v931, 1.442695
      %v941 = vpow.pop %v940
      %v942 = vmul.f32 %v932, 1.442695
      %v943 = vpow.pop %v942
      %v944 = vmul.f32 %v933, 1.442695
      %v945 = vpow.pop %v944
      %v946 = vmul.f32 %v934, 1.442695
      %v947 = vpow.pop %v946
      %v948 = vmul.f32 %v935, 1.442695
      %v949 = vpow.pop %v948
      %v950 = vmul.f32 %v936, 1.442695
      %v951 = vpow.pop %v950
      %v952 = vmul.f32 %v937, 1.442695
      %v953 = vpow.pop %v952
      %v954 = vadd.f32 %v939, 1.0
      %v955 = vadd.f32 %v941, 1.0
      %v956 = vadd.f32 %v943, 1.0
      %v957 = vadd.f32 %v945, 1.0
      %v958 = vadd.f32 %v947, 1.0
      %v959 = vadd.f32 %v949, 1.0
      %v960 = vadd.f32 %v951, 1.0
      %v961 = vadd.f32 %v953, 1.0
      %v962 = vrcp.pop %v954
      %v963 = vmul.f32 1.0, %v962
      %v964 = vrcp.pop %v955
      %v965 = vmul.f32 1.0, %v964
      %v966 = vrcp.pop %v956
      %v967 = vmul.f32 1.0, %v966
      %v968 = vrcp.pop %v957
      %v969 = vmul.f32 1.0, %v968
      %v970 = vrcp.pop %v958
      %v971 = vmul.f32 1.0, %v970
      %v972 = vrcp.pop %v959
      %v973 = vmul.f32 1.0, %v972
      %v974 = vrcp.pop %v960
      %v975 = vmul.f32 1.0, %v974
      %v976 = vrcp.pop %v961
      %v977 = vmul.f32 1.0, %v976
      %v978 = vmul.f32 %v922, %v963
      %v979 = vmul.f32 %v923, %v965
      %v980 = vmul.f32 %v924, %v967
      %v981 = vmul.f32 %v925, %v969
      %v982 = vmul.f32 %v926, %v971
      %v983 = vmul.f32 %v927, %v973
      %v984 = vmul.f32 %v928, %v975
      %v985 = vmul.f32 %v929, %v977
      %v986 = vpack.c.bf16 %v978, %v978
      %v987 = vpack.c.bf16 %v979, %v979
      %v988 = vpack.c.bf16 %v980, %v980
      %v989 = vpack.c.bf16 %v981, %v981
      %v990 = vpack.c.bf16 %v982, %v982
      %v991 = vpack.c.bf16 %v983, %v983
      %v992 = vpack.c.bf16 %v984, %v984
      %v993 = vpack.c.bf16 %v985, %v985
      %994 = vst [vmem:[%s330] sm:$0xf] %v986
      %995 = vst [vmem:[%s330 + $0x4] sm:$0xf] %v987
      %996 = vst [vmem:[%s330 + $0x8] sm:$0xf] %v988
      %997 = vst [vmem:[%s330 + $0xc] sm:$0xf] %v989
      %998 = vst [vmem:[%s330 + $0x10] sm:$0xf] %v990
      %999 = vst [vmem:[%s330 + $0x14] sm:$0xf] %v991
      %1000 = vst [vmem:[%s330 + $0x18] sm:$0xf] %v992
      %1001 = vst [vmem:[%s330 + $0x1c] sm:$0xf] %v993
      %v1002 = vadd.f32 %v978, %v979
      %v1003 = vadd.f32 %v1002, %v980
      %v1004 = vadd.f32 %v1003, %v981
      %v1005 = vadd.f32 %v1004, %v982
      %v1006 = vadd.f32 %v1005, %v983
      %v1007 = vadd.f32 %v1006, %v984
      %v1008 = vadd.f32 %v1007, %v985
      %v1009 = vrot.slane %v1008, 4
      %v1010 = vadd.f32 %v1008, %v1009
      %v1011 = vrot.slane %v1010, 2
      %v1012 = vadd.f32 %v1010, %v1011
      %v1013 = vrot.slane %v1012, 1
      %v1014 = vadd.f32 %v1012, %v1013
      %v1015 = vmul.f32 %v1014, 0.015625
      %v1016 = vld [vmem:[%s4] sm:$0xff]
      %v1017 = vld [vmem:[%s4 + $0x8] sm:$0xff]
      %v1018 = vld [vmem:[%s4 + $0x10] sm:$0xff]
      %v1019 = vld [vmem:[%s4 + $0x18] sm:$0xff]
      %v1020 = vld [vmem:[%s4 + $0x20] sm:$0xff]
      %v1021 = vld [vmem:[%s4 + $0x28] sm:$0xff]
      %v1022 = vld [vmem:[%s4 + $0x30] sm:$0xff]
      %v1023 = vld [vmem:[%s4 + $0x38] sm:$0xff]
      %v1024 = vld [vmem:[%s4 + $0x40] sm:$0xff]
      %v1025 = vld [vmem:[%s4 + $0x48] sm:$0xff]
      %v1026 = vld [vmem:[%s4 + $0x50] sm:$0xff]
      %v1027 = vld [vmem:[%s4 + $0x58] sm:$0xff]
      %v1028 = vld [vmem:[%s4 + $0x60] sm:$0xff]
      %v1029 = vld [vmem:[%s4 + $0x68] sm:$0xff]
      %v1030 = vld [vmem:[%s4 + $0x70] sm:$0xff]
      %v1031 = vld [vmem:[%s4 + $0x78] sm:$0xff]
      %v1032 = vld [vmem:[%s5] sm:$0x1]
      %1033 = vmatprep.subr.mxu0 0.0
      %1034 = vmatpush1.msra.mxu0 %v1016
      %1035 = vmatprep.subr.mxu0 0.0
      %1036 = vmatpush1.msra.mxu0 %v1017
      %1037 = vmatprep.subr.mxu0 0.0
      %1038 = vmatpush1.msra.mxu0 %v1018
      %1039 = vmatprep.subr.mxu0 0.0
      %1040 = vmatpush1.msra.mxu0 %v1019
      %1041 = vmatprep.subr.mxu0 0.0
      %1042 = vmatpush1.msra.mxu0 %v1020
      %1043 = vmatprep.subr.mxu0 0.0
      %1044 = vmatpush1.msra.mxu0 %v1021
      %1045 = vmatprep.subr.mxu0 0.0
      %1046 = vmatpush1.msra.mxu0 %v1022
      %1047 = vmatprep.subr.mxu0 0.0
      %1048 = vmatpush1.msra.mxu0 %v1023
      %1049 = vmatprep.subr.mxu0 0.0
      %1050 = vmatpush1.msra.mxu0 %v1024
      %1051 = vmatprep.subr.mxu0 0.0
      %1052 = vmatpush1.msra.mxu0 %v1025
      %1053 = vmatprep.subr.mxu0 0.0
      %1054 = vmatpush1.msra.mxu0 %v1026
      %1055 = vmatprep.subr.mxu0 0.0
      %1056 = vmatpush1.msra.mxu0 %v1027
      %1057 = vmatprep.subr.mxu0 0.0
      %1058 = vmatpush1.msra.mxu0 %v1028
      %1059 = vmatprep.subr.mxu0 0.0
      %1060 = vmatpush1.msra.mxu0 %v1029
      %1061 = vmatprep.subr.mxu0 0.0
      %1062 = vmatpush1.msra.mxu0 %v1030
      %1063 = vmatprep.subr.mxu0 0.0
      %1064 = vmatpush1.msra.mxu0 %v1031
      %1065 = vmatprep.subr.mxu0 0.0
      %1066 = vmatpush1.msra.mxu0 0.0
      %1067 = vmatprep.subr.mxu0 0.0
      %1068 = vmatpush1.msra.mxu0 0.0
      %1069 = vmatprep.subr.mxu0 0.0
      %1070 = vmatpush1.msra.mxu0 0.0
      %1071 = vmatprep.subr.mxu0 0.0
      %1072 = vmatpush1.msra.mxu0 0.0
      %1073 = vmatprep.subr.mxu0 0.0
      %1074 = vmatpush1.msra.mxu0 0.0
      %1075 = vmatprep.subr.mxu0 0.0
      %1076 = vmatpush1.msra.mxu0 0.0
      %1077 = vmatprep.subr.mxu0 0.0
      %1078 = vmatpush1.msra.mxu0 0.0
      %1079 = vmatprep.subr.mxu0 0.0
      %1080 = vmatpush1.msra.mxu0 0.0
      %1081 = vmatprep.subr.mxu0 0.0
      %1082 = vmatpush1.msra.mxu0 0.0
      %1083 = vmatprep.subr.mxu0 0.0
      %1084 = vmatpush1.msra.mxu0 0.0
      %1085 = vmatprep.subr.mxu0 0.0
      %1086 = vmatpush1.msra.mxu0 0.0
      %1087 = vmatprep.subr.mxu0 0.0
      %1088 = vmatpush1.msra.mxu0 0.0
      %1089 = vmatprep.subr.mxu0 0.0
      %1090 = vmatpush1.msra.mxu0 0.0
      %1091 = vmatprep.subr.mxu0 0.0
      %1092 = vmatpush1.msra.mxu0 0.0
      %1093 = vmatprep.subr.mxu0 0.0
      %1094 = vmatpush1.msra.mxu0 0.0
      %1095 = vmatprep.subr.mxu0 0.0
      %1096 = vmatpush1.msra.mxu0 0.0
      %1097 = vmatprep.mubr.f32.mxu0 0.0
      %1098 = vmatmul.mubr.f32.gmra.mrb[0].mxu0 %v1015
      %v1099 = vpop.f32.mrb[0].mxu0
      %v1100 = vadd.f32 %v1032, %v1099
      %v1101 = vpop.f32.mrb[0].mxu0
      %1102 = vdwg.mxu0
      %v1103 = vxor.u32 %v1100, 2147483648
      %v1104 = vmul.f32 %v1103, 1.442695
      %v1105 = vpow.pop %v1104
      %v1106 = vadd.f32 %v1105, 1.0
      %v1107 = vrcp.pop %v1106
      %v1108 = vmul.f32 1.0, %v1107
      %v1109 = vmul.f32 %v1100, %v1108
      %v1110 = vld [vmem:[%s6] sm:$0xff]
      %v1111 = vld [vmem:[%s6 + $0x8] sm:$0xff]
      %v1112 = vld [vmem:[%s6 + $0x10] sm:$0xff]
      %v1113 = vld [vmem:[%s6 + $0x18] sm:$0xff]
      %v1114 = vld [vmem:[%s6 + $0x20] sm:$0xff]
      %v1115 = vld [vmem:[%s6 + $0x28] sm:$0xff]
      %v1116 = vld [vmem:[%s6 + $0x30] sm:$0xff]
      %v1117 = vld [vmem:[%s6 + $0x38] sm:$0xff]
      %v1118 = vld [vmem:[%s6 + $0x40] sm:$0xff]
      %v1119 = vld [vmem:[%s6 + $0x48] sm:$0xff]
      %v1120 = vld [vmem:[%s6 + $0x50] sm:$0xff]
      %v1121 = vld [vmem:[%s6 + $0x58] sm:$0xff]
      %v1122 = vld [vmem:[%s6 + $0x60] sm:$0xff]
      %v1123 = vld [vmem:[%s6 + $0x68] sm:$0xff]
      %v1124 = vld [vmem:[%s6 + $0x70] sm:$0xff]
      %v1125 = vld [vmem:[%s6 + $0x78] sm:$0xff]
      %v1126 = vld [vmem:[%s7] sm:$0x1]
      %1127 = vmatprep.subr.mxu0 0.0
      %1128 = vmatpush1.msra.mxu0 %v1110
      %1129 = vmatprep.subr.mxu0 0.0
      %1130 = vmatpush1.msra.mxu0 %v1111
      %1131 = vmatprep.subr.mxu0 0.0
      %1132 = vmatpush1.msra.mxu0 %v1112
      %1133 = vmatprep.subr.mxu0 0.0
      %1134 = vmatpush1.msra.mxu0 %v1113
      %1135 = vmatprep.subr.mxu0 0.0
      %1136 = vmatpush1.msra.mxu0 %v1114
      %1137 = vmatprep.subr.mxu0 0.0
      %1138 = vmatpush1.msra.mxu0 %v1115
      %1139 = vmatprep.subr.mxu0 0.0
      %1140 = vmatpush1.msra.mxu0 %v1116
      %1141 = vmatprep.subr.mxu0 0.0
      %1142 = vmatpush1.msra.mxu0 %v1117
      %1143 = vmatprep.subr.mxu0 0.0
      %1144 = vmatpush1.msra.mxu0 %v1118
      %1145 = vmatprep.subr.mxu0 0.0
      %1146 = vmatpush1.msra.mxu0 %v1119
      %1147 = vmatprep.subr.mxu0 0.0
      %1148 = vmatpush1.msra.mxu0 %v1120
      %1149 = vmatprep.subr.mxu0 0.0
      %1150 = vmatpush1.msra.mxu0 %v1121
      %1151 = vmatprep.subr.mxu0 0.0
      %1152 = vmatpush1.msra.mxu0 %v1122
      %1153 = vmatprep.subr.mxu0 0.0
      %1154 = vmatpush1.msra.mxu0 %v1123
      %1155 = vmatprep.subr.mxu0 0.0
      %1156 = vmatpush1.msra.mxu0 %v1124
      %1157 = vmatprep.subr.mxu0 0.0
      %1158 = vmatpush1.msra.mxu0 %v1125
      %1159 = vmatprep.subr.mxu0 0.0
      %1160 = vmatpush1.msra.mxu0 0.0
      %1161 = vmatprep.subr.mxu0 0.0
      %1162 = vmatpush1.msra.mxu0 0.0
      %1163 = vmatprep.subr.mxu0 0.0
      %1164 = vmatpush1.msra.mxu0 0.0
      %1165 = vmatprep.subr.mxu0 0.0
      %1166 = vmatpush1.msra.mxu0 0.0
      %1167 = vmatprep.subr.mxu0 0.0
      %1168 = vmatpush1.msra.mxu0 0.0
      %1169 = vmatprep.subr.mxu0 0.0
      %1170 = vmatpush1.msra.mxu0 0.0
      %1171 = vmatprep.subr.mxu0 0.0
      %1172 = vmatpush1.msra.mxu0 0.0
      %1173 = vmatprep.subr.mxu0 0.0
      %1174 = vmatpush1.msra.mxu0 0.0
      %1175 = vmatprep.subr.mxu0 0.0
      %1176 = vmatpush1.msra.mxu0 0.0
      %1177 = vmatprep.subr.mxu0 0.0
      %1178 = vmatpush1.msra.mxu0 0.0
      %1179 = vmatprep.subr.mxu0 0.0
      %1180 = vmatpush1.msra.mxu0 0.0
      %1181 = vmatprep.subr.mxu0 0.0
      %1182 = vmatpush1.msra.mxu0 0.0
      %1183 = vmatprep.subr.mxu0 0.0
      %1184 = vmatpush1.msra.mxu0 0.0
      %1185 = vmatprep.subr.mxu0 0.0
      %1186 = vmatpush1.msra.mxu0 0.0
      %1187 = vmatprep.subr.mxu0 0.0
      %1188 = vmatpush1.msra.mxu0 0.0
      %1189 = vmatprep.subr.mxu0 0.0
      %1190 = vmatpush1.msra.mxu0 0.0
      %1191 = vmatprep.mubr.f32.mxu0 0.0
      %1192 = vmatmul.mubr.f32.gmra.mrb[0].mxu0 %v1109
      %v1193 = vpop.f32.mrb[0].mxu0
      %v1194 = vadd.f32 %v1126, %v1193
      %v1195 = vpop.f32.mrb[0].mxu0
      %1196 = vdwg.mxu0
      %v1197 = vxor.u32 %v1194, 2147483648
      %v1198 = vmul.f32 %v1197, 1.442695
      %v1199 = vpow.pop %v1198
      %v1200 = vadd.f32 %v1199, 1.0
      %v1201 = vrcp.pop %v1200
      %v1202 = vmul.f32 1.0, %v1201
      %s1203 = scalar_lea.vmem %s9, %s21
      %1204 = vst [vmem:[%s1203] sm:$0x1] %v1202
      %p1205 = scmp.lt.s32.totalorder %s21, 1
      %s1206 = scalar_select %p1205, %s21, 1
      %s1207 = smul.addr %s1206, 8
      %s1208 = smul.addr %s1207, 4
      %s1209 = scalar_lea.vmem %s8, %s1208
      // Predicated region
      $region53: #{effnet_forward.7} parent=51 // pred_check
        %p1210 = pneg %p212
      $region54: #{effnet_forward.7} parent=51 // pred_check_branch
        %1212 = sbr.rel (%p1210) target = $region56
      $region55: #{effnet_forward.7} parent=51 // pred_region
        _
      $region56: #{effnet_forward.7} parent=51 // pred_fallthru
        _
      // Predicated region
      $region57: #{effnet_forward.7} parent=51 // pred_check
        %p1213 = pneg %p233
      $region58: #{effnet_forward.7} parent=51 // pred_check_branch
        %1215 = sbr.rel (%p1213) target = $region60
      $region59: #{effnet_forward.7} parent=51 // pred_region
        _
      $region60: #{effnet_forward.7} parent=51 // pred_fallthru
        _
      // Predicated region
      $region61: #{effnet_forward.7} parent=51 // pred_check
        %p1216 = pneg %p233
      $region62: #{effnet_forward.7} parent=51 // pred_check_branch
        %1218 = sbr.rel (%p1216) target = $region64
      $region63: #{effnet_forward.7} parent=51 // pred_region
        _
      $region64: #{effnet_forward.7} parent=51 // pred_fallthru
        _
    $region52: #{effnet_forward.7} parent=5 // pred_fallthru
      _
    %p1219 = scmp.le.s32.totalorder 2, %s16
    // Predicated region
    $region65: #{effnet_forward.7} parent=5 // pred_check
      %p1220 = pneg %p1219
    $region66: #{effnet_forward.7} parent=5 // pred_check_branch
      %1222 = sbr.rel (%p1220) target = $region68
    $region67: #{effnet_forward.7} parent=5 // pred_region
      %s1223 = ssub.s32 %s16, 2
      // Predicated region
      $region69: #{effnet_forward.7} parent=67 // pred_check
        %p1224 = pneg %p218
      $region70: #{effnet_forward.7} parent=67 // pred_check_branch
        %1226 = sbr.rel (%p1224) target = $region72
      $region71: #{effnet_forward.7} parent=67 // pred_region
        %p1227 = scmp.lt.s32.totalorder %s22, 1
        %s1228 = scalar_select %p1227, %s22, 1
        %s1229 = smul.addr %s1228, 8
        %s1230 = smul.addr %s1229, 4
        %s1231 = scalar_lea.vmem %s8, %s1230
      $region72: #{effnet_forward.7} parent=67 // pred_fallthru
        _
    $region68: #{effnet_forward.7} parent=5 // pred_fallthru
      _
  $region6: #{effnet_forward.7} parent=0 // loop_footer
    %s20 = sadd.s32 1, %s16
  $region7: #{effnet_forward.7} parent=0 // loop_footer_branch
    %15 = sbr.rel target = $region3
  $region8: #{effnet_forward.7} parent=0 // loop_exit
    _

// kernel: effnet_forward.8
$region0: #{effnet_forward.8}
  #allocation0 [shape = 'u32[]', space=smem, size = 0x4, offset = 0x4, fixed_abs, tag = 'smem constant byte address 0x4 - core index']
  #allocation1 [shape = 'u32[144,128]{1,0:T(1,128)}', space=vmem, size = 0x12000, scoped, tag = 'internal scratch']
  %s0 = inlined_call_operand.vmem [shape: bf16[2,64,128], index: 0, kind: input, shape index: {}]
  %s1 = inlined_call_operand.vmem [shape: f32[2,128], index: 1, kind: input, shape index: {}]
  %s2 = inlined_call_operand.vmem [shape: bf16[128,128], index: 2, kind: input, shape index: {}]
  %s3 = inlined_call_operand.vmem [shape: f32[1,128], index: 3, kind: input, shape index: {}]
  %s4 = inlined_call_operand.vmem [shape: f32[1,128], index: 4, kind: input, shape index: {}]
  %s5 = inlined_call_operand.vmem [shape: bf16[2,64,128], index: 5, kind: input, shape index: {}]
  %s6 = inlined_call_operand.vmem [shape: bf16[2,64,128], index: 6, kind: output, shape index: {}]
  %s7 = sld [smem:[#allocation0]]
  $region57: #{effnet_forward.8} parent=0
    _
  %s9 = ssub.s32 1, %s7
  %s10 = scalar_select 0, %s9, %s7
  loop: start=0, step=1, limit=4
  $region2: #{effnet_forward.8} parent=0 // loop_pre_header
    _
  $region3: #{effnet_forward.8} parent=0 // loop_header
    %s12 = sphi 0, %s16
    %p13 = scmp.ge.s32.totalorder %s12, 4
    %s19 = sphi 0, %s31
    %s20 = sphi 0, %s27
    %s21 = sphi 0, %s19
    %s22 = sphi 0, %s20
    %s23 = sphi 0, %s21
    %s24 = sphi 0, %s22
    %s36 = sphi 0, %s38
    %s39 = sphi 0, %s36
    %s40 = sphi 0, %s39
    %s56 = sphi 0, %s40
    %s60 = sphi 0, %s60
    %s62 = sphi 0, %s60
    %s63 = sphi 0, %s62
    %s77 = sphi 0, %s63
    %s81 = sphi 0, %s81
    %s83 = sphi 0, %s81
    %s84 = sphi 0, %s83
    %s98 = sphi 0, %s84
    %s102 = sphi 0, %s102
    %s104 = sphi 0, %s102
    %s105 = sphi 0, %s104
    %s119 = sphi 0, %s105
    %s123 = sphi 0, %s123
    %s125 = sphi 0, %s123
    %s126 = sphi 0, %s125
    %s140 = sphi 0, %s126
    %s148 = sphi 0, %s150
    %s151 = sphi 0, %s148
    %s152 = sphi 0, %s151
    %s168 = sphi 0, %s152
    %s176 = sphi 0, %s178
    %s179 = sphi 0, %s176
    %s180 = sphi 0, %s179
    %s196 = sphi 0, %s180
  $region4: #{effnet_forward.8} parent=0 // loop_header_branch
    %15 = sbr.rel (%p13) target = $region8
  $region5: #{effnet_forward.8} parent=0 // loop_body
    %s17 = ssub.s32 %s12, 1
    %s18 = ssub.s32 %s12, 2
    %s25 = sadd.s32 1, %s20
    %p26 = scmp.ge.s32.totalorder %s25, 1
    %s27 = scalar_select %p26, 0, %s25
    %s28 = sadd.s32 1, %s19
    %s29 = scalar_select %p26, %s28, %s19
    %p30 = scmp.ge.s32.totalorder %s29, 2
    %s31 = scalar_select %p30, 0, %s29
    %s32 = ssub.s32 %s19, %s31
    %s33 = ssub.s32 %s20, %s27
    %s34 = sor.u32 %s32, %s33
    %p35 = scmp.eq.s32.totalorder %s34, 0
    %s37 = sadd.s32 %s36, 1
    %s38 = scalar_select %p35, %s36, %s37
    %p41 = pneg %p35
    %p42 = scmp.eq.s32.totalorder %s12, 1
    %p43 = por %p41, %p42
    %p44 = scmp.ne.s32.totalorder %s36, %s39
    %p45 = scmp.eq.s32.totalorder %s12, 0
    %p46 = por %p44, %p45
    %p47 = scmp.ne.s32.totalorder %s36, %s39
    %p48 = scmp.eq.s32.totalorder %s17, 1
    %p49 = por %p47, %p48
    %p50 = scmp.ne.s32.totalorder %s39, %s40
    %p51 = scmp.eq.s32.totalorder %s17, 0
    %p52 = por %p50, %p51
    %p53 = scmp.ne.s32.totalorder %s39, %s40
    %p54 = scmp.eq.s32.totalorder %s18, 1
    %p55 = por %p53, %p54
    %p57 = scmp.ne.s32.totalorder %s40, %s56
    %p58 = scmp.eq.s32.totalorder %s18, 0
    %p59 = por %p57, %p58
    %s61 = sadd.s32 %s60, 1
    %p64 = scmp.eq.s32.totalorder %s12, 1
    %p65 = scmp.ne.s32.totalorder %s60, %s62
    %p66 = scmp.eq.s32.totalorder %s12, 0
    %p67 = por %p65, %p66
    %p68 = scmp.ne.s32.totalorder %s60, %s62
    %p69 = scmp.eq.s32.totalorder %s17, 1
    %p70 = por %p68, %p69
    %p71 = scmp.ne.s32.totalorder %s62, %s63
    %p72 = scmp.eq.s32.totalorder %s17, 0
    %p73 = por %p71, %p72
    %p74 = scmp.ne.s32.totalorder %s62, %s63
    %p75 = scmp.eq.s32.totalorder %s18, 1
    %p76 = por %p74, %p75
    %p78 = scmp.ne.s32.totalorder %s63, %s77
    %p79 = scmp.eq.s32.totalorder %s18, 0
    %p80 = por %p78, %p79
    %s82 = sadd.s32 %s81, 1
    %p85 = scmp.eq.s32.totalorder %s12, 1
    %p86 = scmp.ne.s32.totalorder %s81, %s83
    %p87 = scmp.eq.s32.totalorder %s12, 0
    %p88 = por %p86, %p87
    %p89 = scmp.ne.s32.totalorder %s81, %s83
    %p90 = scmp.eq.s32.totalorder %s17, 1
    %p91 = por %p89, %p90
    %p92 = scmp.ne.s32.totalorder %s83, %s84
    %p93 = scmp.eq.s32.totalorder %s17, 0
    %p94 = por %p92, %p93
    %p95 = scmp.ne.s32.totalorder %s83, %s84
    %p96 = scmp.eq.s32.totalorder %s18, 1
    %p97 = por %p95, %p96
    %p99 = scmp.ne.s32.totalorder %s84, %s98
    %p100 = scmp.eq.s32.totalorder %s18, 0
    %p101 = por %p99, %p100
    %s103 = sadd.s32 %s102, 1
    %p106 = scmp.eq.s32.totalorder %s12, 1
    %p107 = scmp.ne.s32.totalorder %s102, %s104
    %p108 = scmp.eq.s32.totalorder %s12, 0
    %p109 = por %p107, %p108
    %p110 = scmp.ne.s32.totalorder %s102, %s104
    %p111 = scmp.eq.s32.totalorder %s17, 1
    %p112 = por %p110, %p111
    %p113 = scmp.ne.s32.totalorder %s104, %s105
    %p114 = scmp.eq.s32.totalorder %s17, 0
    %p115 = por %p113, %p114
    %p116 = scmp.ne.s32.totalorder %s104, %s105
    %p117 = scmp.eq.s32.totalorder %s18, 1
    %p118 = por %p116, %p117
    %p120 = scmp.ne.s32.totalorder %s105, %s119
    %p121 = scmp.eq.s32.totalorder %s18, 0
    %p122 = por %p120, %p121
    %s124 = sadd.s32 %s123, 1
    %p127 = scmp.eq.s32.totalorder %s12, 1
    %p128 = scmp.ne.s32.totalorder %s123, %s125
    %p129 = scmp.eq.s32.totalorder %s12, 0
    %p130 = por %p128, %p129
    %p131 = scmp.ne.s32.totalorder %s123, %s125
    %p132 = scmp.eq.s32.totalorder %s17, 1
    %p133 = por %p131, %p132
    %p134 = scmp.ne.s32.totalorder %s125, %s126
    %p135 = scmp.eq.s32.totalorder %s17, 0
    %p136 = por %p134, %p135
    %p137 = scmp.ne.s32.totalorder %s125, %s126
    %p138 = scmp.eq.s32.totalorder %s18, 1
    %p139 = por %p137, %p138
    %p141 = scmp.ne.s32.totalorder %s126, %s140
    %p142 = scmp.eq.s32.totalorder %s18, 0
    %p143 = por %p141, %p142
    %s144 = ssub.s32 %s19, %s31
    %s145 = ssub.s32 %s20, %s27
    %s146 = sor.u32 %s144, %s145
    %p147 = scmp.eq.s32.totalorder %s146, 0
    %s149 = sadd.s32 %s148, 1
    %s150 = scalar_select %p147, %s148, %s149
    %p153 = pneg %p147
    %p154 = scmp.eq.s32.totalorder %s12, 1
    %p155 = por %p153, %p154
    %p156 = scmp.ne.s32.totalorder %s148, %s151
    %p157 = scmp.eq.s32.totalorder %s12, 0
    %p158 = por %p156, %p157
    %p159 = scmp.ne.s32.totalorder %s148, %s151
    %p160 = scmp.eq.s32.totalorder %s17, 1
    %p161 = por %p159, %p160
    %p162 = scmp.ne.s32.totalorder %s151, %s152
    %p163 = scmp.eq.s32.totalorder %s17, 0
    %p164 = por %p162, %p163
    %p165 = scmp.ne.s32.totalorder %s151, %s152
    %p166 = scmp.eq.s32.totalorder %s18, 1
    %p167 = por %p165, %p166
    %p169 = scmp.ne.s32.totalorder %s152, %s168
    %p170 = scmp.eq.s32.totalorder %s18, 0
    %p171 = por %p169, %p170
    %s172 = ssub.s32 %s19, %s31
    %s173 = ssub.s32 %s20, %s27
    %s174 = sor.u32 %s172, %s173
    %p175 = scmp.eq.s32.totalorder %s174, 0
    %s177 = sadd.s32 %s176, 1
    %s178 = scalar_select %p175, %s176, %s177
    %p181 = pneg %p175
    %p182 = scmp.eq.s32.totalorder %s12, 1
    %p183 = por %p181, %p182
    %p184 = scmp.ne.s32.totalorder %s176, %s179
    %p185 = scmp.eq.s32.totalorder %s12, 0
    %p186 = por %p184, %p185
    %p187 = scmp.ne.s32.totalorder %s176, %s179
    %p188 = scmp.eq.s32.totalorder %s17, 1
    %p189 = por %p187, %p188
    %p190 = scmp.ne.s32.totalorder %s179, %s180
    %p191 = scmp.eq.s32.totalorder %s17, 0
    %p192 = por %p190, %p191
    %p193 = scmp.ne.s32.totalorder %s179, %s180
    %p194 = scmp.eq.s32.totalorder %s18, 1
    %p195 = por %p193, %p194
    %p197 = scmp.ne.s32.totalorder %s180, %s196
    %p198 = scmp.eq.s32.totalorder %s18, 0
    %p199 = por %p197, %p198
    %p200 = scmp.le.s32.totalorder 1, %s12
    %p201 = scmp.lt.s32.totalorder %s12, 3
    %p202 = pnand %p200, %p201
    %p203 = pneg %p202
    // Predicated region
    $region9: #{effnet_forward.8} parent=5 // pred_check
      _
    $region10: #{effnet_forward.8} parent=5 // pred_check_branch
      %205 = sbr.rel (%p202) target = $region12
    $region11: #{effnet_forward.8} parent=5 // pred_region
      %s206 = ssub.s32 %s12, 1
      // Predicated region
      $region13: #{effnet_forward.8} parent=11 // pred_check
        %p207 = pneg %p73
      $region14: #{effnet_forward.8} parent=11 // pred_check_branch
        %209 = sbr.rel (%p207) target = $region16
      $region15: #{effnet_forward.8} parent=11 // pred_region
        _
      $region16: #{effnet_forward.8} parent=11 // pred_fallthru
        _
      // Predicated region
      $region17: #{effnet_forward.8} parent=11 // pred_check
        %p210 = pneg %p94
      $region18: #{effnet_forward.8} parent=11 // pred_check_branch
        %212 = sbr.rel (%p210) target = $region20
      $region19: #{effnet_forward.8} parent=11 // pred_region
        _
      $region20: #{effnet_forward.8} parent=11 // pred_fallthru
        _
      // Predicated region
      $region21: #{effnet_forward.8} parent=11 // pred_check
        %p213 = pneg %p115
      $region22: #{effnet_forward.8} parent=11 // pred_check_branch
        %215 = sbr.rel (%p213) target = $region24
      $region23: #{effnet_forward.8} parent=11 // pred_region
        _
      $region24: #{effnet_forward.8} parent=11 // pred_fallthru
        _
      // Predicated region
      $region25: #{effnet_forward.8} parent=11 // pred_check
        %p216 = pneg %p136
      $region26: #{effnet_forward.8} parent=11 // pred_check_branch
        %218 = sbr.rel (%p216) target = $region28
      $region27: #{effnet_forward.8} parent=11 // pred_region
        _
      $region28: #{effnet_forward.8} parent=11 // pred_fallthru
        _
    $region12: #{effnet_forward.8} parent=5 // pred_fallthru
      _
    %p219 = scmp.lt.s32.totalorder %s12, 2
    // Predicated region
    $region29: #{effnet_forward.8} parent=5 // pred_check
      %p220 = pneg %p219
    $region30: #{effnet_forward.8} parent=5 // pred_check_branch
      %222 = sbr.rel (%p220) target = $region32
    $region31: #{effnet_forward.8} parent=5 // pred_region
      // Predicated region
      $region33: #{effnet_forward.8} parent=31 // pred_check
        %p223 = pneg %p46
      $region34: #{effnet_forward.8} parent=31 // pred_check_branch
        %225 = sbr.rel (%p223) target = $region36
      $region35: #{effnet_forward.8} parent=31 // pred_region
        %s226 = smul.u32 8, %s20
        %p227 = scmp.lt.s32.totalorder %s19, 1
        %s228 = scalar_select %p227, %s19, 1
        %p229 = scmp.lt.s32.totalorder %s226, 7
        %s230 = scalar_select %p229, %s226, 7
        %s231 = smul.addr %s228, 8
        %s232 = sadd.s32 %s230, %s231
        %s233 = smul.addr %s232, 4
        %s234 = scalar_lea.vmem %s0, %s233
        %s235 = smul.u32 8, %s20
      $region36: #{effnet_forward.8} parent=31 // pred_fallthru
        _
      // Predicated region
      $region37: #{effnet_forward.8} parent=31 // pred_check
        %p236 = pneg %p158
      $region38: #{effnet_forward.8} parent=31 // pred_check_branch
        %238 = sbr.rel (%p236) target = $region40
      $region39: #{effnet_forward.8} parent=31 // pred_region
        %s239 = smul.u32 8, %s20
        %p240 = scmp.lt.s32.totalorder %s19, 1
        %s241 = scalar_select %p240, %s19, 1
        %p242 = scmp.lt.s32.totalorder %s239, 7
        %s243 = scalar_select %p242, %s239, 7
        %s244 = smul.addr %s241, 8
        %s245 = sadd.s32 %s243, %s244
        %s246 = smul.addr %s245, 4
        %s247 = scalar_lea.vmem %s5, %s246
        %s248 = smul.u32 8, %s20
      $region40: #{effnet_forward.8} parent=31 // pred_fallthru
        _
    $region32: #{effnet_forward.8} parent=5 // pred_fallthru
      _
    %p249 = scmp.le.s32.totalorder 1, %s12
    %p250 = scmp.lt.s32.totalorder %s12, 3
    %p251 = pnand %p249, %p250
    %p252 = pneg %p251
    // Predicated region
    $region41: #{effnet_forward.8} parent=5 // pred_check
      _
    $region42: #{effnet_forward.8} parent=5 // pred_check_branch
      %254 = sbr.rel (%p251) target = $region44
    $region43: #{effnet_forward.8} parent=5 // pred_region
      %s255 = ssub.s32 %s12, 1
      %s256 = smul.u32 8, %s22
      %p257 = scmp.lt.s32.totalorder %s21, 1
      %s258 = scalar_select %p257, %s21, 1
      %p259 = scmp.lt.s32.totalorder %s256, 7
      %s260 = scalar_select %p259, %s256, 7
      %s261 = smul.addr %s258, 8
      %s262 = sadd.s32 %s260, %s261
      %s263 = smul.addr %s262, 4
      %s264 = scalar_lea.vmem %s0, %s263
      %p265 = pneg %p52
      %p266 = pneg %p49
      %p267 = pneg %p73
      %p268 = pneg %p70
      %p269 = pneg %p94
      %p270 = pneg %p91
      %p271 = pneg %p115
      %p272 = pneg %p112
      %p273 = pneg %p136
      %p274 = pneg %p133
      %s275 = smul.u32 8, %s22
      %p276 = scmp.lt.s32.totalorder %s21, 1
      %s277 = scalar_select %p276, %s21, 1
      %p278 = scmp.lt.s32.totalorder %s275, 7
      %s279 = scalar_select %p278, %s275, 7
      %s280 = smul.addr %s277, 8
      %s281 = sadd.s32 %s279, %s280
      %s282 = smul.addr %s281, 4
      %s283 = scalar_lea.vmem %s5, %s282
      %p284 = pneg %p164
      %p285 = pneg %p161
      %p286 = pneg %p192
      %p287 = pneg %p189
      %s288 = smul.u32 8, %s22
      %p289 = scmp.lt.s32.totalorder %s21, 1
      %s290 = scalar_select %p289, %s21, 1
      %p291 = scmp.lt.s32.totalorder %s288, 7
      %s292 = scalar_select %p291, %s288, 7
      %s293 = smul.addr %s290, 8
      %s294 = sadd.s32 %s292, %s293
      %s295 = smul.addr %s294, 4
      %s296 = scalar_lea.vmem %s6, %s295
      %s297 = smul.u32 8, %s22
      %p298 = scmp.lt.s32.totalorder %s21, 1
      %s299 = scalar_select %p298, %s21, 1
      %p300 = scmp.lt.s32.totalorder %s297, 7
      %s301 = scalar_select %p300, %s297, 7
      %s302 = smul.addr %s299, 8
      %s303 = sadd.s32 %s301, %s302
      %s304 = smul.addr %s303, 4
      %s305 = scalar_lea.vmem %s0, %s304
      %s306 = smul.u32 8, %s22
      %s307 = smul.u32 8, %s22
      %p308 = scmp.lt.s32.totalorder %s21, 1
      %s309 = scalar_select %p308, %s21, 1
      %p310 = scmp.lt.s32.totalorder %s307, 7
      %s311 = scalar_select %p310, %s307, 7
      %s312 = smul.addr %s309, 8
      %s313 = sadd.s32 %s311, %s312
      %s314 = smul.addr %s313, 4
      %s315 = scalar_lea.vmem %s5, %s314
      %s316 = smul.u32 8, %s22
      %s317 = smul.u32 8, %s22
      %p318 = scmp.lt.s32.totalorder %s21, 1
      %s319 = scalar_select %p318, %s21, 1
      %p320 = scmp.lt.s32.totalorder %s317, 7
      %s321 = scalar_select %p320, %s317, 7
      %s322 = smul.addr %s319, 8
      %s323 = sadd.s32 %s321, %s322
      %s324 = smul.addr %s323, 4
      %s325 = scalar_lea.vmem %s6, %s324
      %s326 = smul.u32 8, %s22
      %s328 = scalar_lea.vmem %s1, %s21
      %v329 = vld [vmem:[%s328] sm:$0x1]
      %v330 = vld [vmem:[%s305] sm:$0xf]
      %v331 = vld [vmem:[%s305 + $0x4] sm:$0xf]
      %v332 = vld [vmem:[%s305 + $0x8] sm:$0xf]
      %v333 = vld [vmem:[%s305 + $0xc] sm:$0xf]
      %v334 = vld [vmem:[%s305 + $0x10] sm:$0xf]
      %v335 = vld [vmem:[%s305 + $0x14] sm:$0xf]
      %v336 = vld [vmem:[%s305 + $0x18] sm:$0xf]
      %v337 = vld [vmem:[%s305 + $0x1c] sm:$0xf]
      %v338 = vunpack.c.l.bf16 %v330
      %v339 = vunpack.c.l.bf16 %v331
      %v340 = vunpack.c.l.bf16 %v332
      %v341 = vunpack.c.l.bf16 %v333
      %v342 = vunpack.c.l.bf16 %v334
      %v343 = vunpack.c.l.bf16 %v335
      %v344 = vunpack.c.l.bf16 %v336
      %v345 = vunpack.c.l.bf16 %v337
      %v346 = vlaneseq
      %v347 = vshrl.u32 %v346, 7
      %v348 = vsub.s32 0, %v347
      %v349 = vrot.slane %v329, %v348
      %v350 = vmul.f32 %v338, %v349
      %v351 = vmul.f32 %v339, %v349
      %v352 = vmul.f32 %v340, %v349
      %v353 = vmul.f32 %v341, %v349
      %v354 = vmul.f32 %v342, %v349
      %v355 = vmul.f32 %v343, %v349
      %v356 = vmul.f32 %v344, %v349
      %v357 = vmul.f32 %v345, %v349
      %v358 = vpack.c.bf16 %v351, %v350
      %v359 = vpack.c.bf16 %v353, %v352
      %v360 = vpack.c.bf16 %v355, %v354
      %v361 = vpack.c.bf16 %v357, %v356
      %v362 = vld [vmem:[%s2] sm:$0xf]
      %v363 = vld [vmem:[%s2 + $0x4] sm:$0xf]
      %v364 = vld [vmem:[%s2 + $0x8] sm:$0xf]
      %v365 = vld [vmem:[%s2 + $0xc] sm:$0xf]
      %v366 = vld [vmem:[%s2 + $0x10] sm:$0xf]
      %v367 = vld [vmem:[%s2 + $0x14] sm:$0xf]
      %v368 = vld [vmem:[%s2 + $0x18] sm:$0xf]
      %v369 = vld [vmem:[%s2 + $0x1c] sm:$0xf]
      %v370 = vld [vmem:[%s2 + $0x20] sm:$0xf]
      %v371 = vld [vmem:[%s2 + $0x24] sm:$0xf]
      %v372 = vld [vmem:[%s2 + $0x28] sm:$0xf]
      %v373 = vld [vmem:[%s2 + $0x2c] sm:$0xf]
      %v374 = vld [vmem:[%s2 + $0x30] sm:$0xf]
      %v375 = vld [vmem:[%s2 + $0x34] sm:$0xf]
      %v376 = vld [vmem:[%s2 + $0x38] sm:$0xf]
      %v377 = vld [vmem:[%s2 + $0x3c] sm:$0xf]
      %v394 = vunpack.c.l.b16 %v362
      %v395 = vunpack.c.l.b16 %v363
      %v396 = vunpack.c.l.b16 %v364
      %v397 = vunpack.c.l.b16 %v365
      %v398 = vunpack.c.l.b16 %v366
      %v399 = vunpack.c.l.b16 %v367
      %v400 = vunpack.c.l.b16 %v368
      %v401 = vunpack.c.l.b16 %v369
      %v402 = vunpack.c.l.b16 %v370
      %v403 = vunpack.c.l.b16 %v371
      %v404 = vunpack.c.l.b16 %v372
      %v405 = vunpack.c.l.b16 %v373
      %v406 = vunpack.c.l.b16 %v374
      %v407 = vunpack.c.l.b16 %v375
      %v408 = vunpack.c.l.b16 %v376
      %v409 = vunpack.c.l.b16 %v377
      %v410 = vpack.c.b16 %v395, %v394
      %v411 = vpack.c.b16 %v397, %v396
      %v412 = vpack.c.b16 %v399, %v398
      %v413 = vpack.c.b16 %v401, %v400
      %v414 = vpack.c.b16 %v403, %v402
      %v415 = vpack.c.b16 %v405, %v404
      %v416 = vpack.c.b16 %v407, %v406
      %v417 = vpack.c.b16 %v409, %v408
      %426 = vmatprep.subr.bf16.mxu0 0
      %427 = vmatpush1.bf16.msra.mxu0 %v410
      %428 = vmatprep.subr.bf16.mxu0 0
      %429 = vmatpush1.bf16.msra.mxu0 %v411
      %430 = vmatprep.subr.bf16.mxu0 0
      %431 = vmatpush1.bf16.msra.mxu0 %v412
      %432 = vmatprep.subr.bf16.mxu0 0
      %433 = vmatpush1.bf16.msra.mxu0 %v413
      %434 = vmatprep.subr.bf16.mxu0 0
      %435 = vmatpush1.bf16.msra.mxu0 %v414
      %436 = vmatprep.subr.bf16.mxu0 0
      %437 = vmatpush1.bf16.msra.mxu0 %v415
      %438 = vmatprep.subr.bf16.mxu0 0
      %439 = vmatpush1.bf16.msra.mxu0 %v416
      %440 = vmatprep.subr.bf16.mxu0 0
      %441 = vmatpush1.bf16.msra.mxu0 %v417
      %442 = vmatprep.subr.bf16.mxu0 0
      %443 = vmatpush1.bf16.msra.mxu0 0
      %444 = vmatprep.subr.bf16.mxu0 0
      %445 = vmatpush1.bf16.msra.mxu0 0
      %446 = vmatprep.subr.bf16.mxu0 0
      %447 = vmatpush1.bf16.msra.mxu0 0
      %448 = vmatprep.subr.bf16.mxu0 0
      %449 = vmatpush1.bf16.msra.mxu0 0
      %450 = vmatprep.subr.bf16.mxu0 0
      %451 = vmatpush1.bf16.msra.mxu0 0
      %452 = vmatprep.subr.bf16.mxu0 0
      %453 = vmatpush1.bf16.msra.mxu0 0
      %454 = vmatprep.subr.bf16.mxu0 0
      %455 = vmatpush1.bf16.msra.mxu0 0
      %456 = vmatprep.subr.bf16.mxu0 0
      %457 = vmatpush1.bf16.msra.mxu0 0
      %458 = vmatprep.mubr.bf16.mxu0 0
      %459 = vmatmul.mubr.bf16.gmra.mrb[0].mxu0 %v358
      %v460 = vpop.f32.mrb[0].mxu0
      %v461 = vadd.f32 0.0, %v460
      %v462 = vpop.f32.mrb[0].mxu0
      %v463 = vpop.f32.mrb[0].mxu0
      %v464 = vadd.f32 0.0, %v463
      %v465 = vpop.f32.mrb[0].mxu0
      %466 = vmatprep.mubr.bf16.mxu0 0
      %467 = vmatmul.mubr.bf16.gmra.mrb[0].mxu0 %v359
      %v468 = vpop.f32.mrb[0].mxu0
      %v469 = vadd.f32 0.0, %v468
      %v470 = vpop.f32.mrb[0].mxu0
      %v471 = vpop.f32.mrb[0].mxu0
      %v472 = vadd.f32 0.0, %v471
      %v473 = vpop.f32.mrb[0].mxu0
      %474 = vmatprep.mubr.bf16.mxu0 0
      %475 = vmatmul.mubr.bf16.gmra.mrb[0].mxu0 %v360
      %v476 = vpop.f32.mrb[0].mxu0
      %v477 = vadd.f32 0.0, %v476
      %v478 = vpop.f32.mrb[0].mxu0
      %v479 = vpop.f32.mrb[0].mxu0
      %v480 = vadd.f32 0.0, %v479
      %v481 = vpop.f32.mrb[0].mxu0
      %482 = vmatprep.mubr.bf16.mxu0 0
      %483 = vmatmul.mubr.bf16.gmra.mrb[0].mxu0 %v361
      %v484 = vpop.f32.mrb[0].mxu0
      %v485 = vadd.f32 0.0, %v484
      %v486 = vpop.f32.mrb[0].mxu0
      %v487 = vpop.f32.mrb[0].mxu0
      %v488 = vadd.f32 0.0, %v487
      %v489 = vpop.f32.mrb[0].mxu0
      %490 = vdwg.mxu0
      %v491 = vld [vmem:[%s3] sm:$0x1]
      %v493 = vlaneseq
      %v494 = vshrl.u32 %v493, 7
      %v495 = vsub.s32 0, %v494
      %v496 = vrot.slane %v491, %v495
      %v498 = vmul.f32 %v461, %v496
      %v499 = vmul.f32 %v464, %v496
      %v500 = vmul.f32 %v469, %v496
      %v501 = vmul.f32 %v472, %v496
      %v502 = vmul.f32 %v477, %v496
      %v503 = vmul.f32 %v480, %v496
      %v504 = vmul.f32 %v485, %v496
      %v505 = vmul.f32 %v488, %v496
      %v506 = vld [vmem:[%s4] sm:$0x1]
      %v508 = vlaneseq
      %v509 = vshrl.u32 %v508, 7
      %v510 = vsub.s32 0, %v509
      %v511 = vrot.slane %v506, %v510
      %v513 = vadd.f32 %v498, %v511
      %v514 = vadd.f32 %v499, %v511
      %v515 = vadd.f32 %v500, %v511
      %v516 = vadd.f32 %v501, %v511
      %v517 = vadd.f32 %v502, %v511
      %v518 = vadd.f32 %v503, %v511
      %v519 = vadd.f32 %v504, %v511
      %v520 = vadd.f32 %v505, %v511
      %v521 = vld [vmem:[%s315] sm:$0xf]
      %v522 = vld [vmem:[%s315 + $0x4] sm:$0xf]
      %v523 = vld [vmem:[%s315 + $0x8] sm:$0xf]
      %v524 = vld [vmem:[%s315 + $0xc] sm:$0xf]
      %v525 = vld [vmem:[%s315 + $0x10] sm:$0xf]
      %v526 = vld [vmem:[%s315 + $0x14] sm:$0xf]
      %v527 = vld [vmem:[%s315 + $0x18] sm:$0xf]
      %v528 = vld [vmem:[%s315 + $0x1c] sm:$0xf]
      %v529 = vunpack.c.l.bf16 %v521
      %v530 = vunpack.c.l.bf16 %v522
      %v531 = vunpack.c.l.bf16 %v523
      %v532 = vunpack.c.l.bf16 %v524
      %v533 = vunpack.c.l.bf16 %v525
      %v534 = vunpack.c.l.bf16 %v526
      %v535 = vunpack.c.l.bf16 %v527
      %v536 = vunpack.c.l.bf16 %v528
      %v537 = vadd.f32 %v513, %v529
      %v538 = vadd.f32 %v514, %v530
      %v539 = vadd.f32 %v515, %v531
      %v540 = vadd.f32 %v516, %v532
      %v541 = vadd.f32 %v517, %v533
      %v542 = vadd.f32 %v518, %v534
      %v543 = vadd.f32 %v519, %v535
      %v544 = vadd.f32 %v520, %v536
      %v545 = vpack.c.bf16 %v538, %v537
      %v546 = vpack.c.bf16 %v540, %v539
      %v547 = vpack.c.bf16 %v542, %v541
      %v548 = vpack.c.bf16 %v544, %v543
      %v553 = vunpack.c.l.b16 %v545
      %v554 = vunpack.c.h.b16 %v545
      %v555 = vunpack.c.l.b16 %v546
      %v556 = vunpack.c.h.b16 %v546
      %v557 = vunpack.c.l.b16 %v547
      %v558 = vunpack.c.h.b16 %v547
      %v559 = vunpack.c.l.b16 %v548
      %v560 = vunpack.c.h.b16 %v548
      %v561 = vpack.c.b16 %v553, %v553
      %v562 = vpack.c.b16 %v554, %v554
      %v563 = vpack.c.b16 %v555, %v555
      %v564 = vpack.c.b16 %v556, %v556
      %v565 = vpack.c.b16 %v557, %v557
      %v566 = vpack.c.b16 %v558, %v558
      %v567 = vpack.c.b16 %v559, %v559
      %v568 = vpack.c.b16 %v560, %v560
      %577 = vst [vmem:[%s325] sm:$0xf] %v561
      %578 = vst [vmem:[%s325 + $0x4] sm:$0xf] %v562
      %579 = vst [vmem:[%s325 + $0x8] sm:$0xf] %v563
      %580 = vst [vmem:[%s325 + $0xc] sm:$0xf] %v564
      %581 = vst [vmem:[%s325 + $0x10] sm:$0xf] %v565
      %582 = vst [vmem:[%s325 + $0x14] sm:$0xf] %v566
      %583 = vst [vmem:[%s325 + $0x18] sm:$0xf] %v567
      %584 = vst [vmem:[%s325 + $0x1c] sm:$0xf] %v568
      %s585 = smul.u32 8, %s22
      %p586 = scmp.lt.s32.totalorder %s21, 1
      %s587 = scalar_select %p586, %s21, 1
      %p588 = scmp.lt.s32.totalorder %s585, 7
      %s589 = scalar_select %p588, %s585, 7
      %s590 = smul.addr %s587, 8
      %s591 = sadd.s32 %s589, %s590
      %s592 = smul.addr %s591, 4
      %s593 = scalar_lea.vmem %s6, %s592
      // Predicated region
      $region45: #{effnet_forward.8} parent=43 // pred_check
        %p594 = pneg %p189
      $region46: #{effnet_forward.8} parent=43 // pred_check_branch
        %596 = sbr.rel (%p594) target = $region48
      $region47: #{effnet_forward.8} parent=43 // pred_region
        %s597 = smul.u32 8, %s22
      $region48: #{effnet_forward.8} parent=43 // pred_fallthru
        _
    $region44: #{effnet_forward.8} parent=5 // pred_fallthru
      _
    %p598 = scmp.le.s32.totalorder 2, %s12
    // Predicated region
    $region49: #{effnet_forward.8} parent=5 // pred_check
      %p599 = pneg %p598
    $region50: #{effnet_forward.8} parent=5 // pred_check_branch
      %601 = sbr.rel (%p599) target = $region52
    $region51: #{effnet_forward.8} parent=5 // pred_region
      %s602 = ssub.s32 %s12, 2
      // Predicated region
      $region53: #{effnet_forward.8} parent=51 // pred_check
        %p603 = pneg %p195
      $region54: #{effnet_forward.8} parent=51 // pred_check_branch
        %605 = sbr.rel (%p603) target = $region56
      $region55: #{effnet_forward.8} parent=51 // pred_region
        %s606 = smul.u32 8, %s24
        %p607 = scmp.lt.s32.totalorder %s23, 1
        %s608 = scalar_select %p607, %s23, 1
        %p609 = scmp.lt.s32.totalorder %s606, 7
        %s610 = scalar_select %p609, %s606, 7
        %s611 = smul.addr %s608, 8
        %s612 = sadd.s32 %s610, %s611
        %s613 = smul.addr %s612, 4
        %s614 = scalar_lea.vmem %s6, %s613
      $region56: #{effnet_forward.8} parent=51 // pred_fallthru
        _
    $region52: #{effnet_forward.8} parent=5 // pred_fallthru
      _
  $region6: #{effnet_forward.8} parent=0 // loop_footer
    %s16 = sadd.s32 1, %s12
  $region7: #{effnet_forward.8} parent=0 // loop_footer_branch
    %11 = sbr.rel target = $region3
  $region8: #{effnet_forward.8} parent=0 // loop_exit
    _

// kernel: effnet_forward.9
$region0: #{effnet_forward.9}
  #allocation0 [shape = 'u32[]', space=smem, size = 0x4, offset = 0x4, fixed_abs, tag = 'smem constant byte address 0x4 - core index']
  #allocation1 [shape = 'u32[144,128]{1,0:T(1,128)}', space=vmem, size = 0x12000, scoped, tag = 'internal scratch']
  #allocation2 [shape = 'f32[1,128]{1,0:T(1,128)}', space=vmem, size = 0x200, scoped, tag = 'scratch operand']
  %s0 = inlined_call_operand.vmem [shape: bf16[2,64,128], index: 0, kind: input, shape index: {}]
  %s1 = inlined_call_operand.vmem [shape: bf16[128,128], index: 1, kind: input, shape index: {}]
  %s2 = inlined_call_operand.vmem [shape: f32[1,128], index: 2, kind: input, shape index: {}]
  %s3 = inlined_call_operand.vmem [shape: f32[1,128], index: 3, kind: input, shape index: {}]
  %s4 = inlined_call_operand.vmem [shape: f32[128,128], index: 4, kind: input, shape index: {}]
  %s5 = inlined_call_operand.vmem [shape: f32[1,128], index: 5, kind: input, shape index: {}]
  %s6 = inlined_call_operand.hbm [shape: f32[2,128], index: 6, kind: output, shape index: {}]
  %s7 = sld [smem:[#allocation0]]
  $region65: #{effnet_forward.9} parent=0
    _
  %s9 = ssub.s32 1, %s7
  %s10 = scalar_select 0, %s9, %s7
  $region1: #{effnet_forward.9} parent=0
    #allocation3 [shape = 'u8[1024]{0}', space=vmem, size = 0x400, scoped, tag = 'output window, operand 0, single buffered']
    #allocation4 [shape = 's32[2]{0}', space=sflag, size = 0x8, scoped, tag = 'scoped memory for effnet_forward.9']
    %11 = vsyncpa [#allocation4], 0
    loop: start=0, step=1, limit=4
    $region2: #{effnet_forward.9} parent=1 // loop_pre_header
      _
    $region3: #{effnet_forward.9} parent=1 // loop_header
      %s13 = sphi 0, %s17
      %p14 = scmp.ge.s32.totalorder %s13, 4
      %s20 = sphi 0, %s32
      %s21 = sphi 0, %s28
      %s22 = sphi 0, %s20
      %s23 = sphi 0, %s21
      %s24 = sphi 0, %s22
      %s25 = sphi 0, %s23
      %s37 = sphi 0, %s39
      %s40 = sphi 0, %s37
      %s41 = sphi 0, %s40
      %s57 = sphi 0, %s41
      %s61 = sphi 0, %s61
      %s63 = sphi 0, %s61
      %s64 = sphi 0, %s63
      %s78 = sphi 0, %s64
      %s82 = sphi 0, %s82
      %s84 = sphi 0, %s82
      %s85 = sphi 0, %s84
      %s99 = sphi 0, %s85
      %s103 = sphi 0, %s103
      %s105 = sphi 0, %s103
      %s106 = sphi 0, %s105
      %s120 = sphi 0, %s106
      %s124 = sphi 0, %s124
      %s126 = sphi 0, %s124
      %s127 = sphi 0, %s126
      %s141 = sphi 0, %s127
      %s145 = sphi 0, %s145
      %s147 = sphi 0, %s145
      %s148 = sphi 0, %s147
      %s162 = sphi 0, %s148
      %s166 = sphi 0, %s166
      %s168 = sphi 0, %s166
      %s169 = sphi 0, %s168
      %s183 = sphi 0, %s169
    $region4: #{effnet_forward.9} parent=1 // loop_header_branch
      %16 = sbr.rel (%p14) target = $region8
    $region5: #{effnet_forward.9} parent=1 // loop_body
      %s18 = ssub.s32 %s13, 1
      %s19 = ssub.s32 %s13, 2
      %s26 = sadd.s32 1, %s21
      %p27 = scmp.ge.s32.totalorder %s26, 1
      %s28 = scalar_select %p27, 0, %s26
      %s29 = sadd.s32 1, %s20
      %s30 = scalar_select %p27, %s29, %s20
      %p31 = scmp.ge.s32.totalorder %s30, 2
      %s32 = scalar_select %p31, 0, %s30
      %s33 = ssub.s32 %s20, %s32
      %s34 = ssub.s32 %s21, %s28
      %s35 = sor.u32 %s33, %s34
      %p36 = scmp.eq.s32.totalorder %s35, 0
      %s38 = sadd.s32 %s37, 1
      %s39 = scalar_select %p36, %s37, %s38
      %p42 = pneg %p36
      %p43 = scmp.eq.s32.totalorder %s13, 1
      %p44 = por %p42, %p43
      %p45 = scmp.ne.s32.totalorder %s37, %s40
      %p46 = scmp.eq.s32.totalorder %s13, 0
      %p47 = por %p45, %p46
      %p48 = scmp.ne.s32.totalorder %s37, %s40
      %p49 = scmp.eq.s32.totalorder %s18, 1
      %p50 = por %p48, %p49
      %p51 = scmp.ne.s32.totalorder %s40, %s41
      %p52 = scmp.eq.s32.totalorder %s18, 0
      %p53 = por %p51, %p52
      %p54 = scmp.ne.s32.totalorder %s40, %s41
      %p55 = scmp.eq.s32.totalorder %s19, 1
      %p56 = por %p54, %p55
      %p58 = scmp.ne.s32.totalorder %s41, %s57
      %p59 = scmp.eq.s32.totalorder %s19, 0
      %p60 = por %p58, %p59
      %s62 = sadd.s32 %s61, 1
      %p65 = scmp.eq.s32.totalorder %s13, 1
      %p66 = scmp.ne.s32.totalorder %s61, %s63
      %p67 = scmp.eq.s32.totalorder %s13, 0
      %p68 = por %p66, %p67
      %p69 = scmp.ne.s32.totalorder %s61, %s63
      %p70 = scmp.eq.s32.totalorder %s18, 1
      %p71 = por %p69, %p70
      %p72 = scmp.ne.s32.totalorder %s63, %s64
      %p73 = scmp.eq.s32.totalorder %s18, 0
      %p74 = por %p72, %p73
      %p75 = scmp.ne.s32.totalorder %s63, %s64
      %p76 = scmp.eq.s32.totalorder %s19, 1
      %p77 = por %p75, %p76
      %p79 = scmp.ne.s32.totalorder %s64, %s78
      %p80 = scmp.eq.s32.totalorder %s19, 0
      %p81 = por %p79, %p80
      %s83 = sadd.s32 %s82, 1
      %p86 = scmp.eq.s32.totalorder %s13, 1
      %p87 = scmp.ne.s32.totalorder %s82, %s84
      %p88 = scmp.eq.s32.totalorder %s13, 0
      %p89 = por %p87, %p88
      %p90 = scmp.ne.s32.totalorder %s82, %s84
      %p91 = scmp.eq.s32.totalorder %s18, 1
      %p92 = por %p90, %p91
      %p93 = scmp.ne.s32.totalorder %s84, %s85
      %p94 = scmp.eq.s32.totalorder %s18, 0
      %p95 = por %p93, %p94
      %p96 = scmp.ne.s32.totalorder %s84, %s85
      %p97 = scmp.eq.s32.totalorder %s19, 1
      %p98 = por %p96, %p97
      %p100 = scmp.ne.s32.totalorder %s85, %s99
      %p101 = scmp.eq.s32.totalorder %s19, 0
      %p102 = por %p100, %p101
      %s104 = sadd.s32 %s103, 1
      %p107 = scmp.eq.s32.totalorder %s13, 1
      %p108 = scmp.ne.s32.totalorder %s103, %s105
      %p109 = scmp.eq.s32.totalorder %s13, 0
      %p110 = por %p108, %p109
      %p111 = scmp.ne.s32.totalorder %s103, %s105
      %p112 = scmp.eq.s32.totalorder %s18, 1
      %p113 = por %p111, %p112
      %p114 = scmp.ne.s32.totalorder %s105, %s106
      %p115 = scmp.eq.s32.totalorder %s18, 0
      %p116 = por %p114, %p115
      %p117 = scmp.ne.s32.totalorder %s105, %s106
      %p118 = scmp.eq.s32.totalorder %s19, 1
      %p119 = por %p117, %p118
      %p121 = scmp.ne.s32.totalorder %s106, %s120
      %p122 = scmp.eq.s32.totalorder %s19, 0
      %p123 = por %p121, %p122
      %s125 = sadd.s32 %s124, 1
      %p128 = scmp.eq.s32.totalorder %s13, 1
      %p129 = scmp.ne.s32.totalorder %s124, %s126
      %p130 = scmp.eq.s32.totalorder %s13, 0
      %p131 = por %p129, %p130
      %p132 = scmp.ne.s32.totalorder %s124, %s126
      %p133 = scmp.eq.s32.totalorder %s18, 1
      %p134 = por %p132, %p133
      %p135 = scmp.ne.s32.totalorder %s126, %s127
      %p136 = scmp.eq.s32.totalorder %s18, 0
      %p137 = por %p135, %p136
      %p138 = scmp.ne.s32.totalorder %s126, %s127
      %p139 = scmp.eq.s32.totalorder %s19, 1
      %p140 = por %p138, %p139
      %p142 = scmp.ne.s32.totalorder %s127, %s141
      %p143 = scmp.eq.s32.totalorder %s19, 0
      %p144 = por %p142, %p143
      %s146 = sadd.s32 %s145, 1
      %p149 = scmp.eq.s32.totalorder %s13, 1
      %p150 = scmp.ne.s32.totalorder %s145, %s147
      %p151 = scmp.eq.s32.totalorder %s13, 0
      %p152 = por %p150, %p151
      %p153 = scmp.ne.s32.totalorder %s145, %s147
      %p154 = scmp.eq.s32.totalorder %s18, 1
      %p155 = por %p153, %p154
      %p156 = scmp.ne.s32.totalorder %s147, %s148
      %p157 = scmp.eq.s32.totalorder %s18, 0
      %p158 = por %p156, %p157
      %p159 = scmp.ne.s32.totalorder %s147, %s148
      %p160 = scmp.eq.s32.totalorder %s19, 1
      %p161 = por %p159, %p160
      %p163 = scmp.ne.s32.totalorder %s148, %s162
      %p164 = scmp.eq.s32.totalorder %s19, 0
      %p165 = por %p163, %p164
      %s167 = sadd.s32 %s166, 1
      %p170 = scmp.eq.s32.totalorder %s13, 1
      %p171 = scmp.ne.s32.totalorder %s166, %s168
      %p172 = scmp.eq.s32.totalorder %s13, 0
      %p173 = por %p171, %p172
      %p174 = scmp.ne.s32.totalorder %s166, %s168
      %p175 = scmp.eq.s32.totalorder %s18, 1
      %p176 = por %p174, %p175
      %p177 = scmp.ne.s32.totalorder %s168, %s169
      %p178 = scmp.eq.s32.totalorder %s18, 0
      %p179 = por %p177, %p178
      %p180 = scmp.ne.s32.totalorder %s168, %s169
      %p181 = scmp.eq.s32.totalorder %s19, 1
      %p182 = por %p180, %p181
      %p184 = scmp.ne.s32.totalorder %s169, %s183
      %p185 = scmp.eq.s32.totalorder %s19, 0
      %p186 = por %p184, %p185
      %p187 = scmp.le.s32.totalorder 1, %s13
      %p188 = scmp.lt.s32.totalorder %s13, 3
      %p189 = pnand %p187, %p188
      %p190 = pneg %p189
      // Predicated region
      $region9: #{effnet_forward.9} parent=5 // pred_check
        _
      $region10: #{effnet_forward.9} parent=5 // pred_check_branch
        %192 = sbr.rel (%p189) target = $region12
      $region11: #{effnet_forward.9} parent=5 // pred_region
        %s193 = ssub.s32 %s13, 1
        // Predicated region
        $region13: #{effnet_forward.9} parent=11 // pred_check
          %p194 = pneg %p74
        $region14: #{effnet_forward.9} parent=11 // pred_check_branch
          %196 = sbr.rel (%p194) target = $region16
        $region15: #{effnet_forward.9} parent=11 // pred_region
          _
        $region16: #{effnet_forward.9} parent=11 // pred_fallthru
          _
        // Predicated region
        $region17: #{effnet_forward.9} parent=11 // pred_check
          %p197 = pneg %p95
        $region18: #{effnet_forward.9} parent=11 // pred_check_branch
          %199 = sbr.rel (%p197) target = $region20
        $region19: #{effnet_forward.9} parent=11 // pred_region
          _
        $region20: #{effnet_forward.9} parent=11 // pred_fallthru
          _
        // Predicated region
        $region21: #{effnet_forward.9} parent=11 // pred_check
          %p200 = pneg %p116
        $region22: #{effnet_forward.9} parent=11 // pred_check_branch
          %202 = sbr.rel (%p200) target = $region24
        $region23: #{effnet_forward.9} parent=11 // pred_region
          _
        $region24: #{effnet_forward.9} parent=11 // pred_fallthru
          _
        // Predicated region
        $region25: #{effnet_forward.9} parent=11 // pred_check
          %p203 = pneg %p137
        $region26: #{effnet_forward.9} parent=11 // pred_check_branch
          %205 = sbr.rel (%p203) target = $region28
        $region27: #{effnet_forward.9} parent=11 // pred_region
          _
        $region28: #{effnet_forward.9} parent=11 // pred_fallthru
          _
        // Predicated region
        $region29: #{effnet_forward.9} parent=11 // pred_check
          %p206 = pneg %p158
        $region30: #{effnet_forward.9} parent=11 // pred_check_branch
          %208 = sbr.rel (%p206) target = $region32
        $region31: #{effnet_forward.9} parent=11 // pred_region
          _
        $region32: #{effnet_forward.9} parent=11 // pred_fallthru
          _
      $region12: #{effnet_forward.9} parent=5 // pred_fallthru
        _
      %p209 = scmp.lt.s32.totalorder %s13, 2
      // Predicated region
      $region33: #{effnet_forward.9} parent=5 // pred_check
        %p210 = pneg %p209
      $region34: #{effnet_forward.9} parent=5 // pred_check_branch
        %212 = sbr.rel (%p210) target = $region36
      $region35: #{effnet_forward.9} parent=5 // pred_region
        // Predicated region
        $region37: #{effnet_forward.9} parent=35 // pred_check
          %p213 = pneg %p47
        $region38: #{effnet_forward.9} parent=35 // pred_check_branch
          %215 = sbr.rel (%p213) target = $region40
        $region39: #{effnet_forward.9} parent=35 // pred_region
          %s216 = smul.u32 8, %s21
          %p217 = scmp.lt.s32.totalorder %s20, 1
          %s218 = scalar_select %p217, %s20, 1
          %p219 = scmp.lt.s32.totalorder %s216, 7
          %s220 = scalar_select %p219, %s216, 7
          %s221 = smul.addr %s218, 8
          %s222 = sadd.s32 %s220, %s221
          %s223 = smul.addr %s222, 4
          %s224 = scalar_lea.vmem %s0, %s223
          %s225 = smul.u32 8, %s21
        $region40: #{effnet_forward.9} parent=35 // pred_fallthru
          _
      $region36: #{effnet_forward.9} parent=5 // pred_fallthru
        _
      %p226 = scmp.le.s32.totalorder 1, %s13
      %p227 = scmp.lt.s32.totalorder %s13, 3
      %p228 = pnand %p226, %p227
      %p229 = pneg %p228
      // Predicated region
      $region41: #{effnet_forward.9} parent=5 // pred_check
        _
      $region42: #{effnet_forward.9} parent=5 // pred_check_branch
        %231 = sbr.rel (%p228) target = $region44
      $region43: #{effnet_forward.9} parent=5 // pred_region
        %s232 = ssub.s32 %s13, 1
        %s233 = smul.u32 8, %s23
        %p234 = scmp.lt.s32.totalorder %s22, 1
        %s235 = scalar_select %p234, %s22, 1
        %p236 = scmp.lt.s32.totalorder %s233, 7
        %s237 = scalar_select %p236, %s233, 7
        %s238 = smul.addr %s235, 8
        %s239 = sadd.s32 %s237, %s238
        %s240 = smul.addr %s239, 4
        %s241 = scalar_lea.vmem %s0, %s240
        %p242 = pneg %p53
        %p243 = pneg %p50
        %p244 = pneg %p74
        %p245 = pneg %p71
        %p246 = pneg %p95
        %p247 = pneg %p92
        %p248 = pneg %p116
        %p249 = pneg %p113
        %p250 = pneg %p137
        %p251 = pneg %p134
        %p252 = pneg %p158
        %p253 = pneg %p155
        %p254 = pneg %p179
        %p255 = pneg %p176
        %s256 = smul.u32 8, %s23
        %p257 = scmp.lt.s32.totalorder %s22, 1
        %s258 = scalar_select %p257, %s22, 1
        %p259 = scmp.lt.s32.totalorder %s256, 7
        %s260 = scalar_select %p259, %s256, 7
        %s261 = smul.addr %s258, 8
        %s262 = sadd.s32 %s260, %s261
        %s263 = smul.addr %s262, 4
        %s264 = scalar_lea.vmem %s0, %s263
        %s265 = smul.u32 8, %s23
        %p267 = scmp.eq.s32.totalorder %s23, 0
        // Predicated region
        $region45: #{effnet_forward.9} parent=43 // pred_check
          %p268 = pneg %p267
        $region46: #{effnet_forward.9} parent=43 // pred_check_branch
          %270 = sbr.rel (%p268) target = $region48
        $region47: #{effnet_forward.9} parent=43 // pred_region
          %271 = vst [vmem:[#allocation2] sm:$0x1] 0.0
        $region48: #{effnet_forward.9} parent=43 // pred_fallthru
          _
        %v272 = vld [vmem:[%s264] sm:$0xf]
        %v273 = vld [vmem:[%s264 + $0x4] sm:$0xf]
        %v274 = vld [vmem:[%s264 + $0x8] sm:$0xf]
        %v275 = vld [vmem:[%s264 + $0xc] sm:$0xf]
        %v276 = vld [vmem:[%s264 + $0x10] sm:$0xf]
        %v277 = vld [vmem:[%s264 + $0x14] sm:$0xf]
        %v278 = vld [vmem:[%s264 + $0x18] sm:$0xf]
        %v279 = vld [vmem:[%s264 + $0x1c] sm:$0xf]
        %v280 = vld [vmem:[%s1] sm:$0xf]
        %v281 = vld [vmem:[%s1 + $0x4] sm:$0xf]
        %v282 = vld [vmem:[%s1 + $0x8] sm:$0xf]
        %v283 = vld [vmem:[%s1 + $0xc] sm:$0xf]
        %v284 = vld [vmem:[%s1 + $0x10] sm:$0xf]
        %v285 = vld [vmem:[%s1 + $0x14] sm:$0xf]
        %v286 = vld [vmem:[%s1 + $0x18] sm:$0xf]
        %v287 = vld [vmem:[%s1 + $0x1c] sm:$0xf]
        %v288 = vld [vmem:[%s1 + $0x20] sm:$0xf]
        %v289 = vld [vmem:[%s1 + $0x24] sm:$0xf]
        %v290 = vld [vmem:[%s1 + $0x28] sm:$0xf]
        %v291 = vld [vmem:[%s1 + $0x2c] sm:$0xf]
        %v292 = vld [vmem:[%s1 + $0x30] sm:$0xf]
        %v293 = vld [vmem:[%s1 + $0x34] sm:$0xf]
        %v294 = vld [vmem:[%s1 + $0x38] sm:$0xf]
        %v295 = vld [vmem:[%s1 + $0x3c] sm:$0xf]
        %v304 = vunpack.c.l.b16 %v272
        %v305 = vunpack.c.l.b16 %v273
        %v306 = vunpack.c.l.b16 %v274
        %v307 = vunpack.c.l.b16 %v275
        %v308 = vunpack.c.l.b16 %v276
        %v309 = vunpack.c.l.b16 %v277
        %v310 = vunpack.c.l.b16 %v278
        %v311 = vunpack.c.l.b16 %v279
        %v312 = vpack.c.b16 %v305, %v304
        %v313 = vpack.c.b16 %v307, %v306
        %v314 = vpack.c.b16 %v309, %v308
        %v315 = vpack.c.b16 %v311, %v310
        %v336 = vunpack.c.l.b16 %v280
        %v337 = vunpack.c.l.b16 %v281
        %v338 = vunpack.c.l.b16 %v282
        %v339 = vunpack.c.l.b16 %v283
        %v340 = vunpack.c.l.b16 %v284
        %v341 = vunpack.c.l.b16 %v285
        %v342 = vunpack.c.l.b16 %v286
        %v343 = vunpack.c.l.b16 %v287
        %v344 = vunpack.c.l.b16 %v288
        %v345 = vunpack.c.l.b16 %v289
        %v346 = vunpack.c.l.b16 %v290
        %v347 = vunpack.c.l.b16 %v291
        %v348 = vunpack.c.l.b16 %v292
        %v349 = vunpack.c.l.b16 %v293
        %v350 = vunpack.c.l.b16 %v294
        %v351 = vunpack.c.l.b16 %v295
        %v352 = vpack.c.b16 %v337, %v336
        %v353 = vpack.c.b16 %v339, %v338
        %v354 = vpack.c.b16 %v341, %v340
        %v355 = vpack.c.b16 %v343, %v342
        %v356 = vpack.c.b16 %v345, %v344
        %v357 = vpack.c.b16 %v347, %v346
        %v358 = vpack.c.b16 %v349, %v348
        %v359 = vpack.c.b16 %v351, %v350
        %368 = vmatprep.subr.bf16.mxu0 0
        %369 = vmatpush1.bf16.msra.mxu0 %v352
        %370 = vmatprep.subr.bf16.mxu0 0
        %371 = vmatpush1.bf16.msra.mxu0 %v353
        %372 = vmatprep.subr.bf16.mxu0 0
        %373 = vmatpush1.bf16.msra.mxu0 %v354
        %374 = vmatprep.subr.bf16.mxu0 0
        %375 = vmatpush1.bf16.msra.mxu0 %v355
        %376 = vmatprep.subr.bf16.mxu0 0
        %377 = vmatpush1.bf16.msra.mxu0 %v356
        %378 = vmatprep.subr.bf16.mxu0 0
        %379 = vmatpush1.bf16.msra.mxu0 %v357
        %380 = vmatprep.subr.bf16.mxu0 0
        %381 = vmatpush1.bf16.msra.mxu0 %v358
        %382 = vmatprep.subr.bf16.mxu0 0
        %383 = vmatpush1.bf16.msra.mxu0 %v359
        %384 = vmatprep.subr.bf16.mxu0 0
        %385 = vmatpush1.bf16.msra.mxu0 0
        %386 = vmatprep.subr.bf16.mxu0 0
        %387 = vmatpush1.bf16.msra.mxu0 0
        %388 = vmatprep.subr.bf16.mxu0 0
        %389 = vmatpush1.bf16.msra.mxu0 0
        %390 = vmatprep.subr.bf16.mxu0 0
        %391 = vmatpush1.bf16.msra.mxu0 0
        %392 = vmatprep.subr.bf16.mxu0 0
        %393 = vmatpush1.bf16.msra.mxu0 0
        %394 = vmatprep.subr.bf16.mxu0 0
        %395 = vmatpush1.bf16.msra.mxu0 0
        %396 = vmatprep.subr.bf16.mxu0 0
        %397 = vmatpush1.bf16.msra.mxu0 0
        %398 = vmatprep.subr.bf16.mxu0 0
        %399 = vmatpush1.bf16.msra.mxu0 0
        %400 = vmatprep.mubr.bf16.mxu0 0
        %401 = vmatmul.mubr.bf16.gmra.mrb[0].mxu0 %v312
        %v402 = vpop.f32.mrb[0].mxu0
        %v403 = vadd.f32 0.0, %v402
        %v404 = vpop.f32.mrb[0].mxu0
        %v405 = vpop.f32.mrb[0].mxu0
        %v406 = vadd.f32 0.0, %v405
        %v407 = vpop.f32.mrb[0].mxu0
        %408 = vmatprep.mubr.bf16.mxu0 0
        %409 = vmatmul.mubr.bf16.gmra.mrb[0].mxu0 %v313
        %v410 = vpop.f32.mrb[0].mxu0
        %v411 = vadd.f32 0.0, %v410
        %v412 = vpop.f32.mrb[0].mxu0
        %v413 = vpop.f32.mrb[0].mxu0
        %v414 = vadd.f32 0.0, %v413
        %v415 = vpop.f32.mrb[0].mxu0
        %416 = vmatprep.mubr.bf16.mxu0 0
        %417 = vmatmul.mubr.bf16.gmra.mrb[0].mxu0 %v314
        %v418 = vpop.f32.mrb[0].mxu0
        %v419 = vadd.f32 0.0, %v418
        %v420 = vpop.f32.mrb[0].mxu0
        %v421 = vpop.f32.mrb[0].mxu0
        %v422 = vadd.f32 0.0, %v421
        %v423 = vpop.f32.mrb[0].mxu0
        %424 = vmatprep.mubr.bf16.mxu0 0
        %425 = vmatmul.mubr.bf16.gmra.mrb[0].mxu0 %v315
        %v426 = vpop.f32.mrb[0].mxu0
        %v427 = vadd.f32 0.0, %v426
        %v428 = vpop.f32.mrb[0].mxu0
        %v429 = vpop.f32.mrb[0].mxu0
        %v430 = vadd.f32 0.0, %v429
        %v431 = vpop.f32.mrb[0].mxu0
        %432 = vdwg.mxu0
        %v433 = vld [vmem:[%s2] sm:$0x1]
        %v435 = vlaneseq
        %v436 = vshrl.u32 %v435, 7
        %v437 = vsub.s32 0, %v436
        %v438 = vrot.slane %v433, %v437
        %v440 = vmul.f32 %v403, %v438
        %v441 = vmul.f32 %v406, %v438
        %v442 = vmul.f32 %v411, %v438
        %v443 = vmul.f32 %v414, %v438
        %v444 = vmul.f32 %v419, %v438
        %v445 = vmul.f32 %v422, %v438
        %v446 = vmul.f32 %v427, %v438
        %v447 = vmul.f32 %v430, %v438
        %v448 = vld [vmem:[%s3] sm:$0x1]
        %v450 = vlaneseq
        %v451 = vshrl.u32 %v450, 7
        %v452 = vsub.s32 0, %v451
        %v453 = vrot.slane %v448, %v452
        %v455 = vadd.f32 %v440, %v453
        %v456 = vadd.f32 %v441, %v453
        %v457 = vadd.f32 %v442, %v453
        %v458 = vadd.f32 %v443, %v453
        %v459 = vadd.f32 %v444, %v453
        %v460 = vadd.f32 %v445, %v453
        %v461 = vadd.f32 %v446, %v453
        %v462 = vadd.f32 %v447, %v453
        %v463 = vxor.u32 %v455, 2147483648
        %v464 = vxor.u32 %v456, 2147483648
        %v465 = vxor.u32 %v457, 2147483648
        %v466 = vxor.u32 %v458, 2147483648
        %v467 = vxor.u32 %v459, 2147483648
        %v468 = vxor.u32 %v460, 2147483648
        %v469 = vxor.u32 %v461, 2147483648
        %v470 = vxor.u32 %v462, 2147483648
        %v471 = vmul.f32 %v463, 1.442695
        %v472 = vpow.pop %v471
        %v473 = vmul.f32 %v464, 1.442695
        %v474 = vpow.pop %v473
        %v475 = vmul.f32 %v465, 1.442695
        %v476 = vpow.pop %v475
        %v477 = vmul.f32 %v466, 1.442695
        %v478 = vpow.pop %v477
        %v479 = vmul.f32 %v467, 1.442695
        %v480 = vpow.pop %v479
        %v481 = vmul.f32 %v468, 1.442695
        %v482 = vpow.pop %v481
        %v483 = vmul.f32 %v469, 1.442695
        %v484 = vpow.pop %v483
        %v485 = vmul.f32 %v470, 1.442695
        %v486 = vpow.pop %v485
        %v487 = vadd.f32 %v472, 1.0
        %v488 = vadd.f32 %v474, 1.0
        %v489 = vadd.f32 %v476, 1.0
        %v490 = vadd.f32 %v478, 1.0
        %v491 = vadd.f32 %v480, 1.0
        %v492 = vadd.f32 %v482, 1.0
        %v493 = vadd.f32 %v484, 1.0
        %v494 = vadd.f32 %v486, 1.0
        %v495 = vrcp.pop %v487
        %v496 = vmul.f32 1.0, %v495
        %v497 = vrcp.pop %v488
        %v498 = vmul.f32 1.0, %v497
        %v499 = vrcp.pop %v489
        %v500 = vmul.f32 1.0, %v499
        %v501 = vrcp.pop %v490
        %v502 = vmul.f32 1.0, %v501
        %v503 = vrcp.pop %v491
        %v504 = vmul.f32 1.0, %v503
        %v505 = vrcp.pop %v492
        %v506 = vmul.f32 1.0, %v505
        %v507 = vrcp.pop %v493
        %v508 = vmul.f32 1.0, %v507
        %v509 = vrcp.pop %v494
        %v510 = vmul.f32 1.0, %v509
        %v511 = vmul.f32 %v455, %v496
        %v512 = vmul.f32 %v456, %v498
        %v513 = vmul.f32 %v457, %v500
        %v514 = vmul.f32 %v458, %v502
        %v515 = vmul.f32 %v459, %v504
        %v516 = vmul.f32 %v460, %v506
        %v517 = vmul.f32 %v461, %v508
        %v518 = vmul.f32 %v462, %v510
        %v519 = vld [vmem:[#allocation2] sm:$0x1]
        %v520 = vadd.f32 %v511, %v512
        %v521 = vadd.f32 %v520, %v513
        %v522 = vadd.f32 %v521, %v514
        %v523 = vadd.f32 %v522, %v515
        %v524 = vadd.f32 %v523, %v516
        %v525 = vadd.f32 %v524, %v517
        %v526 = vadd.f32 %v525, %v518
        %v527 = vrot.slane %v526, 4
        %v528 = vadd.f32 %v526, %v527
        %v529 = vrot.slane %v528, 2
        %v530 = vadd.f32 %v528, %v529
        %v531 = vrot.slane %v530, 1
        %v532 = vadd.f32 %v530, %v531
        %v533 = vadd.f32 %v519, %v532
        %534 = vst [vmem:[#allocation2] sm:$0x1] %v533
        // Predicated region
        $region49: #{effnet_forward.9} parent=43 // pred_check
          %p535 = pneg %p267
        $region50: #{effnet_forward.9} parent=43 // pred_check_branch
          %537 = sbr.rel (%p535) target = $region52
        $region51: #{effnet_forward.9} parent=43 // pred_region
          %v538 = vld [vmem:[#allocation2] sm:$0x1]
          %v539 = vmul.f32 %v538, 0.015625
          %v540 = vld [vmem:[%s4] sm:$0xff]
          %v541 = vld [vmem:[%s4 + $0x8] sm:$0xff]
          %v542 = vld [vmem:[%s4 + $0x10] sm:$0xff]
          %v543 = vld [vmem:[%s4 + $0x18] sm:$0xff]
          %v544 = vld [vmem:[%s4 + $0x20] sm:$0xff]
          %v545 = vld [vmem:[%s4 + $0x28] sm:$0xff]
          %v546 = vld [vmem:[%s4 + $0x30] sm:$0xff]
          %v547 = vld [vmem:[%s4 + $0x38] sm:$0xff]
          %v548 = vld [vmem:[%s4 + $0x40] sm:$0xff]
          %v549 = vld [vmem:[%s4 + $0x48] sm:$0xff]
          %v550 = vld [vmem:[%s4 + $0x50] sm:$0xff]
          %v551 = vld [vmem:[%s4 + $0x58] sm:$0xff]
          %v552 = vld [vmem:[%s4 + $0x60] sm:$0xff]
          %v553 = vld [vmem:[%s4 + $0x68] sm:$0xff]
          %v554 = vld [vmem:[%s4 + $0x70] sm:$0xff]
          %v555 = vld [vmem:[%s4 + $0x78] sm:$0xff]
          %v556 = vld [vmem:[%s5] sm:$0x1]
          %557 = vmatprep.subr.mxu0 0.0
          %558 = vmatpush1.msra.mxu0 %v540
          %559 = vmatprep.subr.mxu0 0.0
          %560 = vmatpush1.msra.mxu0 %v541
          %561 = vmatprep.subr.mxu0 0.0
          %562 = vmatpush1.msra.mxu0 %v542
          %563 = vmatprep.subr.mxu0 0.0
          %564 = vmatpush1.msra.mxu0 %v543
          %565 = vmatprep.subr.mxu0 0.0
          %566 = vmatpush1.msra.mxu0 %v544
          %567 = vmatprep.subr.mxu0 0.0
          %568 = vmatpush1.msra.mxu0 %v545
          %569 = vmatprep.subr.mxu0 0.0
          %570 = vmatpush1.msra.mxu0 %v546
          %571 = vmatprep.subr.mxu0 0.0
          %572 = vmatpush1.msra.mxu0 %v547
          %573 = vmatprep.subr.mxu0 0.0
          %574 = vmatpush1.msra.mxu0 %v548
          %575 = vmatprep.subr.mxu0 0.0
          %576 = vmatpush1.msra.mxu0 %v549
          %577 = vmatprep.subr.mxu0 0.0
          %578 = vmatpush1.msra.mxu0 %v550
          %579 = vmatprep.subr.mxu0 0.0
          %580 = vmatpush1.msra.mxu0 %v551
          %581 = vmatprep.subr.mxu0 0.0
          %582 = vmatpush1.msra.mxu0 %v552
          %583 = vmatprep.subr.mxu0 0.0
          %584 = vmatpush1.msra.mxu0 %v553
          %585 = vmatprep.subr.mxu0 0.0
          %586 = vmatpush1.msra.mxu0 %v554
          %587 = vmatprep.subr.mxu0 0.0
          %588 = vmatpush1.msra.mxu0 %v555
          %589 = vmatprep.subr.mxu0 0.0
          %590 = vmatpush1.msra.mxu0 0.0
          %591 = vmatprep.subr.mxu0 0.0
          %592 = vmatpush1.msra.mxu0 0.0
          %593 = vmatprep.subr.mxu0 0.0
          %594 = vmatpush1.msra.mxu0 0.0
          %595 = vmatprep.subr.mxu0 0.0
          %596 = vmatpush1.msra.mxu0 0.0
          %597 = vmatprep.subr.mxu0 0.0
          %598 = vmatpush1.msra.mxu0 0.0
          %599 = vmatprep.subr.mxu0 0.0
          %600 = vmatpush1.msra.mxu0 0.0
          %601 = vmatprep.subr.mxu0 0.0
          %602 = vmatpush1.msra.mxu0 0.0
          %603 = vmatprep.subr.mxu0 0.0
          %604 = vmatpush1.msra.mxu0 0.0
          %605 = vmatprep.subr.mxu0 0.0
          %606 = vmatpush1.msra.mxu0 0.0
          %607 = vmatprep.subr.mxu0 0.0
          %608 = vmatpush1.msra.mxu0 0.0
          %609 = vmatprep.subr.mxu0 0.0
          %610 = vmatpush1.msra.mxu0 0.0
          %611 = vmatprep.subr.mxu0 0.0
          %612 = vmatpush1.msra.mxu0 0.0
          %613 = vmatprep.subr.mxu0 0.0
          %614 = vmatpush1.msra.mxu0 0.0
          %615 = vmatprep.subr.mxu0 0.0
          %616 = vmatpush1.msra.mxu0 0.0
          %617 = vmatprep.subr.mxu0 0.0
          %618 = vmatpush1.msra.mxu0 0.0
          %619 = vmatprep.subr.mxu0 0.0
          %620 = vmatpush1.msra.mxu0 0.0
          %621 = vmatprep.mubr.f32.mxu0 0.0
          %622 = vmatmul.mubr.f32.gmra.mrb[0].mxu0 %v539
          %v623 = vpop.f32.mrb[0].mxu0
          %v624 = vadd.f32 %v556, %v623
          %v625 = vpop.f32.mrb[0].mxu0
          %626 = vdwg.mxu0
          %s627 = scalar_lea.vmem [#allocation3], %s22
          %628 = vst [vmem:[%s627] sm:$0x1] %v624
        $region52: #{effnet_forward.9} parent=43 // pred_fallthru
          _
        // Predicated region
        $region53: #{effnet_forward.9} parent=43 // pred_check
          %p629 = pneg %p176
        $region54: #{effnet_forward.9} parent=43 // pred_check_branch
          %631 = sbr.rel (%p629) target = $region56
        $region55: #{effnet_forward.9} parent=43 // pred_region
          %s633 = ssub.s32 32, 32
          %634 = vsyncadd [#allocation4], %s633
          %s636 = sshll.u32 [#allocation3], 4
          %s637 = int_to_ptr.vmem [resolvable:$true] %s636
          %639 = dma.vmem_to_hbm [thread:$0]  %s637, 32, %s6, [#allocation4]
        $region56: #{effnet_forward.9} parent=43 // pred_fallthru
          _
        // Predicated region
        $region57: #{effnet_forward.9} parent=43 // pred_check
          %p640 = pneg %p176
        $region58: #{effnet_forward.9} parent=43 // pred_check_branch
          %642 = sbr.rel (%p640) target = $region60
        $region59: #{effnet_forward.9} parent=43 // pred_region
          %643 = dma.done [#allocation4], 32
        $region60: #{effnet_forward.9} parent=43 // pred_fallthru
          _
      $region44: #{effnet_forward.9} parent=5 // pred_fallthru
        _
      %p644 = scmp.le.s32.totalorder 2, %s13
      // Predicated region
      $region61: #{effnet_forward.9} parent=5 // pred_check
        %p645 = pneg %p644
      $region62: #{effnet_forward.9} parent=5 // pred_check_branch
        %647 = sbr.rel (%p645) target = $region64
      $region63: #{effnet_forward.9} parent=5 // pred_region
        %s648 = ssub.s32 %s13, 2
      $region64: #{effnet_forward.9} parent=5 // pred_fallthru
        _
    $region6: #{effnet_forward.9} parent=1 // loop_footer
      %s17 = sadd.s32 1, %s13
    $region7: #{effnet_forward.9} parent=1 // loop_footer_branch
      %12 = sbr.rel target = $region3
    $region8: #{effnet_forward.9} parent=1 // loop_exit
      _
    %649 = vsyncpa [#allocation4], 1
    %s650 = scalar_lea.sflag [#allocation4], 1
    %651 = vsyncpa %s650, 1

</llo_original>
